<compile_context>
chip_gen: v6e
topology: v6e:2x2x1
jax: 0.10.0
libtpu: 0.0.40
codegen_flags: <defaults>
</compile_context>

<pallas_src>
import jax
import jax.numpy as jnp
from jax.experimental import pallas as pl
from jax.experimental.pallas import tpu as pltpu

NEG_SLOPE = 0.01  # torch.nn.LeakyReLU default


def _leaky(x):
    return jnp.where(x >= 0, x, NEG_SLOPE * x)


# --------------------------------------------------------------------------
# Fused kernel: (3->64->128->1024) point MLP + global max pool + (1024->512->6)
# --------------------------------------------------------------------------
def _rotate_kernel(pts_ref, w1_ref, b1_ref, w2_ref, b2_ref, w3_ref, b3_ref,
                   w4_ref, b4_ref, w5_ref, b5_ref, rot_ref, maxacc_ref):
    n = pl.program_id(1)

    @pl.when(n == 0)
    def _():
        maxacc_ref[...] = jnp.full_like(maxacc_ref, -jnp.inf)

    x = pts_ref[0]                                   # (tn, 3) f32
    w1 = w1_ref[...]                                 # (3, 64) f32

    # Layer 1 (K=3): three VPU broadcast FMAs instead of a padded MXU pass.
    h1 = (x[:, 0:1] * w1[0:1, :]
          + x[:, 1:2] * w1[1:2, :]
          + x[:, 2:3] * w1[2:3, :]
          + b1_ref[...])
    h1 = _leaky(h1)                                  # (tn, 64) f32

    # Layers 2/3 on the MXU: bf16 inputs, f32 accumulation.
    h2 = _leaky(jnp.dot(h1.astype(jnp.bfloat16), w2_ref[...],
                        preferred_element_type=jnp.float32) + b2_ref[...])
    h3 = jnp.dot(h2.astype(jnp.bfloat16), w3_ref[...],
                 preferred_element_type=jnp.float32) + b3_ref[...]  # (tn,1024)

    # AdaptiveMaxPool1d(1): running max over the point axis in VMEM scratch.
    maxacc_ref[...] = jnp.maximum(maxacc_ref[...],
                                  jnp.max(h3, axis=0, keepdims=True))

    # Fused MLP head on the final point-tile step.
    @pl.when(n == pl.num_programs(1) - 1)
    def _():
        feat = maxacc_ref[...]                       # (1, 1024) f32
        h4 = _leaky(jnp.dot(feat.astype(jnp.bfloat16), w4_ref[...],
                            preferred_element_type=jnp.float32) + b4_ref[...])
        rot_ref[0] = (jnp.dot(h4, w5_ref[...],
                              preferred_element_type=jnp.float32)
                      + b5_ref[...])                 # (1, 6)


def _pick_point_tile(n, max_tile=1024):
    """Largest point tile: the whole N when modest, else a big divisor."""
    if n <= max_tile:
        return n
    for step in (256, 8):                 # prefer MXU-friendly multiples of 256
        t = (max_tile // step) * step
        while t >= step:
            if n % t == 0:
                return t
            t -= step
    return n                               # fallback: single tile over all N


def predict_rotation_6d(points, params, *, max_tile=1024):
    """points: (B, N, 3) f32 -> predicted 6D rotation (B, 6) f32."""
    B, N, _ = points.shape
    tn = _pick_point_tile(N, max_tile)

    # Big weights stored/fed as bf16 (f32 accumulation inside the kernel).
    w1, b1 = params["w1"], params["b1"]
    w2 = params["w2"].astype(jnp.bfloat16)
    b2 = params["b2"]
    w3 = params["w3"].astype(jnp.bfloat16)
    b3 = params["b3"]
    w4 = params["w4"].astype(jnp.bfloat16)
    b4 = params["b4"]
    w5, b5 = params["w5"], params["b5"]

    weight_bytes = sum(int(a.nbytes) for a in
                       (w1, b1, w2, b2, w3, b3, w4, b4, w5, b5))
    cost = pl.CostEstimate(
        flops=2 * B * N * (3 * 64 + 64 * 128 + 128 * 1024)
        + 2 * B * (1024 * 512 + 512 * 6),
        transcendentals=0,
        bytes_accessed=int(points.nbytes) + weight_bytes + B * 6 * 4,
    )

    rot = pl.pallas_call(
        _rotate_kernel,
        out_shape=jax.ShapeDtypeStruct((B, 1, 6), jnp.float32),
        grid=(B, N // tn),
        in_specs=[
            pl.BlockSpec((1, tn, 3), lambda b, n: (b, n, 0)),
            pl.BlockSpec((3, 64), lambda b, n: (0, 0)),
            pl.BlockSpec((1, 64), lambda b, n: (0, 0)),
            pl.BlockSpec((64, 128), lambda b, n: (0, 0)),
            pl.BlockSpec((1, 128), lambda b, n: (0, 0)),
            pl.BlockSpec((128, 1024), lambda b, n: (0, 0)),
            pl.BlockSpec((1, 1024), lambda b, n: (0, 0)),
            pl.BlockSpec((1024, 512), lambda b, n: (0, 0)),
            pl.BlockSpec((1, 512), lambda b, n: (0, 0)),
            pl.BlockSpec((512, 6), lambda b, n: (0, 0)),
            pl.BlockSpec((1, 6), lambda b, n: (0, 0)),
        ],
        out_specs=pl.BlockSpec((1, 1, 6), lambda b, n: (b, 0, 0)),
        scratch_shapes=[pltpu.VMEM((1, 1024), jnp.float32)],
        compiler_params=pltpu.CompilerParams(
            dimension_semantics=("parallel", "arbitrary")),
        cost_estimate=cost,
    )(points, w1, b1, w2, b2, w3, b3, w4, b4, w5, b5)
    return rot.reshape(B, 6)


# --------------------------------------------------------------------------
# Plain-JAX glue: 6D -> rotation matrix, losses, forward() over the data dict
# --------------------------------------------------------------------------
def compute_rotation_matrix_from_ortho6d(ortho6d):
    """Zhou et al. 6D rotation representation.  ortho6d: (B, 6) -> (B, 3, 3)."""
    def _normalize(v):
        mag = jnp.sqrt(jnp.sum(v * v, axis=-1, keepdims=True))
        mag = jnp.maximum(mag, 1e-8)
        return v / mag

    x_raw = ortho6d[:, 0:3]
    y_raw = ortho6d[:, 3:6]
    x = _normalize(x_raw)
    z = _normalize(jnp.cross(x, y_raw))
    y = jnp.cross(z, x)
    # columns are x, y, z (matches torch.cat((x, y, z), dim=2))
    return jnp.stack([x, y, z], axis=-1)


def _encode(points, params):
    rotation = predict_rotation_6d(points, params)     # fused Pallas kernel
    rotate_matrix = compute_rotation_matrix_from_ortho6d(rotation)
    return rotation, rotate_matrix


def continus_rotate_net_forward(data, params, infer=False):
    # encodeRotateMatrix
    pt2 = data["inputs"]["origin_query_point_array"]
    rotation, rotate_matrix = _encode(pt2, params)
    data["predictions"]["rotation"] = rotation
    data["predictions"]["rotate_matrix"] = rotate_matrix
    if not infer:
        gt = data["inputs"]["rotate_matrix"]
        data["losses"]["loss_rotate_matrix"] = jnp.mean(
            jnp.square(gt - rotate_matrix))
        # encodeCompleteRotateMatrix
        pt = data["inputs"]["origin_point_array"]
        c_rotation, c_rotate_matrix = _encode(pt, params)
        data["predictions"]["complete_rotation"] = c_rotation
        data["predictions"]["complete_rotate_matrix"] = c_rotate_matrix
        data["losses"]["loss_complete_rotate_matrix"] = jnp.mean(
            jnp.square(gt - c_rotate_matrix))
        # addWeight (setWeight(data, name, 1))
        data["losses_weight"] = {"loss_rotate_matrix": 1.0,
                                 "loss_complete_rotate_matrix": 1.0}
    return data


# --------------------------------------------------------------------------
# Deterministic parameter construction (shapes from the module's __init__)
# --------------------------------------------------------------------------
def init_params(key):
    def _layer(k, fan_in, fan_out):
        kw, kb = jax.random.split(k)
        bound = 1.0 / (fan_in ** 0.5)
        w = jax.random.uniform(kw, (fan_in, fan_out), jnp.float32,
                               minval=-bound, maxval=bound)
        b = jax.random.uniform(kb, (1, fan_out), jnp.float32,
                               minval=-bound, maxval=bound)
        return w, b

    keys = jax.random.split(key, 5)
    w1, b1 = _layer(keys[0], 3, 64)        # Conv1d(3, 64, k=1)
    w2, b2 = _layer(keys[1], 64, 128)      # Conv1d(64, 128, k=1)
    w3, b3 = _layer(keys[2], 128, 1024)    # Conv1d(128, 1024, k=1)
    w4, b4 = _layer(keys[3], 1024, 512)    # Linear(1024, 512)
    w5, b5 = _layer(keys[4], 512, 6)       # Linear(512, 6)
    return dict(w1=w1, b1=b1, w2=w2, b2=b2, w3=w3, b3=b3,
                w4=w4, b4=b4, w5=w5, b5=b5)


# Pure-JAX f32 reference of the conv stack + MLP for a correctness check.
# (The kernel runs the big matmuls with bf16 inputs -> compare loosely.)
def _ref_rotation(points, p):
    h = _leaky(points @ p["w1"] + p["b1"])
    h = _leaky(h @ p["w2"] + p["b2"])
    h = h @ p["w3"] + p["b3"]
    feat = jnp.max(h, axis=1)
    h = _leaky(feat @ p["w4"] + p["b4"])
    return h @ p["w5"] + p["b5"]


if __name__ == "__main__":
    key = jax.random.PRNGKey(0)
    k_pts_q, k_pts_c, k_gt, k_params = jax.random.split(key, 4)

    B, N_QUERY, N_COMPLETE = 2, 256, 256
    params = init_params(k_params)

    origin_query_points = jax.random.normal(k_pts_q, (B, N_QUERY, 3),
                                            jnp.float32)
    origin_points = jax.random.normal(k_pts_c, (B, N_COMPLETE, 3), jnp.float32)
    gt_rotate_matrix = compute_rotation_matrix_from_ortho6d(
        jax.random.normal(k_gt, (B, 6), jnp.float32))

    data = {
        "inputs": {
            "origin_query_point_array": origin_query_points,
            "origin_point_array": origin_points,
            "rotate_matrix": gt_rotate_matrix,
        },
        "predictions": {},
        "losses": {},
    }

    data = continus_rotate_net_forward(data, params, infer=False)
    jax.block_until_ready(data["predictions"]["rotate_matrix"])
    jax.block_until_ready(data["losses"]["loss_complete_rotate_matrix"])

    # Sanity check the fused Pallas kernel against a pure-JAX f32 reference.
    # Tolerance is loosened because the kernel runs the 64->128, 128->1024 and
    # 1024->512 matmuls with bf16 inputs (f32 accumulation).
    ref_rot_q = _ref_rotation(origin_query_points, params)
    ref_rot_c = _ref_rotation(origin_points, params)
    assert jnp.allclose(data["predictions"]["rotation"], ref_rot_q,
                        rtol=3e-2, atol=3e-2)
    assert jnp.allclose(data["predictions"]["complete_rotation"], ref_rot_c,
                        rtol=3e-2, atol=3e-2)
    assert data["predictions"]["rotate_matrix"].shape == (B, 3, 3)
    assert data["predictions"]["complete_rotate_matrix"].shape == (B, 3, 3)
    assert data["losses"]["loss_rotate_matrix"].shape == ()

    print("KERNEL_OK")
</pallas_src>

<mosaic_0001>
module attributes {stable_mosaic.version = 11 : i64} {
  func.func @_rotate_kernel(%arg0: i32, %arg1: i32, %arg2: memref<1x256x3xf32, #tpu.memory_space<vmem>>, %arg3: memref<3x64xf32, #tpu.memory_space<vmem>>, %arg4: memref<1x64xf32, #tpu.memory_space<vmem>>, %arg5: memref<64x128xbf16, #tpu.memory_space<vmem>>, %arg6: memref<1x128xf32, #tpu.memory_space<vmem>>, %arg7: memref<128x1024xbf16, #tpu.memory_space<vmem>>, %arg8: memref<1x1024xf32, #tpu.memory_space<vmem>>, %arg9: memref<1024x512xbf16, #tpu.memory_space<vmem>>, %arg10: memref<1x512xf32, #tpu.memory_space<vmem>>, %arg11: memref<512x6xf32, #tpu.memory_space<vmem>>, %arg12: memref<1x6xf32, #tpu.memory_space<vmem>>, %arg13: memref<1x1x6xf32, #tpu.memory_space<vmem>>, %arg14: memref<1x1024xf32, #tpu.memory_space<vmem>>) attributes {dimension_semantics = [#tpu.dimension_semantics<parallel>, #tpu.dimension_semantics<arbitrary>], iteration_bounds = array<i64: 2, 1>, scalar_prefetch = 0 : i64, scratch_operands = 1 : i64, tpu.core_type = #tpu.core_type<tc>, window_params = [{transform_indices = @transform_0, window_bounds = array<i64: 1, 256, 3>}, {pipeline_mode = #tpu.pipeline_mode<synchronous>, transform_indices = @transform_1, window_bounds = array<i64: 3, 64>}, {pipeline_mode = #tpu.pipeline_mode<synchronous>, transform_indices = @transform_2, window_bounds = array<i64: 1, 64>}, {pipeline_mode = #tpu.pipeline_mode<synchronous>, transform_indices = @transform_3, window_bounds = array<i64: 64, 128>}, {pipeline_mode = #tpu.pipeline_mode<synchronous>, transform_indices = @transform_4, window_bounds = array<i64: 1, 128>}, {pipeline_mode = #tpu.pipeline_mode<synchronous>, transform_indices = @transform_5, window_bounds = array<i64: 128, 1024>}, {pipeline_mode = #tpu.pipeline_mode<synchronous>, transform_indices = @transform_6, window_bounds = array<i64: 1, 1024>}, {pipeline_mode = #tpu.pipeline_mode<synchronous>, transform_indices = @transform_7, window_bounds = array<i64: 1024, 512>}, {pipeline_mode = #tpu.pipeline_mode<synchronous>, transform_indices = @transform_8, window_bounds = array<i64: 1, 512>}, {pipeline_mode = #tpu.pipeline_mode<synchronous>, transform_indices = @transform_9, window_bounds = array<i64: 512, 6>}, {pipeline_mode = #tpu.pipeline_mode<synchronous>, transform_indices = @transform_10, window_bounds = array<i64: 1, 6>}, {transform_indices = @transform_11, window_bounds = array<i64: 1, 1, 6>}]} {
    %c0_i32 = arith.constant 0 : i32
    %0 = arith.cmpi eq, %arg1, %c0_i32 : i32
    %1 = arith.extui %0 : i1 to i32
    %c0_i32_0 = arith.constant 0 : i32
    %2 = arith.cmpi ne, %1, %c0_i32_0 : i32
    scf.if %2 {
      %cst_27 = arith.constant 0xFF800000 : f32
      %56 = vector.broadcast %cst_27 : f32 to vector<1x1024xf32>
      %c0_28 = arith.constant 0 : index
      %c0_29 = arith.constant 0 : index
      %57 = vector.load %arg14[%c0_28, %c0_29] : memref<1x1024xf32, #tpu.memory_space<vmem>>, vector<1x1024xf32>
      tpu.vector_store %arg14[%c0_28, %c0_29], %56 {strides = array<i32>} : memref<1x1024xf32, #tpu.memory_space<vmem>>, vector<1x1024xf32>,
    } else {
    }
    %c0 = arith.constant 0 : index
    %c0_1 = arith.constant 0 : index
    %c0_2 = arith.constant 0 : index
    %3 = vector.load %arg2[%c0, %c0_1, %c0_2] : memref<1x256x3xf32, #tpu.memory_space<vmem>>, vector<1x256x3xf32>
    %4 = vector.shape_cast %3 : vector<1x256x3xf32> to vector<256x3xf32>
    %c0_3 = arith.constant 0 : index
    %c0_4 = arith.constant 0 : index
    %5 = vector.load %arg3[%c0_3, %c0_4] : memref<3x64xf32, #tpu.memory_space<vmem>>, vector<3x64xf32>
    %6 = vector.extract_strided_slice %4 {offsets = [0, 0], sizes = [256, 1], strides = [1, 1]} : vector<256x3xf32> to vector<256x1xf32>
    %7 = vector.extract_strided_slice %5 {offsets = [0, 0], sizes = [1, 64], strides = [1, 1]} : vector<3x64xf32> to vector<1x64xf32>
    %8 = vector.broadcast %6 : vector<256x1xf32> to vector<256x64xf32>
    %9 = vector.broadcast %7 : vector<1x64xf32> to vector<256x64xf32>
    %10 = arith.mulf %8, %9 : vector<256x64xf32>
    %11 = vector.extract_strided_slice %4 {offsets = [0, 1], sizes = [256, 1], strides = [1, 1]} : vector<256x3xf32> to vector<256x1xf32>
    %12 = vector.extract_strided_slice %5 {offsets = [1, 0], sizes = [1, 64], strides = [1, 1]} : vector<3x64xf32> to vector<1x64xf32>
    %13 = vector.broadcast %11 : vector<256x1xf32> to vector<256x64xf32>
    %14 = vector.broadcast %12 : vector<1x64xf32> to vector<256x64xf32>
    %15 = arith.mulf %13, %14 : vector<256x64xf32>
    %16 = arith.addf %10, %15 : vector<256x64xf32>
    %17 = vector.extract_strided_slice %4 {offsets = [0, 2], sizes = [256, 1], strides = [1, 1]} : vector<256x3xf32> to vector<256x1xf32>
    %18 = vector.extract_strided_slice %5 {offsets = [2, 0], sizes = [1, 64], strides = [1, 1]} : vector<3x64xf32> to vector<1x64xf32>
    %19 = vector.broadcast %17 : vector<256x1xf32> to vector<256x64xf32>
    %20 = vector.broadcast %18 : vector<1x64xf32> to vector<256x64xf32>
    %21 = arith.mulf %19, %20 : vector<256x64xf32>
    %22 = arith.addf %16, %21 : vector<256x64xf32>
    %c0_5 = arith.constant 0 : index
    %c0_6 = arith.constant 0 : index
    %23 = vector.load %arg4[%c0_5, %c0_6] : memref<1x64xf32, #tpu.memory_space<vmem>>, vector<1x64xf32>
    %24 = vector.broadcast %23 : vector<1x64xf32> to vector<256x64xf32>
    %25 = arith.addf %22, %24 : vector<256x64xf32>
    %cst = arith.constant 0.000000e+00 : f32
    %26 = vector.broadcast %cst : f32 to vector<256x64xf32>
    %27 = arith.cmpf oge, %25, %26 : vector<256x64xf32>
    %cst_7 = arith.constant 0.00999999977 : f32
    %28 = vector.broadcast %cst_7 : f32 to vector<256x64xf32>
    %29 = arith.mulf %28, %25 : vector<256x64xf32>
    %30 = arith.select %27, %25, %29 : vector<256x64xi1>, vector<256x64xf32>
    %31 = arith.truncf %30 : vector<256x64xf32> to vector<256x64xbf16>
    %c0_8 = arith.constant 0 : index
    %c0_9 = arith.constant 0 : index
    %32 = vector.load %arg5[%c0_8, %c0_9] : memref<64x128xbf16, #tpu.memory_space<vmem>>, vector<64x128xbf16>
    %cst_10 = arith.constant dense<0.000000e+00> : vector<256x128xf32>
    %33 = tpu.matmul %31, %32, %cst_10 {dimension_numbers = #tpu.dot_dimension_numbers<[1], [0], [0], [1], [0, 0, 1, 1], [], []>} : vector<256x64xbf16>, vector<64x128xbf16>, vector<256x128xf32> -> vector<256x128xf32>
    %c0_11 = arith.constant 0 : index
    %c0_12 = arith.constant 0 : index
    %34 = vector.load %arg6[%c0_11, %c0_12] : memref<1x128xf32, #tpu.memory_space<vmem>>, vector<1x128xf32>
    %35 = vector.broadcast %34 : vector<1x128xf32> to vector<256x128xf32>
    %36 = arith.addf %33, %35 : vector<256x128xf32>
    %cst_13 = arith.constant 0.000000e+00 : f32
    %37 = vector.broadcast %cst_13 : f32 to vector<256x128xf32>
    %38 = arith.cmpf oge, %36, %37 : vector<256x128xf32>
    %cst_14 = arith.constant 0.00999999977 : f32
    %39 = vector.broadcast %cst_14 : f32 to vector<256x128xf32>
    %40 = arith.mulf %39, %36 : vector<256x128xf32>
    %41 = arith.select %38, %36, %40 : vector<256x128xi1>, vector<256x128xf32>
    %42 = arith.truncf %41 : vector<256x128xf32> to vector<256x128xbf16>
    %c0_15 = arith.constant 0 : index
    %c0_16 = arith.constant 0 : index
    %43 = vector.load %arg7[%c0_15, %c0_16] : memref<128x1024xbf16, #tpu.memory_space<vmem>>, vector<128x1024xbf16>
    %cst_17 = arith.constant dense<0.000000e+00> : vector<256x1024xf32>
    %44 = tpu.matmul %42, %43, %cst_17 {dimension_numbers = #tpu.dot_dimension_numbers<[1], [0], [0], [1], [0, 0, 1, 1], [], []>} : vector<256x128xbf16>, vector<128x1024xbf16>, vector<256x1024xf32> -> vector<256x1024xf32>
    %c0_18 = arith.constant 0 : index
    %c0_19 = arith.constant 0 : index
    %45 = vector.load %arg8[%c0_18, %c0_19] : memref<1x1024xf32, #tpu.memory_space<vmem>>, vector<1x1024xf32>
    %46 = vector.broadcast %45 : vector<1x1024xf32> to vector<256x1024xf32>
    %47 = arith.addf %44, %46 : vector<256x1024xf32>
    %c0_20 = arith.constant 0 : index
    %c0_21 = arith.constant 0 : index
    %48 = vector.load %arg14[%c0_20, %c0_21] : memref<1x1024xf32, #tpu.memory_space<vmem>>, vector<1x1024xf32>
    %cst_22 = arith.constant dense<0xFF800000> : vector<1024xf32>
    %49 = vector.multi_reduction <maximumf>, %47, %cst_22 [0] : vector<256x1024xf32> to vector<1024xf32>
    %50 = vector.shape_cast %49 : vector<1024xf32> to vector<1x1024xf32>
    %51 = arith.maximumf %48, %50 : vector<1x1024xf32>
    %c0_23 = arith.constant 0 : index
    %c0_24 = arith.constant 0 : index
    %52 = vector.load %arg14[%c0_23, %c0_24] : memref<1x1024xf32, #tpu.memory_space<vmem>>, vector<1x1024xf32>
    tpu.vector_store %arg14[%c0_23, %c0_24], %51 {strides = array<i32>} : memref<1x1024xf32, #tpu.memory_space<vmem>>, vector<1x1024xf32>,
    %c0_i32_25 = arith.constant 0 : i32
    %53 = arith.cmpi eq, %arg1, %c0_i32_25 : i32
    %54 = arith.extui %53 : i1 to i32
    %c0_i32_26 = arith.constant 0 : i32
    %55 = arith.cmpi ne, %54, %c0_i32_26 : i32
    scf.if %55 {
      %c0_27 = arith.constant 0 : index
      %c0_28 = arith.constant 0 : index
      %56 = vector.load %arg14[%c0_27, %c0_28] : memref<1x1024xf32, #tpu.memory_space<vmem>>, vector<1x1024xf32>
      %57 = arith.truncf %56 : vector<1x1024xf32> to vector<1x1024xbf16>
      %c0_29 = arith.constant 0 : index
      %c0_30 = arith.constant 0 : index
      %58 = vector.load %arg9[%c0_29, %c0_30] : memref<1024x512xbf16, #tpu.memory_space<vmem>>, vector<1024x512xbf16>
      %cst_31 = arith.constant dense<0.000000e+00> : vector<1x512xf32>
      %59 = tpu.matmul %57, %58, %cst_31 {dimension_numbers = #tpu.dot_dimension_numbers<[1], [0], [0], [1], [0, 0, 1, 1], [], []>} : vector<1x1024xbf16>, vector<1024x512xbf16>, vector<1x512xf32> -> vector<1x512xf32>
      %c0_32 = arith.constant 0 : index
      %c0_33 = arith.constant 0 : index
      %60 = vector.load %arg10[%c0_32, %c0_33] : memref<1x512xf32, #tpu.memory_space<vmem>>, vector<1x512xf32>
      %61 = arith.addf %59, %60 : vector<1x512xf32>
      %cst_34 = arith.constant 0.000000e+00 : f32
      %62 = vector.broadcast %cst_34 : f32 to vector<1x512xf32>
      %63 = arith.cmpf oge, %61, %62 : vector<1x512xf32>
      %cst_35 = arith.constant 0.00999999977 : f32
      %64 = vector.broadcast %cst_35 : f32 to vector<1x512xf32>
      %65 = arith.mulf %64, %61 : vector<1x512xf32>
      %66 = arith.select %63, %61, %65 : vector<1x512xi1>, vector<1x512xf32>
      %c0_36 = arith.constant 0 : index
      %c0_37 = arith.constant 0 : index
      %67 = vector.load %arg11[%c0_36, %c0_37] : memref<512x6xf32, #tpu.memory_space<vmem>>, vector<512x6xf32>
      %cst_38 = arith.constant dense<0.000000e+00> : vector<1x6xf32>
      %68 = tpu.matmul %66, %67, %cst_38 {dimension_numbers = #tpu.dot_dimension_numbers<[1], [0], [0], [1], [0, 0, 1, 1], [], []>} : vector<1x512xf32>, vector<512x6xf32>, vector<1x6xf32> -> vector<1x6xf32>
      %c0_39 = arith.constant 0 : index
      %c0_40 = arith.constant 0 : index
      %69 = vector.load %arg12[%c0_39, %c0_40] : memref<1x6xf32, #tpu.memory_space<vmem>>, vector<1x6xf32>
      %70 = arith.addf %68, %69 : vector<1x6xf32>
      %c0_41 = arith.constant 0 : index
      %c0_42 = arith.constant 0 : index
      %c0_43 = arith.constant 0 : index
      %71 = vector.load %arg13[%c0_41, %c0_42, %c0_43] : memref<1x1x6xf32, #tpu.memory_space<vmem>>, vector<1x1x6xf32>
      %72 = vector.shape_cast %71 : vector<1x1x6xf32> to vector<1x6xf32>
      %73 = vector.shape_cast %70 : vector<1x6xf32> to vector<1x1x6xf32>
      tpu.vector_store %arg13[%c0_41, %c0_42, %c0_43], %73 {strides = array<i32>} : memref<1x1x6xf32, #tpu.memory_space<vmem>>, vector<1x1x6xf32>,
    } else {
    }
    return
  }
  func.func @transform_0(%arg0: i32, %arg1: i32) -> (i32, i32, i32) {
    %c0_i32 = arith.constant 0 : i32
    %c0_i32_0 = arith.constant 0 : i32
    return %arg0, %arg1, %c0_i32 : i32, i32, i32
  }
  func.func @transform_1(%arg0: i32, %arg1: i32) -> (i32, i32) {
    %c0_i32 = arith.constant 0 : i32
    %c0_i32_0 = arith.constant 0 : i32
    %c0_i32_1 = arith.constant 0 : i32
    return %c0_i32, %c0_i32_0 : i32, i32
  }
  func.func @transform_2(%arg0: i32, %arg1: i32) -> (i32, i32) {
    %c0_i32 = arith.constant 0 : i32
    %c0_i32_0 = arith.constant 0 : i32
    %c0_i32_1 = arith.constant 0 : i32
    return %c0_i32, %c0_i32_0 : i32, i32
  }
  func.func @transform_3(%arg0: i32, %arg1: i32) -> (i32, i32) {
    %c0_i32 = arith.constant 0 : i32
    %c0_i32_0 = arith.constant 0 : i32
    %c0_i32_1 = arith.constant 0 : i32
    return %c0_i32, %c0_i32_0 : i32, i32
  }
  func.func @transform_4(%arg0: i32, %arg1: i32) -> (i32, i32) {
    %c0_i32 = arith.constant 0 : i32
    %c0_i32_0 = arith.constant 0 : i32
    %c0_i32_1 = arith.constant 0 : i32
    return %c0_i32, %c0_i32_0 : i32, i32
  }
  func.func @transform_5(%arg0: i32, %arg1: i32) -> (i32, i32) {
    %c0_i32 = arith.constant 0 : i32
    %c0_i32_0 = arith.constant 0 : i32
    %c0_i32_1 = arith.constant 0 : i32
    return %c0_i32, %c0_i32_0 : i32, i32
  }
  func.func @transform_6(%arg0: i32, %arg1: i32) -> (i32, i32) {
    %c0_i32 = arith.constant 0 : i32
    %c0_i32_0 = arith.constant 0 : i32
    %c0_i32_1 = arith.constant 0 : i32
    return %c0_i32, %c0_i32_0 : i32, i32
  }
  func.func @transform_7(%arg0: i32, %arg1: i32) -> (i32, i32) {
    %c0_i32 = arith.constant 0 : i32
    %c0_i32_0 = arith.constant 0 : i32
    %c0_i32_1 = arith.constant 0 : i32
    return %c0_i32, %c0_i32_0 : i32, i32
  }
  func.func @transform_8(%arg0: i32, %arg1: i32) -> (i32, i32) {
    %c0_i32 = arith.constant 0 : i32
    %c0_i32_0 = arith.constant 0 : i32
    %c0_i32_1 = arith.constant 0 : i32
    return %c0_i32, %c0_i32_0 : i32, i32
  }
  func.func @transform_9(%arg0: i32, %arg1: i32) -> (i32, i32) {
    %c0_i32 = arith.constant 0 : i32
    %c0_i32_0 = arith.constant 0 : i32
    %c0_i32_1 = arith.constant 0 : i32
    return %c0_i32, %c0_i32_0 : i32, i32
  }
  func.func @transform_10(%arg0: i32, %arg1: i32) -> (i32, i32) {
    %c0_i32 = arith.constant 0 : i32
    %c0_i32_0 = arith.constant 0 : i32
    %c0_i32_1 = arith.constant 0 : i32
    return %c0_i32, %c0_i32_0 : i32, i32
  }
  func.func @transform_11(%arg0: i32, %arg1: i32) -> (i32, i32, i32) {
    %c0_i32 = arith.constant 0 : i32
    %c0_i32_0 = arith.constant 0 : i32
    %c0_i32_1 = arith.constant 0 : i32
    return %arg0, %c0_i32, %c0_i32_0 : i32, i32, i32
  }
}

</mosaic_0001>

<llo_original>
// kernel: tpu_custom_call.1
$region0: #{tpu_custom_call.1}
  #allocation0 [shape = 'u32[]', space=smem, size = 0x4, offset = 0x4, fixed_abs, tag = 'smem constant byte address 0x4 - core index']
  #allocation1 [shape = 'u32[144,128]{1,0:T(1,128)}', space=vmem, size = 0x12000, scoped, tag = 'internal scratch']
  #allocation2 [shape = 'f32[1,1024]{1,0:T(1,128)}', space=vmem, size = 0x1000, scoped, tag = 'scratch operand']
  %s0 = inlined_call_operand.vmem [shape: f32[2,256,3], index: 0, kind: input, shape index: {}]
  %s1 = inlined_call_operand.vmem [shape: f32[3,64], index: 1, kind: input, shape index: {}]
  %s2 = inlined_call_operand.vmem [shape: f32[1,64], index: 2, kind: input, shape index: {}]
  %s3 = inlined_call_operand.vmem [shape: bf16[64,128], index: 3, kind: input, shape index: {}]
  %s4 = inlined_call_operand.vmem [shape: f32[1,128], index: 4, kind: input, shape index: {}]
  %s5 = inlined_call_operand.vmem [shape: bf16[128,1024], index: 5, kind: input, shape index: {}]
  %s6 = inlined_call_operand.vmem [shape: f32[1,1024], index: 6, kind: input, shape index: {}]
  %s7 = inlined_call_operand.hbm [shape: bf16[1024,512], index: 7, kind: input, shape index: {}]
  %s8 = inlined_call_operand.vmem [shape: f32[1,512], index: 8, kind: input, shape index: {}]
  %s9 = inlined_call_operand.vmem [shape: f32[512,6], index: 9, kind: input, shape index: {}]
  %s10 = inlined_call_operand.vmem [shape: f32[1,6], index: 10, kind: input, shape index: {}]
  %s11 = inlined_call_operand.hbm [shape: f32[2,1,6], index: 11, kind: output, shape index: {}]
  %s12 = sld [smem:[#allocation0]]
  $region89: #{tpu_custom_call.1} parent=0
    _
  %s14 = ssub.s32 1, %s12
  %s15 = scalar_select 0, %s14, %s12
  $region1: #{tpu_custom_call.1} parent=0
    #allocation3 [shape = 'u8[1048576]{0}', space=vmem, size = 0x100000, scoped, tag = 'input window, operand 7, single buffered']
    #allocation4 [shape = 's32[2]{0}', space=sflag, size = 0x8, scoped, tag = 'scoped memory for tpu_custom_call.1']
    #allocation5 [shape = 's32[2]{0}', space=sflag, size = 0x8, scoped, tag = 'scoped memory for tpu_custom_call.1']
    #allocation6 [shape = 'u8[1024]{0}', space=vmem, size = 0x400, scoped, tag = 'output window, operand 0']
    %16 = vsyncpa [#allocation4], 0
    %17 = vsyncpa [#allocation5], 0
    %s18 = scalar_lea.sflag [#allocation5], 1
    %19 = vsyncpa %s18, 0
    loop: start=0, step=1, limit=4
    $region2: #{tpu_custom_call.1} parent=1 // loop_pre_header
      _
    $region3: #{tpu_custom_call.1} parent=1 // loop_header
      %s21 = sphi 0, %s25
      %p22 = scmp.ge.s32.totalorder %s21, 4
      %s28 = sphi 0, %s40
      %s29 = sphi 0, %s36
      %s30 = sphi 0, %s28
      %s31 = sphi 0, %s29
      %s32 = sphi 0, %s30
      %s33 = sphi 0, %s31
      %s45 = sphi 0, %s47
      %s48 = sphi 0, %s45
      %s49 = sphi 0, %s48
      %s65 = sphi 0, %s49
      %s69 = sphi 0, %s69
      %s71 = sphi 0, %s69
      %s72 = sphi 0, %s71
      %s86 = sphi 0, %s72
      %s90 = sphi 0, %s90
      %s92 = sphi 0, %s90
      %s93 = sphi 0, %s92
      %s107 = sphi 0, %s93
      %s111 = sphi 0, %s111
      %s113 = sphi 0, %s111
      %s114 = sphi 0, %s113
      %s128 = sphi 0, %s114
      %s132 = sphi 0, %s132
      %s134 = sphi 0, %s132
      %s135 = sphi 0, %s134
      %s149 = sphi 0, %s135
      %s153 = sphi 0, %s153
      %s155 = sphi 0, %s153
      %s156 = sphi 0, %s155
      %s170 = sphi 0, %s156
      %s174 = sphi 0, %s174
      %s176 = sphi 0, %s174
      %s177 = sphi 0, %s176
      %s191 = sphi 0, %s177
      %s195 = sphi 0, %s195
      %s197 = sphi 0, %s195
      %s198 = sphi 0, %s197
      %s212 = sphi 0, %s198
      %s216 = sphi 0, %s216
      %s218 = sphi 0, %s216
      %s219 = sphi 0, %s218
      %s233 = sphi 0, %s219
      %s237 = sphi 0, %s237
      %s239 = sphi 0, %s237
      %s240 = sphi 0, %s239
      %s254 = sphi 0, %s240
      %s258 = sphi 0, %s258
      %s260 = sphi 0, %s258
      %s261 = sphi 0, %s260
      %s275 = sphi 0, %s261
      %s281 = sphi 0, %s283
      %s284 = sphi 0, %s281
      %s285 = sphi 0, %s284
      %s301 = sphi 0, %s285
    $region4: #{tpu_custom_call.1} parent=1 // loop_header_branch
      %24 = sbr.rel (%p22) target = $region8
    $region5: #{tpu_custom_call.1} parent=1 // loop_body
      %s26 = ssub.s32 %s21, 1
      %s27 = ssub.s32 %s21, 2
      %s34 = sadd.s32 1, %s29
      %p35 = scmp.ge.s32.totalorder %s34, 1
      %s36 = scalar_select %p35, 0, %s34
      %s37 = sadd.s32 1, %s28
      %s38 = scalar_select %p35, %s37, %s28
      %p39 = scmp.ge.s32.totalorder %s38, 2
      %s40 = scalar_select %p39, 0, %s38
      %s41 = ssub.s32 %s28, %s40
      %s42 = ssub.s32 %s29, %s36
      %s43 = sor.u32 %s41, %s42
      %p44 = scmp.eq.s32.totalorder %s43, 0
      %s46 = sadd.s32 %s45, 1
      %s47 = scalar_select %p44, %s45, %s46
      %p50 = pneg %p44
      %p51 = scmp.eq.s32.totalorder %s21, 1
      %p52 = por %p50, %p51
      %p53 = scmp.ne.s32.totalorder %s45, %s48
      %p54 = scmp.eq.s32.totalorder %s21, 0
      %p55 = por %p53, %p54
      %p56 = scmp.ne.s32.totalorder %s45, %s48
      %p57 = scmp.eq.s32.totalorder %s26, 1
      %p58 = por %p56, %p57
      %p59 = scmp.ne.s32.totalorder %s48, %s49
      %p60 = scmp.eq.s32.totalorder %s26, 0
      %p61 = por %p59, %p60
      %p62 = scmp.ne.s32.totalorder %s48, %s49
      %p63 = scmp.eq.s32.totalorder %s27, 1
      %p64 = por %p62, %p63
      %p66 = scmp.ne.s32.totalorder %s49, %s65
      %p67 = scmp.eq.s32.totalorder %s27, 0
      %p68 = por %p66, %p67
      %s70 = sadd.s32 %s69, 1
      %p73 = scmp.eq.s32.totalorder %s21, 1
      %p74 = scmp.ne.s32.totalorder %s69, %s71
      %p75 = scmp.eq.s32.totalorder %s21, 0
      %p76 = por %p74, %p75
      %p77 = scmp.ne.s32.totalorder %s69, %s71
      %p78 = scmp.eq.s32.totalorder %s26, 1
      %p79 = por %p77, %p78
      %p80 = scmp.ne.s32.totalorder %s71, %s72
      %p81 = scmp.eq.s32.totalorder %s26, 0
      %p82 = por %p80, %p81
      %p83 = scmp.ne.s32.totalorder %s71, %s72
      %p84 = scmp.eq.s32.totalorder %s27, 1
      %p85 = por %p83, %p84
      %p87 = scmp.ne.s32.totalorder %s72, %s86
      %p88 = scmp.eq.s32.totalorder %s27, 0
      %p89 = por %p87, %p88
      %s91 = sadd.s32 %s90, 1
      %p94 = scmp.eq.s32.totalorder %s21, 1
      %p95 = scmp.ne.s32.totalorder %s90, %s92
      %p96 = scmp.eq.s32.totalorder %s21, 0
      %p97 = por %p95, %p96
      %p98 = scmp.ne.s32.totalorder %s90, %s92
      %p99 = scmp.eq.s32.totalorder %s26, 1
      %p100 = por %p98, %p99
      %p101 = scmp.ne.s32.totalorder %s92, %s93
      %p102 = scmp.eq.s32.totalorder %s26, 0
      %p103 = por %p101, %p102
      %p104 = scmp.ne.s32.totalorder %s92, %s93
      %p105 = scmp.eq.s32.totalorder %s27, 1
      %p106 = por %p104, %p105
      %p108 = scmp.ne.s32.totalorder %s93, %s107
      %p109 = scmp.eq.s32.totalorder %s27, 0
      %p110 = por %p108, %p109
      %s112 = sadd.s32 %s111, 1
      %p115 = scmp.eq.s32.totalorder %s21, 1
      %p116 = scmp.ne.s32.totalorder %s111, %s113
      %p117 = scmp.eq.s32.totalorder %s21, 0
      %p118 = por %p116, %p117
      %p119 = scmp.ne.s32.totalorder %s111, %s113
      %p120 = scmp.eq.s32.totalorder %s26, 1
      %p121 = por %p119, %p120
      %p122 = scmp.ne.s32.totalorder %s113, %s114
      %p123 = scmp.eq.s32.totalorder %s26, 0
      %p124 = por %p122, %p123
      %p125 = scmp.ne.s32.totalorder %s113, %s114
      %p126 = scmp.eq.s32.totalorder %s27, 1
      %p127 = por %p125, %p126
      %p129 = scmp.ne.s32.totalorder %s114, %s128
      %p130 = scmp.eq.s32.totalorder %s27, 0
      %p131 = por %p129, %p130
      %s133 = sadd.s32 %s132, 1
      %p136 = scmp.eq.s32.totalorder %s21, 1
      %p137 = scmp.ne.s32.totalorder %s132, %s134
      %p138 = scmp.eq.s32.totalorder %s21, 0
      %p139 = por %p137, %p138
      %p140 = scmp.ne.s32.totalorder %s132, %s134
      %p141 = scmp.eq.s32.totalorder %s26, 1
      %p142 = por %p140, %p141
      %p143 = scmp.ne.s32.totalorder %s134, %s135
      %p144 = scmp.eq.s32.totalorder %s26, 0
      %p145 = por %p143, %p144
      %p146 = scmp.ne.s32.totalorder %s134, %s135
      %p147 = scmp.eq.s32.totalorder %s27, 1
      %p148 = por %p146, %p147
      %p150 = scmp.ne.s32.totalorder %s135, %s149
      %p151 = scmp.eq.s32.totalorder %s27, 0
      %p152 = por %p150, %p151
      %s154 = sadd.s32 %s153, 1
      %p157 = scmp.eq.s32.totalorder %s21, 1
      %p158 = scmp.ne.s32.totalorder %s153, %s155
      %p159 = scmp.eq.s32.totalorder %s21, 0
      %p160 = por %p158, %p159
      %p161 = scmp.ne.s32.totalorder %s153, %s155
      %p162 = scmp.eq.s32.totalorder %s26, 1
      %p163 = por %p161, %p162
      %p164 = scmp.ne.s32.totalorder %s155, %s156
      %p165 = scmp.eq.s32.totalorder %s26, 0
      %p166 = por %p164, %p165
      %p167 = scmp.ne.s32.totalorder %s155, %s156
      %p168 = scmp.eq.s32.totalorder %s27, 1
      %p169 = por %p167, %p168
      %p171 = scmp.ne.s32.totalorder %s156, %s170
      %p172 = scmp.eq.s32.totalorder %s27, 0
      %p173 = por %p171, %p172
      %s175 = sadd.s32 %s174, 1
      %p178 = scmp.eq.s32.totalorder %s21, 1
      %p179 = scmp.ne.s32.totalorder %s174, %s176
      %p180 = scmp.eq.s32.totalorder %s21, 0
      %p181 = por %p179, %p180
      %p182 = scmp.ne.s32.totalorder %s174, %s176
      %p183 = scmp.eq.s32.totalorder %s26, 1
      %p184 = por %p182, %p183
      %p185 = scmp.ne.s32.totalorder %s176, %s177
      %p186 = scmp.eq.s32.totalorder %s26, 0
      %p187 = por %p185, %p186
      %p188 = scmp.ne.s32.totalorder %s176, %s177
      %p189 = scmp.eq.s32.totalorder %s27, 1
      %p190 = por %p188, %p189
      %p192 = scmp.ne.s32.totalorder %s177, %s191
      %p193 = scmp.eq.s32.totalorder %s27, 0
      %p194 = por %p192, %p193
      %s196 = sadd.s32 %s195, 1
      %p199 = scmp.eq.s32.totalorder %s21, 1
      %p200 = scmp.ne.s32.totalorder %s195, %s197
      %p201 = scmp.eq.s32.totalorder %s21, 0
      %p202 = por %p200, %p201
      %p203 = scmp.ne.s32.totalorder %s195, %s197
      %p204 = scmp.eq.s32.totalorder %s26, 1
      %p205 = por %p203, %p204
      %p206 = scmp.ne.s32.totalorder %s197, %s198
      %p207 = scmp.eq.s32.totalorder %s26, 0
      %p208 = por %p206, %p207
      %p209 = scmp.ne.s32.totalorder %s197, %s198
      %p210 = scmp.eq.s32.totalorder %s27, 1
      %p211 = por %p209, %p210
      %p213 = scmp.ne.s32.totalorder %s198, %s212
      %p214 = scmp.eq.s32.totalorder %s27, 0
      %p215 = por %p213, %p214
      %s217 = sadd.s32 %s216, 1
      %p220 = scmp.eq.s32.totalorder %s21, 1
      %p221 = scmp.ne.s32.totalorder %s216, %s218
      %p222 = scmp.eq.s32.totalorder %s21, 0
      %p223 = por %p221, %p222
      %p224 = scmp.ne.s32.totalorder %s216, %s218
      %p225 = scmp.eq.s32.totalorder %s26, 1
      %p226 = por %p224, %p225
      %p227 = scmp.ne.s32.totalorder %s218, %s219
      %p228 = scmp.eq.s32.totalorder %s26, 0
      %p229 = por %p227, %p228
      %p230 = scmp.ne.s32.totalorder %s218, %s219
      %p231 = scmp.eq.s32.totalorder %s27, 1
      %p232 = por %p230, %p231
      %p234 = scmp.ne.s32.totalorder %s219, %s233
      %p235 = scmp.eq.s32.totalorder %s27, 0
      %p236 = por %p234, %p235
      %s238 = sadd.s32 %s237, 1
      %p241 = scmp.eq.s32.totalorder %s21, 1
      %p242 = scmp.ne.s32.totalorder %s237, %s239
      %p243 = scmp.eq.s32.totalorder %s21, 0
      %p244 = por %p242, %p243
      %p245 = scmp.ne.s32.totalorder %s237, %s239
      %p246 = scmp.eq.s32.totalorder %s26, 1
      %p247 = por %p245, %p246
      %p248 = scmp.ne.s32.totalorder %s239, %s240
      %p249 = scmp.eq.s32.totalorder %s26, 0
      %p250 = por %p248, %p249
      %p251 = scmp.ne.s32.totalorder %s239, %s240
      %p252 = scmp.eq.s32.totalorder %s27, 1
      %p253 = por %p251, %p252
      %p255 = scmp.ne.s32.totalorder %s240, %s254
      %p256 = scmp.eq.s32.totalorder %s27, 0
      %p257 = por %p255, %p256
      %s259 = sadd.s32 %s258, 1
      %p262 = scmp.eq.s32.totalorder %s21, 1
      %p263 = scmp.ne.s32.totalorder %s258, %s260
      %p264 = scmp.eq.s32.totalorder %s21, 0
      %p265 = por %p263, %p264
      %p266 = scmp.ne.s32.totalorder %s258, %s260
      %p267 = scmp.eq.s32.totalorder %s26, 1
      %p268 = por %p266, %p267
      %p269 = scmp.ne.s32.totalorder %s260, %s261
      %p270 = scmp.eq.s32.totalorder %s26, 0
      %p271 = por %p269, %p270
      %p272 = scmp.ne.s32.totalorder %s260, %s261
      %p273 = scmp.eq.s32.totalorder %s27, 1
      %p274 = por %p272, %p273
      %p276 = scmp.ne.s32.totalorder %s261, %s275
      %p277 = scmp.eq.s32.totalorder %s27, 0
      %p278 = por %p276, %p277
      %s279 = ssub.s32 %s28, %s40
      %p280 = scmp.eq.s32.totalorder %s279, 0
      %s282 = sadd.s32 %s281, 1
      %s283 = scalar_select %p280, %s281, %s282
      %p286 = pneg %p280
      %p287 = scmp.eq.s32.totalorder %s21, 1
      %p288 = por %p286, %p287
      %p289 = scmp.ne.s32.totalorder %s281, %s284
      %p290 = scmp.eq.s32.totalorder %s21, 0
      %p291 = por %p289, %p290
      %p292 = scmp.ne.s32.totalorder %s281, %s284
      %p293 = scmp.eq.s32.totalorder %s26, 1
      %p294 = por %p292, %p293
      %p295 = scmp.ne.s32.totalorder %s284, %s285
      %p296 = scmp.eq.s32.totalorder %s26, 0
      %p297 = por %p295, %p296
      %p298 = scmp.ne.s32.totalorder %s284, %s285
      %p299 = scmp.eq.s32.totalorder %s27, 1
      %p300 = por %p298, %p299
      %p302 = scmp.ne.s32.totalorder %s285, %s301
      %p303 = scmp.eq.s32.totalorder %s27, 0
      %p304 = por %p302, %p303
      %p305 = scmp.le.s32.totalorder 1, %s21
      %p306 = scmp.lt.s32.totalorder %s21, 3
      %p307 = pnand %p305, %p306
      %p308 = pneg %p307
      // Predicated region
      $region9: #{tpu_custom_call.1} parent=5 // pred_check
        _
      $region10: #{tpu_custom_call.1} parent=5 // pred_check_branch
        %310 = sbr.rel (%p307) target = $region12
      $region11: #{tpu_custom_call.1} parent=5 // pred_region
        %s311 = ssub.s32 %s21, 1
        // Predicated region
        $region13: #{tpu_custom_call.1} parent=11 // pred_check
          %p312 = pneg %p82
        $region14: #{tpu_custom_call.1} parent=11 // pred_check_branch
          %314 = sbr.rel (%p312) target = $region16
        $region15: #{tpu_custom_call.1} parent=11 // pred_region
          _
        $region16: #{tpu_custom_call.1} parent=11 // pred_fallthru
          _
        // Predicated region
        $region17: #{tpu_custom_call.1} parent=11 // pred_check
          %p315 = pneg %p103
        $region18: #{tpu_custom_call.1} parent=11 // pred_check_branch
          %317 = sbr.rel (%p315) target = $region20
        $region19: #{tpu_custom_call.1} parent=11 // pred_region
          _
        $region20: #{tpu_custom_call.1} parent=11 // pred_fallthru
          _
        // Predicated region
        $region21: #{tpu_custom_call.1} parent=11 // pred_check
          %p318 = pneg %p124
        $region22: #{tpu_custom_call.1} parent=11 // pred_check_branch
          %320 = sbr.rel (%p318) target = $region24
        $region23: #{tpu_custom_call.1} parent=11 // pred_region
          _
        $region24: #{tpu_custom_call.1} parent=11 // pred_fallthru
          _
        // Predicated region
        $region25: #{tpu_custom_call.1} parent=11 // pred_check
          %p321 = pneg %p145
        $region26: #{tpu_custom_call.1} parent=11 // pred_check_branch
          %323 = sbr.rel (%p321) target = $region28
        $region27: #{tpu_custom_call.1} parent=11 // pred_region
          _
        $region28: #{tpu_custom_call.1} parent=11 // pred_fallthru
          _
        // Predicated region
        $region29: #{tpu_custom_call.1} parent=11 // pred_check
          %p324 = pneg %p166
        $region30: #{tpu_custom_call.1} parent=11 // pred_check_branch
          %326 = sbr.rel (%p324) target = $region32
        $region31: #{tpu_custom_call.1} parent=11 // pred_region
          _
        $region32: #{tpu_custom_call.1} parent=11 // pred_fallthru
          _
        // Predicated region
        $region33: #{tpu_custom_call.1} parent=11 // pred_check
          %p327 = pneg %p187
        $region34: #{tpu_custom_call.1} parent=11 // pred_check_branch
          %329 = sbr.rel (%p327) target = $region36
        $region35: #{tpu_custom_call.1} parent=11 // pred_region
          _
        $region36: #{tpu_custom_call.1} parent=11 // pred_fallthru
          _
        // Predicated region
        $region37: #{tpu_custom_call.1} parent=11 // pred_check
          %p330 = pneg %p208
        $region38: #{tpu_custom_call.1} parent=11 // pred_check_branch
          %332 = sbr.rel (%p330) target = $region40
        $region39: #{tpu_custom_call.1} parent=11 // pred_region
          %s334 = ssub.s32 32768, 32768
          %335 = vsyncadd [#allocation4], %s334
          %s336 = sshll.u32 [#allocation3], 4
          %s337 = int_to_ptr.vmem [resolvable:$true] %s336
          %342 = dma.hbm_to_vmem [thread:$0]  %s7, 32768, %s337, [#allocation4], 256, 256, 16
        $region40: #{tpu_custom_call.1} parent=11 // pred_fallthru
          _
        // Predicated region
        $region41: #{tpu_custom_call.1} parent=11 // pred_check
          %p343 = pneg %p229
        $region42: #{tpu_custom_call.1} parent=11 // pred_check_branch
          %345 = sbr.rel (%p343) target = $region44
        $region43: #{tpu_custom_call.1} parent=11 // pred_region
          _
        $region44: #{tpu_custom_call.1} parent=11 // pred_fallthru
          _
        // Predicated region
        $region45: #{tpu_custom_call.1} parent=11 // pred_check
          %p346 = pneg %p250
        $region46: #{tpu_custom_call.1} parent=11 // pred_check_branch
          %348 = sbr.rel (%p346) target = $region48
        $region47: #{tpu_custom_call.1} parent=11 // pred_region
          _
        $region48: #{tpu_custom_call.1} parent=11 // pred_fallthru
          _
        // Predicated region
        $region49: #{tpu_custom_call.1} parent=11 // pred_check
          %p349 = pneg %p271
        $region50: #{tpu_custom_call.1} parent=11 // pred_check_branch
          %351 = sbr.rel (%p349) target = $region52
        $region51: #{tpu_custom_call.1} parent=11 // pred_region
          _
        $region52: #{tpu_custom_call.1} parent=11 // pred_fallthru
          _
      $region12: #{tpu_custom_call.1} parent=5 // pred_fallthru
        _
      %p352 = scmp.lt.s32.totalorder %s21, 2
      // Predicated region
      $region53: #{tpu_custom_call.1} parent=5 // pred_check
        %p353 = pneg %p352
      $region54: #{tpu_custom_call.1} parent=5 // pred_check_branch
        %355 = sbr.rel (%p353) target = $region56
      $region55: #{tpu_custom_call.1} parent=5 // pred_region
        // Predicated region
        $region57: #{tpu_custom_call.1} parent=55 // pred_check
          %p356 = pneg %p55
        $region58: #{tpu_custom_call.1} parent=55 // pred_check_branch
          %358 = sbr.rel (%p356) target = $region60
        $region59: #{tpu_custom_call.1} parent=55 // pred_region
          %s359 = smul.u32 32, %s29
          %p360 = scmp.lt.s32.totalorder %s28, 1
          %s361 = scalar_select %p360, %s28, 1
          %p362 = scmp.lt.s32.totalorder %s359, 31
          %s363 = scalar_select %p362, %s359, 31
          %s364 = smul.addr %s361, 32
          %s365 = sadd.s32 %s363, %s364
          %s366 = smul.addr %s365, 8
          %s367 = scalar_lea.vmem %s0, %s366
          %s368 = smul.u32 32, %s29
        $region60: #{tpu_custom_call.1} parent=55 // pred_fallthru
          _
      $region56: #{tpu_custom_call.1} parent=5 // pred_fallthru
        _
      %p369 = scmp.le.s32.totalorder 1, %s21
      %p370 = scmp.lt.s32.totalorder %s21, 3
      %p371 = pnand %p369, %p370
      %p372 = pneg %p371
      // Predicated region
      $region61: #{tpu_custom_call.1} parent=5 // pred_check
        _
      $region62: #{tpu_custom_call.1} parent=5 // pred_check_branch
        %374 = sbr.rel (%p371) target = $region64
      $region63: #{tpu_custom_call.1} parent=5 // pred_region
        %s375 = ssub.s32 %s21, 1
        // Predicated region
        $region65: #{tpu_custom_call.1} parent=63 // pred_check
          %p376 = pneg %p208
        $region66: #{tpu_custom_call.1} parent=63 // pred_check_branch
          %378 = sbr.rel (%p376) target = $region68
        $region67: #{tpu_custom_call.1} parent=63 // pred_region
          %379 = dma.done [#allocation4], 32768
        $region68: #{tpu_custom_call.1} parent=63 // pred_fallthru
          _
        %s380 = smul.u32 32, %s31
        %p381 = scmp.lt.s32.totalorder %s30, 1
        %s382 = scalar_select %p381, %s30, 1
        %p383 = scmp.lt.s32.totalorder %s380, 31
        %s384 = scalar_select %p383, %s380, 31
        %s385 = smul.addr %s382, 32
        %s386 = sadd.s32 %s384, %s385
        %s387 = smul.addr %s386, 8
        %s388 = scalar_lea.vmem %s0, %s387
        %p389 = pneg %p61
        %p390 = pneg %p58
        %p391 = pneg %p82
        %p392 = pneg %p79
        %p393 = pneg %p103
        %p394 = pneg %p100
        %p395 = pneg %p124
        %p396 = pneg %p121
        %p397 = pneg %p145
        %p398 = pneg %p142
        %p399 = pneg %p166
        %p400 = pneg %p163
        %p401 = pneg %p187
        %p402 = pneg %p184
        %p403 = pneg %p208
        %p404 = pneg %p205
        %p405 = pneg %p229
        %p406 = pneg %p226
        %p407 = pneg %p250
        %p408 = pneg %p247
        %p409 = pneg %p271
        %p410 = pneg %p268
        %p411 = pneg %p297
        %p412 = pneg %p294
        %s413 = sand.u32 %s284, 1
        %s414 = scalar_lea.sflag [#allocation5], %s413
        %s415 = sand.u32 %s284, 1
        %s416 = scalar_lea.vmem [#allocation6], %s415
        %s417 = smul.u32 32, %s31
        %p418 = scmp.lt.s32.totalorder %s30, 1
        %s419 = scalar_select %p418, %s30, 1
        %p420 = scmp.lt.s32.totalorder %s417, 31
        %s421 = scalar_select %p420, %s417, 31
        %s422 = smul.addr %s419, 32
        %s423 = sadd.s32 %s421, %s422
        %s424 = smul.addr %s423, 8
        %s425 = scalar_lea.vmem %s0, %s424
        %s426 = smul.u32 32, %s31
        %p428 = scmp.eq.s32.totalorder %s31, 0
        // Predicated region
        $region69: #{tpu_custom_call.1} parent=63 // pred_check
          %p429 = pneg %p428
        $region70: #{tpu_custom_call.1} parent=63 // pred_check_branch
          %431 = sbr.rel (%p429) target = $region72
        $region71: #{tpu_custom_call.1} parent=63 // pred_region
          %432 = vst [vmem:[#allocation2] sm:$0xff] -inf
        $region72: #{tpu_custom_call.1} parent=63 // pred_fallthru
          _
        %v433 = vld [vmem:[%s425] sm:$0xff]
        %v434 = vld [vmem:[%s425 + $0x8] sm:$0xff]
        %v435 = vld [vmem:[%s425 + $0x10] sm:$0xff]
        %v436 = vld [vmem:[%s425 + $0x18] sm:$0xff]
        %v437 = vld [vmem:[%s425 + $0x20] sm:$0xff]
        %v438 = vld [vmem:[%s425 + $0x28] sm:$0xff]
        %v439 = vld [vmem:[%s425 + $0x30] sm:$0xff]
        %v440 = vld [vmem:[%s425 + $0x38] sm:$0xff]
        %v441 = vld [vmem:[%s425 + $0x40] sm:$0xff]
        %v442 = vld [vmem:[%s425 + $0x48] sm:$0xff]
        %v443 = vld [vmem:[%s425 + $0x50] sm:$0xff]
        %v444 = vld [vmem:[%s425 + $0x58] sm:$0xff]
        %v445 = vld [vmem:[%s425 + $0x60] sm:$0xff]
        %v446 = vld [vmem:[%s425 + $0x68] sm:$0xff]
        %v447 = vld [vmem:[%s425 + $0x70] sm:$0xff]
        %v448 = vld [vmem:[%s425 + $0x78] sm:$0xff]
        %v449 = vld [vmem:[%s425 + $0x80] sm:$0xff]
        %v450 = vld [vmem:[%s425 + $0x88] sm:$0xff]
        %v451 = vld [vmem:[%s425 + $0x90] sm:$0xff]
        %v452 = vld [vmem:[%s425 + $0x98] sm:$0xff]
        %v453 = vld [vmem:[%s425 + $0xa0] sm:$0xff]
        %v454 = vld [vmem:[%s425 + $0xa8] sm:$0xff]
        %v455 = vld [vmem:[%s425 + $0xb0] sm:$0xff]
        %v456 = vld [vmem:[%s425 + $0xb8] sm:$0xff]
        %v457 = vld [vmem:[%s425 + $0xc0] sm:$0xff]
        %v458 = vld [vmem:[%s425 + $0xc8] sm:$0xff]
        %v459 = vld [vmem:[%s425 + $0xd0] sm:$0xff]
        %v460 = vld [vmem:[%s425 + $0xd8] sm:$0xff]
        %v461 = vld [vmem:[%s425 + $0xe0] sm:$0xff]
        %v462 = vld [vmem:[%s425 + $0xe8] sm:$0xff]
        %v463 = vld [vmem:[%s425 + $0xf0] sm:$0xff]
        %v464 = vld [vmem:[%s425 + $0xf8] sm:$0xff]
        %v465 = vld [vmem:[%s1] sm:$0x7]
        %467 = vset.pattern.permute.xlu0 0
        %468 = vperm.xlu0 %467, %v433
        %v469 = vpop.permute.xlu0 %468
        %472 = vset.pattern.permute.xlu0 0
        %473 = vperm.xlu0 %472, %v434
        %v474 = vpop.permute.xlu0 %473
        %477 = vset.pattern.permute.xlu0 0
        %478 = vperm.xlu0 %477, %v435
        %v479 = vpop.permute.xlu0 %478
        %482 = vset.pattern.permute.xlu0 0
        %483 = vperm.xlu0 %482, %v436
        %v484 = vpop.permute.xlu0 %483
        %487 = vset.pattern.permute.xlu0 0
        %488 = vperm.xlu0 %487, %v437
        %v489 = vpop.permute.xlu0 %488
        %492 = vset.pattern.permute.xlu0 0
        %493 = vperm.xlu0 %492, %v438
        %v494 = vpop.permute.xlu0 %493
        %497 = vset.pattern.permute.xlu0 0
        %498 = vperm.xlu0 %497, %v439
        %v499 = vpop.permute.xlu0 %498
        %502 = vset.pattern.permute.xlu0 0
        %503 = vperm.xlu0 %502, %v440
        %v504 = vpop.permute.xlu0 %503
        %507 = vset.pattern.permute.xlu0 0
        %508 = vperm.xlu0 %507, %v441
        %v509 = vpop.permute.xlu0 %508
        %512 = vset.pattern.permute.xlu0 0
        %513 = vperm.xlu0 %512, %v442
        %v514 = vpop.permute.xlu0 %513
        %517 = vset.pattern.permute.xlu0 0
        %518 = vperm.xlu0 %517, %v443
        %v519 = vpop.permute.xlu0 %518
        %522 = vset.pattern.permute.xlu0 0
        %523 = vperm.xlu0 %522, %v444
        %v524 = vpop.permute.xlu0 %523
        %527 = vset.pattern.permute.xlu0 0
        %528 = vperm.xlu0 %527, %v445
        %v529 = vpop.permute.xlu0 %528
        %532 = vset.pattern.permute.xlu0 0
        %533 = vperm.xlu0 %532, %v446
        %v534 = vpop.permute.xlu0 %533
        %537 = vset.pattern.permute.xlu0 0
        %538 = vperm.xlu0 %537, %v447
        %v539 = vpop.permute.xlu0 %538
        %542 = vset.pattern.permute.xlu0 0
        %543 = vperm.xlu0 %542, %v448
        %v544 = vpop.permute.xlu0 %543
        %547 = vset.pattern.permute.xlu0 0
        %548 = vperm.xlu0 %547, %v449
        %v549 = vpop.permute.xlu0 %548
        %552 = vset.pattern.permute.xlu0 0
        %553 = vperm.xlu0 %552, %v450
        %v554 = vpop.permute.xlu0 %553
        %557 = vset.pattern.permute.xlu0 0
        %558 = vperm.xlu0 %557, %v451
        %v559 = vpop.permute.xlu0 %558
        %562 = vset.pattern.permute.xlu0 0
        %563 = vperm.xlu0 %562, %v452
        %v564 = vpop.permute.xlu0 %563
        %567 = vset.pattern.permute.xlu0 0
        %568 = vperm.xlu0 %567, %v453
        %v569 = vpop.permute.xlu0 %568
        %572 = vset.pattern.permute.xlu0 0
        %573 = vperm.xlu0 %572, %v454
        %v574 = vpop.permute.xlu0 %573
        %577 = vset.pattern.permute.xlu0 0
        %578 = vperm.xlu0 %577, %v455
        %v579 = vpop.permute.xlu0 %578
        %582 = vset.pattern.permute.xlu0 0
        %583 = vperm.xlu0 %582, %v456
        %v584 = vpop.permute.xlu0 %583
        %587 = vset.pattern.permute.xlu0 0
        %588 = vperm.xlu0 %587, %v457
        %v589 = vpop.permute.xlu0 %588
        %592 = vset.pattern.permute.xlu0 0
        %593 = vperm.xlu0 %592, %v458
        %v594 = vpop.permute.xlu0 %593
        %597 = vset.pattern.permute.xlu0 0
        %598 = vperm.xlu0 %597, %v459
        %v599 = vpop.permute.xlu0 %598
        %602 = vset.pattern.permute.xlu0 0
        %603 = vperm.xlu0 %602, %v460
        %v604 = vpop.permute.xlu0 %603
        %607 = vset.pattern.permute.xlu0 0
        %608 = vperm.xlu0 %607, %v461
        %v609 = vpop.permute.xlu0 %608
        %612 = vset.pattern.permute.xlu0 0
        %613 = vperm.xlu0 %612, %v462
        %v614 = vpop.permute.xlu0 %613
        %617 = vset.pattern.permute.xlu0 0
        %618 = vperm.xlu0 %617, %v463
        %v619 = vpop.permute.xlu0 %618
        %622 = vset.pattern.permute.xlu0 0
        %623 = vperm.xlu0 %622, %v464
        %v624 = vpop.permute.xlu0 %623
        %v626 = vlaneseq
        %v627 = vshrl.u32 %v626, 7
        %v628 = vsub.s32 0, %v627
        %v629 = vrot.slane %v465, %v628
        %v630 = vmul.f32 %v469, %v629
        %v631 = vmul.f32 %v474, %v629
        %v632 = vmul.f32 %v479, %v629
        %v633 = vmul.f32 %v484, %v629
        %v634 = vmul.f32 %v489, %v629
        %v635 = vmul.f32 %v494, %v629
        %v636 = vmul.f32 %v499, %v629
        %v637 = vmul.f32 %v504, %v629
        %v638 = vmul.f32 %v509, %v629
        %v639 = vmul.f32 %v514, %v629
        %v640 = vmul.f32 %v519, %v629
        %v641 = vmul.f32 %v524, %v629
        %v642 = vmul.f32 %v529, %v629
        %v643 = vmul.f32 %v534, %v629
        %v644 = vmul.f32 %v539, %v629
        %v645 = vmul.f32 %v544, %v629
        %v646 = vmul.f32 %v549, %v629
        %v647 = vmul.f32 %v554, %v629
        %v648 = vmul.f32 %v559, %v629
        %v649 = vmul.f32 %v564, %v629
        %v650 = vmul.f32 %v569, %v629
        %v651 = vmul.f32 %v574, %v629
        %v652 = vmul.f32 %v579, %v629
        %v653 = vmul.f32 %v584, %v629
        %v654 = vmul.f32 %v589, %v629
        %v655 = vmul.f32 %v594, %v629
        %v656 = vmul.f32 %v599, %v629
        %v657 = vmul.f32 %v604, %v629
        %v658 = vmul.f32 %v609, %v629
        %v659 = vmul.f32 %v614, %v629
        %v660 = vmul.f32 %v619, %v629
        %v661 = vmul.f32 %v624, %v629
        %662 = vset.pattern.permute.xlu0 1
        %663 = vperm.xlu0 %662, %v433
        %v664 = vpop.permute.xlu0 %663
        %666 = vset.pattern.permute.xlu0 1
        %667 = vperm.xlu0 %666, %v434
        %v668 = vpop.permute.xlu0 %667
        %670 = vset.pattern.permute.xlu0 1
        %671 = vperm.xlu0 %670, %v435
        %v672 = vpop.permute.xlu0 %671
        %674 = vset.pattern.permute.xlu0 1
        %675 = vperm.xlu0 %674, %v436
        %v676 = vpop.permute.xlu0 %675
        %678 = vset.pattern.permute.xlu0 1
        %679 = vperm.xlu0 %678, %v437
        %v680 = vpop.permute.xlu0 %679
        %682 = vset.pattern.permute.xlu0 1
        %683 = vperm.xlu0 %682, %v438
        %v684 = vpop.permute.xlu0 %683
        %686 = vset.pattern.permute.xlu0 1
        %687 = vperm.xlu0 %686, %v439
        %v688 = vpop.permute.xlu0 %687
        %690 = vset.pattern.permute.xlu0 1
        %691 = vperm.xlu0 %690, %v440
        %v692 = vpop.permute.xlu0 %691
        %694 = vset.pattern.permute.xlu0 1
        %695 = vperm.xlu0 %694, %v441
        %v696 = vpop.permute.xlu0 %695
        %698 = vset.pattern.permute.xlu0 1
        %699 = vperm.xlu0 %698, %v442
        %v700 = vpop.permute.xlu0 %699
        %702 = vset.pattern.permute.xlu0 1
        %703 = vperm.xlu0 %702, %v443
        %v704 = vpop.permute.xlu0 %703
        %706 = vset.pattern.permute.xlu0 1
        %707 = vperm.xlu0 %706, %v444
        %v708 = vpop.permute.xlu0 %707
        %710 = vset.pattern.permute.xlu0 1
        %711 = vperm.xlu0 %710, %v445
        %v712 = vpop.permute.xlu0 %711
        %714 = vset.pattern.permute.xlu0 1
        %715 = vperm.xlu0 %714, %v446
        %v716 = vpop.permute.xlu0 %715
        %718 = vset.pattern.permute.xlu0 1
        %719 = vperm.xlu0 %718, %v447
        %v720 = vpop.permute.xlu0 %719
        %722 = vset.pattern.permute.xlu0 1
        %723 = vperm.xlu0 %722, %v448
        %v724 = vpop.permute.xlu0 %723
        %726 = vset.pattern.permute.xlu0 1
        %727 = vperm.xlu0 %726, %v449
        %v728 = vpop.permute.xlu0 %727
        %730 = vset.pattern.permute.xlu0 1
        %731 = vperm.xlu0 %730, %v450
        %v732 = vpop.permute.xlu0 %731
        %734 = vset.pattern.permute.xlu0 1
        %735 = vperm.xlu0 %734, %v451
        %v736 = vpop.permute.xlu0 %735
        %738 = vset.pattern.permute.xlu0 1
        %739 = vperm.xlu0 %738, %v452
        %v740 = vpop.permute.xlu0 %739
        %742 = vset.pattern.permute.xlu0 1
        %743 = vperm.xlu0 %742, %v453
        %v744 = vpop.permute.xlu0 %743
        %746 = vset.pattern.permute.xlu0 1
        %747 = vperm.xlu0 %746, %v454
        %v748 = vpop.permute.xlu0 %747
        %750 = vset.pattern.permute.xlu0 1
        %751 = vperm.xlu0 %750, %v455
        %v752 = vpop.permute.xlu0 %751
        %754 = vset.pattern.permute.xlu0 1
        %755 = vperm.xlu0 %754, %v456
        %v756 = vpop.permute.xlu0 %755
        %758 = vset.pattern.permute.xlu0 1
        %759 = vperm.xlu0 %758, %v457
        %v760 = vpop.permute.xlu0 %759
        %762 = vset.pattern.permute.xlu0 1
        %763 = vperm.xlu0 %762, %v458
        %v764 = vpop.permute.xlu0 %763
        %766 = vset.pattern.permute.xlu0 1
        %767 = vperm.xlu0 %766, %v459
        %v768 = vpop.permute.xlu0 %767
        %770 = vset.pattern.permute.xlu0 1
        %771 = vperm.xlu0 %770, %v460
        %v772 = vpop.permute.xlu0 %771
        %774 = vset.pattern.permute.xlu0 1
        %775 = vperm.xlu0 %774, %v461
        %v776 = vpop.permute.xlu0 %775
        %778 = vset.pattern.permute.xlu0 1
        %779 = vperm.xlu0 %778, %v462
        %v780 = vpop.permute.xlu0 %779
        %782 = vset.pattern.permute.xlu0 1
        %783 = vperm.xlu0 %782, %v463
        %v784 = vpop.permute.xlu0 %783
        %786 = vset.pattern.permute.xlu0 1
        %787 = vperm.xlu0 %786, %v464
        %v788 = vpop.permute.xlu0 %787
        %v790 = vlaneseq
        %v791 = vshrl.u32 %v790, 7
        %v792 = vsub.s32 1, %v791
        %v793 = vrot.slane %v465, %v792
        %v794 = vmul.f32 %v664, %v793
        %v795 = vmul.f32 %v668, %v793
        %v796 = vmul.f32 %v672, %v793
        %v797 = vmul.f32 %v676, %v793
        %v798 = vmul.f32 %v680, %v793
        %v799 = vmul.f32 %v684, %v793
        %v800 = vmul.f32 %v688, %v793
        %v801 = vmul.f32 %v692, %v793
        %v802 = vmul.f32 %v696, %v793
        %v803 = vmul.f32 %v700, %v793
        %v804 = vmul.f32 %v704, %v793
        %v805 = vmul.f32 %v708, %v793
        %v806 = vmul.f32 %v712, %v793
        %v807 = vmul.f32 %v716, %v793
        %v808 = vmul.f32 %v720, %v793
        %v809 = vmul.f32 %v724, %v793
        %v810 = vmul.f32 %v728, %v793
        %v811 = vmul.f32 %v732, %v793
        %v812 = vmul.f32 %v736, %v793
        %v813 = vmul.f32 %v740, %v793
        %v814 = vmul.f32 %v744, %v793
        %v815 = vmul.f32 %v748, %v793
        %v816 = vmul.f32 %v752, %v793
        %v817 = vmul.f32 %v756, %v793
        %v818 = vmul.f32 %v760, %v793
        %v819 = vmul.f32 %v764, %v793
        %v820 = vmul.f32 %v768, %v793
        %v821 = vmul.f32 %v772, %v793
        %v822 = vmul.f32 %v776, %v793
        %v823 = vmul.f32 %v780, %v793
        %v824 = vmul.f32 %v784, %v793
        %v825 = vmul.f32 %v788, %v793
        %v826 = vadd.f32 %v630, %v794
        %v827 = vadd.f32 %v631, %v795
        %v828 = vadd.f32 %v632, %v796
        %v829 = vadd.f32 %v633, %v797
        %v830 = vadd.f32 %v634, %v798
        %v831 = vadd.f32 %v635, %v799
        %v832 = vadd.f32 %v636, %v800
        %v833 = vadd.f32 %v637, %v801
        %v834 = vadd.f32 %v638, %v802
        %v835 = vadd.f32 %v639, %v803
        %v836 = vadd.f32 %v640, %v804
        %v837 = vadd.f32 %v641, %v805
        %v838 = vadd.f32 %v642, %v806
        %v839 = vadd.f32 %v643, %v807
        %v840 = vadd.f32 %v644, %v808
        %v841 = vadd.f32 %v645, %v809
        %v842 = vadd.f32 %v646, %v810
        %v843 = vadd.f32 %v647, %v811
        %v844 = vadd.f32 %v648, %v812
        %v845 = vadd.f32 %v649, %v813
        %v846 = vadd.f32 %v650, %v814
        %v847 = vadd.f32 %v651, %v815
        %v848 = vadd.f32 %v652, %v816
        %v849 = vadd.f32 %v653, %v817
        %v850 = vadd.f32 %v654, %v818
        %v851 = vadd.f32 %v655, %v819
        %v852 = vadd.f32 %v656, %v820
        %v853 = vadd.f32 %v657, %v821
        %v854 = vadd.f32 %v658, %v822
        %v855 = vadd.f32 %v659, %v823
        %v856 = vadd.f32 %v660, %v824
        %v857 = vadd.f32 %v661, %v825
        %858 = vset.pattern.permute.xlu0 2
        %859 = vperm.xlu0 %858, %v433
        %v860 = vpop.permute.xlu0 %859
        %862 = vset.pattern.permute.xlu0 2
        %863 = vperm.xlu0 %862, %v434
        %v864 = vpop.permute.xlu0 %863
        %866 = vset.pattern.permute.xlu0 2
        %867 = vperm.xlu0 %866, %v435
        %v868 = vpop.permute.xlu0 %867
        %870 = vset.pattern.permute.xlu0 2
        %871 = vperm.xlu0 %870, %v436
        %v872 = vpop.permute.xlu0 %871
        %874 = vset.pattern.permute.xlu0 2
        %875 = vperm.xlu0 %874, %v437
        %v876 = vpop.permute.xlu0 %875
        %878 = vset.pattern.permute.xlu0 2
        %879 = vperm.xlu0 %878, %v438
        %v880 = vpop.permute.xlu0 %879
        %882 = vset.pattern.permute.xlu0 2
        %883 = vperm.xlu0 %882, %v439
        %v884 = vpop.permute.xlu0 %883
        %886 = vset.pattern.permute.xlu0 2
        %887 = vperm.xlu0 %886, %v440
        %v888 = vpop.permute.xlu0 %887
        %890 = vset.pattern.permute.xlu0 2
        %891 = vperm.xlu0 %890, %v441
        %v892 = vpop.permute.xlu0 %891
        %894 = vset.pattern.permute.xlu0 2
        %895 = vperm.xlu0 %894, %v442
        %v896 = vpop.permute.xlu0 %895
        %898 = vset.pattern.permute.xlu0 2
        %899 = vperm.xlu0 %898, %v443
        %v900 = vpop.permute.xlu0 %899
        %902 = vset.pattern.permute.xlu0 2
        %903 = vperm.xlu0 %902, %v444
        %v904 = vpop.permute.xlu0 %903
        %906 = vset.pattern.permute.xlu0 2
        %907 = vperm.xlu0 %906, %v445
        %v908 = vpop.permute.xlu0 %907
        %910 = vset.pattern.permute.xlu0 2
        %911 = vperm.xlu0 %910, %v446
        %v912 = vpop.permute.xlu0 %911
        %914 = vset.pattern.permute.xlu0 2
        %915 = vperm.xlu0 %914, %v447
        %v916 = vpop.permute.xlu0 %915
        %918 = vset.pattern.permute.xlu0 2
        %919 = vperm.xlu0 %918, %v448
        %v920 = vpop.permute.xlu0 %919
        %922 = vset.pattern.permute.xlu0 2
        %923 = vperm.xlu0 %922, %v449
        %v924 = vpop.permute.xlu0 %923
        %926 = vset.pattern.permute.xlu0 2
        %927 = vperm.xlu0 %926, %v450
        %v928 = vpop.permute.xlu0 %927
        %930 = vset.pattern.permute.xlu0 2
        %931 = vperm.xlu0 %930, %v451
        %v932 = vpop.permute.xlu0 %931
        %934 = vset.pattern.permute.xlu0 2
        %935 = vperm.xlu0 %934, %v452
        %v936 = vpop.permute.xlu0 %935
        %938 = vset.pattern.permute.xlu0 2
        %939 = vperm.xlu0 %938, %v453
        %v940 = vpop.permute.xlu0 %939
        %942 = vset.pattern.permute.xlu0 2
        %943 = vperm.xlu0 %942, %v454
        %v944 = vpop.permute.xlu0 %943
        %946 = vset.pattern.permute.xlu0 2
        %947 = vperm.xlu0 %946, %v455
        %v948 = vpop.permute.xlu0 %947
        %950 = vset.pattern.permute.xlu0 2
        %951 = vperm.xlu0 %950, %v456
        %v952 = vpop.permute.xlu0 %951
        %954 = vset.pattern.permute.xlu0 2
        %955 = vperm.xlu0 %954, %v457
        %v956 = vpop.permute.xlu0 %955
        %958 = vset.pattern.permute.xlu0 2
        %959 = vperm.xlu0 %958, %v458
        %v960 = vpop.permute.xlu0 %959
        %962 = vset.pattern.permute.xlu0 2
        %963 = vperm.xlu0 %962, %v459
        %v964 = vpop.permute.xlu0 %963
        %966 = vset.pattern.permute.xlu0 2
        %967 = vperm.xlu0 %966, %v460
        %v968 = vpop.permute.xlu0 %967
        %970 = vset.pattern.permute.xlu0 2
        %971 = vperm.xlu0 %970, %v461
        %v972 = vpop.permute.xlu0 %971
        %974 = vset.pattern.permute.xlu0 2
        %975 = vperm.xlu0 %974, %v462
        %v976 = vpop.permute.xlu0 %975
        %978 = vset.pattern.permute.xlu0 2
        %979 = vperm.xlu0 %978, %v463
        %v980 = vpop.permute.xlu0 %979
        %982 = vset.pattern.permute.xlu0 2
        %983 = vperm.xlu0 %982, %v464
        %v984 = vpop.permute.xlu0 %983
        %v986 = vlaneseq
        %v987 = vshrl.u32 %v986, 7
        %v988 = vsub.s32 2, %v987
        %v989 = vrot.slane %v465, %v988
        %v990 = vmul.f32 %v860, %v989
        %v991 = vmul.f32 %v864, %v989
        %v992 = vmul.f32 %v868, %v989
        %v993 = vmul.f32 %v872, %v989
        %v994 = vmul.f32 %v876, %v989
        %v995 = vmul.f32 %v880, %v989
        %v996 = vmul.f32 %v884, %v989
        %v997 = vmul.f32 %v888, %v989
        %v998 = vmul.f32 %v892, %v989
        %v999 = vmul.f32 %v896, %v989
        %v1000 = vmul.f32 %v900, %v989
        %v1001 = vmul.f32 %v904, %v989
        %v1002 = vmul.f32 %v908, %v989
        %v1003 = vmul.f32 %v912, %v989
        %v1004 = vmul.f32 %v916, %v989
        %v1005 = vmul.f32 %v920, %v989
        %v1006 = vmul.f32 %v924, %v989
        %v1007 = vmul.f32 %v928, %v989
        %v1008 = vmul.f32 %v932, %v989
        %v1009 = vmul.f32 %v936, %v989
        %v1010 = vmul.f32 %v940, %v989
        %v1011 = vmul.f32 %v944, %v989
        %v1012 = vmul.f32 %v948, %v989
        %v1013 = vmul.f32 %v952, %v989
        %v1014 = vmul.f32 %v956, %v989
        %v1015 = vmul.f32 %v960, %v989
        %v1016 = vmul.f32 %v964, %v989
        %v1017 = vmul.f32 %v968, %v989
        %v1018 = vmul.f32 %v972, %v989
        %v1019 = vmul.f32 %v976, %v989
        %v1020 = vmul.f32 %v980, %v989
        %v1021 = vmul.f32 %v984, %v989
        %v1022 = vadd.f32 %v826, %v990
        %v1023 = vadd.f32 %v827, %v991
        %v1024 = vadd.f32 %v828, %v992
        %v1025 = vadd.f32 %v829, %v993
        %v1026 = vadd.f32 %v830, %v994
        %v1027 = vadd.f32 %v831, %v995
        %v1028 = vadd.f32 %v832, %v996
        %v1029 = vadd.f32 %v833, %v997
        %v1030 = vadd.f32 %v834, %v998
        %v1031 = vadd.f32 %v835, %v999
        %v1032 = vadd.f32 %v836, %v1000
        %v1033 = vadd.f32 %v837, %v1001
        %v1034 = vadd.f32 %v838, %v1002
        %v1035 = vadd.f32 %v839, %v1003
        %v1036 = vadd.f32 %v840, %v1004
        %v1037 = vadd.f32 %v841, %v1005
        %v1038 = vadd.f32 %v842, %v1006
        %v1039 = vadd.f32 %v843, %v1007
        %v1040 = vadd.f32 %v844, %v1008
        %v1041 = vadd.f32 %v845, %v1009
        %v1042 = vadd.f32 %v846, %v1010
        %v1043 = vadd.f32 %v847, %v1011
        %v1044 = vadd.f32 %v848, %v1012
        %v1045 = vadd.f32 %v849, %v1013
        %v1046 = vadd.f32 %v850, %v1014
        %v1047 = vadd.f32 %v851, %v1015
        %v1048 = vadd.f32 %v852, %v1016
        %v1049 = vadd.f32 %v853, %v1017
        %v1050 = vadd.f32 %v854, %v1018
        %v1051 = vadd.f32 %v855, %v1019
        %v1052 = vadd.f32 %v856, %v1020
        %v1053 = vadd.f32 %v857, %v1021
        %v1054 = vld [vmem:[%s2] sm:$0x1]
        %v1056 = vlaneseq
        %v1057 = vshrl.u32 %v1056, 7
        %v1058 = vsub.s32 0, %v1057
        %v1059 = vrot.slane %v1054, %v1058
        %v1061 = vadd.f32 %v1022, %v1059
        %v1062 = vadd.f32 %v1023, %v1059
        %v1063 = vadd.f32 %v1024, %v1059
        %v1064 = vadd.f32 %v1025, %v1059
        %v1065 = vadd.f32 %v1026, %v1059
        %v1066 = vadd.f32 %v1027, %v1059
        %v1067 = vadd.f32 %v1028, %v1059
        %v1068 = vadd.f32 %v1029, %v1059
        %v1069 = vadd.f32 %v1030, %v1059
        %v1070 = vadd.f32 %v1031, %v1059
        %v1071 = vadd.f32 %v1032, %v1059
        %v1072 = vadd.f32 %v1033, %v1059
        %v1073 = vadd.f32 %v1034, %v1059
        %v1074 = vadd.f32 %v1035, %v1059
        %v1075 = vadd.f32 %v1036, %v1059
        %v1076 = vadd.f32 %v1037, %v1059
        %v1077 = vadd.f32 %v1038, %v1059
        %v1078 = vadd.f32 %v1039, %v1059
        %v1079 = vadd.f32 %v1040, %v1059
        %v1080 = vadd.f32 %v1041, %v1059
        %v1081 = vadd.f32 %v1042, %v1059
        %v1082 = vadd.f32 %v1043, %v1059
        %v1083 = vadd.f32 %v1044, %v1059
        %v1084 = vadd.f32 %v1045, %v1059
        %v1085 = vadd.f32 %v1046, %v1059
        %v1086 = vadd.f32 %v1047, %v1059
        %v1087 = vadd.f32 %v1048, %v1059
        %v1088 = vadd.f32 %v1049, %v1059
        %v1089 = vadd.f32 %v1050, %v1059
        %v1090 = vadd.f32 %v1051, %v1059
        %v1091 = vadd.f32 %v1052, %v1059
        %v1092 = vadd.f32 %v1053, %v1059
        %vm1093 = vcmp.ge.f32.partialorder %v1061, 0.0
        %vm1094 = vcmp.ge.f32.partialorder %v1062, 0.0
        %vm1095 = vcmp.ge.f32.partialorder %v1063, 0.0
        %vm1096 = vcmp.ge.f32.partialorder %v1064, 0.0
        %vm1097 = vcmp.ge.f32.partialorder %v1065, 0.0
        %vm1098 = vcmp.ge.f32.partialorder %v1066, 0.0
        %vm1099 = vcmp.ge.f32.partialorder %v1067, 0.0
        %vm1100 = vcmp.ge.f32.partialorder %v1068, 0.0
        %vm1101 = vcmp.ge.f32.partialorder %v1069, 0.0
        %vm1102 = vcmp.ge.f32.partialorder %v1070, 0.0
        %vm1103 = vcmp.ge.f32.partialorder %v1071, 0.0
        %vm1104 = vcmp.ge.f32.partialorder %v1072, 0.0
        %vm1105 = vcmp.ge.f32.partialorder %v1073, 0.0
        %vm1106 = vcmp.ge.f32.partialorder %v1074, 0.0
        %vm1107 = vcmp.ge.f32.partialorder %v1075, 0.0
        %vm1108 = vcmp.ge.f32.partialorder %v1076, 0.0
        %vm1109 = vcmp.ge.f32.partialorder %v1077, 0.0
        %vm1110 = vcmp.ge.f32.partialorder %v1078, 0.0
        %vm1111 = vcmp.ge.f32.partialorder %v1079, 0.0
        %vm1112 = vcmp.ge.f32.partialorder %v1080, 0.0
        %vm1113 = vcmp.ge.f32.partialorder %v1081, 0.0
        %vm1114 = vcmp.ge.f32.partialorder %v1082, 0.0
        %vm1115 = vcmp.ge.f32.partialorder %v1083, 0.0
        %vm1116 = vcmp.ge.f32.partialorder %v1084, 0.0
        %vm1117 = vcmp.ge.f32.partialorder %v1085, 0.0
        %vm1118 = vcmp.ge.f32.partialorder %v1086, 0.0
        %vm1119 = vcmp.ge.f32.partialorder %v1087, 0.0
        %vm1120 = vcmp.ge.f32.partialorder %v1088, 0.0
        %vm1121 = vcmp.ge.f32.partialorder %v1089, 0.0
        %vm1122 = vcmp.ge.f32.partialorder %v1090, 0.0
        %vm1123 = vcmp.ge.f32.partialorder %v1091, 0.0
        %vm1124 = vcmp.ge.f32.partialorder %v1092, 0.0
        %v1125 = vmul.f32 %v1061, 0.01
        %v1126 = vmul.f32 %v1062, 0.01
        %v1127 = vmul.f32 %v1063, 0.01
        %v1128 = vmul.f32 %v1064, 0.01
        %v1129 = vmul.f32 %v1065, 0.01
        %v1130 = vmul.f32 %v1066, 0.01
        %v1131 = vmul.f32 %v1067, 0.01
        %v1132 = vmul.f32 %v1068, 0.01
        %v1133 = vmul.f32 %v1069, 0.01
        %v1134 = vmul.f32 %v1070, 0.01
        %v1135 = vmul.f32 %v1071, 0.01
        %v1136 = vmul.f32 %v1072, 0.01
        %v1137 = vmul.f32 %v1073, 0.01
        %v1138 = vmul.f32 %v1074, 0.01
        %v1139 = vmul.f32 %v1075, 0.01
        %v1140 = vmul.f32 %v1076, 0.01
        %v1141 = vmul.f32 %v1077, 0.01
        %v1142 = vmul.f32 %v1078, 0.01
        %v1143 = vmul.f32 %v1079, 0.01
        %v1144 = vmul.f32 %v1080, 0.01
        %v1145 = vmul.f32 %v1081, 0.01
        %v1146 = vmul.f32 %v1082, 0.01
        %v1147 = vmul.f32 %v1083, 0.01
        %v1148 = vmul.f32 %v1084, 0.01
        %v1149 = vmul.f32 %v1085, 0.01
        %v1150 = vmul.f32 %v1086, 0.01
        %v1151 = vmul.f32 %v1087, 0.01
        %v1152 = vmul.f32 %v1088, 0.01
        %v1153 = vmul.f32 %v1089, 0.01
        %v1154 = vmul.f32 %v1090, 0.01
        %v1155 = vmul.f32 %v1091, 0.01
        %v1156 = vmul.f32 %v1092, 0.01
        %v1157 = vsel %vm1093, %v1061, %v1125
        %v1158 = vsel %vm1094, %v1062, %v1126
        %v1159 = vsel %vm1095, %v1063, %v1127
        %v1160 = vsel %vm1096, %v1064, %v1128
        %v1161 = vsel %vm1097, %v1065, %v1129
        %v1162 = vsel %vm1098, %v1066, %v1130
        %v1163 = vsel %vm1099, %v1067, %v1131
        %v1164 = vsel %vm1100, %v1068, %v1132
        %v1165 = vsel %vm1101, %v1069, %v1133
        %v1166 = vsel %vm1102, %v1070, %v1134
        %v1167 = vsel %vm1103, %v1071, %v1135
        %v1168 = vsel %vm1104, %v1072, %v1136
        %v1169 = vsel %vm1105, %v1073, %v1137
        %v1170 = vsel %vm1106, %v1074, %v1138
        %v1171 = vsel %vm1107, %v1075, %v1139
        %v1172 = vsel %vm1108, %v1076, %v1140
        %v1173 = vsel %vm1109, %v1077, %v1141
        %v1174 = vsel %vm1110, %v1078, %v1142
        %v1175 = vsel %vm1111, %v1079, %v1143
        %v1176 = vsel %vm1112, %v1080, %v1144
        %v1177 = vsel %vm1113, %v1081, %v1145
        %v1178 = vsel %vm1114, %v1082, %v1146
        %v1179 = vsel %vm1115, %v1083, %v1147
        %v1180 = vsel %vm1116, %v1084, %v1148
        %v1181 = vsel %vm1117, %v1085, %v1149
        %v1182 = vsel %vm1118, %v1086, %v1150
        %v1183 = vsel %vm1119, %v1087, %v1151
        %v1184 = vsel %vm1120, %v1088, %v1152
        %v1185 = vsel %vm1121, %v1089, %v1153
        %v1186 = vsel %vm1122, %v1090, %v1154
        %v1187 = vsel %vm1123, %v1091, %v1155
        %v1188 = vsel %vm1124, %v1092, %v1156
        %v1189 = vpack.c.bf16 %v1158, %v1157
        %v1190 = vpack.c.bf16 %v1160, %v1159
        %v1191 = vpack.c.bf16 %v1162, %v1161
        %v1192 = vpack.c.bf16 %v1164, %v1163
        %v1193 = vpack.c.bf16 %v1166, %v1165
        %v1194 = vpack.c.bf16 %v1168, %v1167
        %v1195 = vpack.c.bf16 %v1170, %v1169
        %v1196 = vpack.c.bf16 %v1172, %v1171
        %v1197 = vpack.c.bf16 %v1174, %v1173
        %v1198 = vpack.c.bf16 %v1176, %v1175
        %v1199 = vpack.c.bf16 %v1178, %v1177
        %v1200 = vpack.c.bf16 %v1180, %v1179
        %v1201 = vpack.c.bf16 %v1182, %v1181
        %v1202 = vpack.c.bf16 %v1184, %v1183
        %v1203 = vpack.c.bf16 %v1186, %v1185
        %v1204 = vpack.c.bf16 %v1188, %v1187
        %v1205 = vld [vmem:[%s3] sm:$0xf]
        %v1206 = vld [vmem:[%s3 + $0x4] sm:$0xf]
        %v1207 = vld [vmem:[%s3 + $0x8] sm:$0xf]
        %v1208 = vld [vmem:[%s3 + $0xc] sm:$0xf]
        %v1209 = vld [vmem:[%s3 + $0x10] sm:$0xf]
        %v1210 = vld [vmem:[%s3 + $0x14] sm:$0xf]
        %v1211 = vld [vmem:[%s3 + $0x18] sm:$0xf]
        %v1212 = vld [vmem:[%s3 + $0x1c] sm:$0xf]
        %v1213 = vld [vmem:[%s4] sm:$0x1]
        %v1215 = vlaneseq
        %v1216 = vshrl.u32 %v1215, 7
        %v1217 = vsub.s32 0, %v1216
        %v1218 = vrot.slane %v1213, %v1217
        %v1228 = vunpack.c.l.b16 %v1205
        %v1229 = vunpack.c.l.b16 %v1206
        %v1230 = vunpack.c.l.b16 %v1207
        %v1231 = vunpack.c.l.b16 %v1208
        %v1232 = vunpack.c.l.b16 %v1209
        %v1233 = vunpack.c.l.b16 %v1210
        %v1234 = vunpack.c.l.b16 %v1211
        %v1235 = vunpack.c.l.b16 %v1212
        %v1236 = vpack.c.b16 %v1229, %v1228
        %v1237 = vpack.c.b16 %v1231, %v1230
        %v1238 = vpack.c.b16 %v1233, %v1232
        %v1239 = vpack.c.b16 %v1235, %v1234
        %vm1244 = vcmask 523264
        %v1246 = vsel %vm1244, %v1189, 0
        %v1249 = vsel %vm1244, %v1190, 0
        %v1252 = vsel %vm1244, %v1191, 0
        %v1255 = vsel %vm1244, %v1192, 0
        %v1258 = vsel %vm1244, %v1193, 0
        %v1261 = vsel %vm1244, %v1194, 0
        %v1264 = vsel %vm1244, %v1195, 0
        %v1267 = vsel %vm1244, %v1196, 0
        %v1270 = vsel %vm1244, %v1197, 0
        %v1273 = vsel %vm1244, %v1198, 0
        %v1276 = vsel %vm1244, %v1199, 0
        %v1279 = vsel %vm1244, %v1200, 0
        %v1282 = vsel %vm1244, %v1201, 0
        %v1285 = vsel %vm1244, %v1202, 0
        %v1288 = vsel %vm1244, %v1203, 0
        %v1291 = vsel %vm1244, %v1204, 0
        %1293 = vmatprep.subr.bf16.mxu0 0
        %1294 = vmatpush1.bf16.msra.mxu0 0
        %1295 = vmatprep.subr.bf16.mxu0 0
        %1296 = vmatpush1.bf16.msra.mxu0 0
        %1297 = vmatprep.subr.bf16.mxu0 0
        %1298 = vmatpush1.bf16.msra.mxu0 0
        %1299 = vmatprep.subr.bf16.mxu0 0
        %1300 = vmatpush1.bf16.msra.mxu0 0
        %1301 = vmatprep.subr.bf16.mxu0 0
        %1302 = vmatpush1.bf16.msra.mxu0 %v1239
        %1303 = vmatprep.subr.bf16.mxu0 0
        %1304 = vmatpush1.bf16.msra.mxu0 %v1238
        %1305 = vmatprep.subr.bf16.mxu0 0
        %1306 = vmatpush1.bf16.msra.mxu0 %v1237
        %1307 = vmatprep.subr.bf16.mxu0 0
        %1308 = vmatpush1.bf16.msra.mxu0 %v1236
        %1309 = vmatprep.subr.bf16.mxu0 0
        %1310 = vmatpush2.bf16.msra.mxu0 0
        %1311 = vmatprep.subr.bf16.mxu0 0
        %1312 = vmatpush2.bf16.msra.mxu0 0
        %1313 = vmatprep.subr.bf16.mxu0 0
        %1314 = vmatpush2.bf16.msra.mxu0 0
        %1315 = vmatprep.subr.bf16.mxu0 0
        %1316 = vmatpush2.bf16.msra.mxu0 0
        %1317 = vmatprep.subr.bf16.mxu0 0
        %1318 = vmatpush2.bf16.msra.mxu0 0
        %1319 = vmatprep.subr.bf16.mxu0 0
        %1320 = vmatpush2.bf16.msra.mxu0 0
        %1321 = vmatprep.subr.bf16.mxu0 0
        %1322 = vmatpush2.bf16.msra.mxu0 0
        %1323 = vmatprep.subr.bf16.mxu0 0
        %1324 = vmatpush2.bf16.msra.mxu0 0
        %1325 = vmatprep.mubr.bf16.mxu0 0
        %1326 = vmatmul.mubr.bf16.gmra.mxu0 %v1246
        %v1327 = vpop.f32.mrf.mxu0
        %v1328 = vadd.f32 %v1218, %v1327
        %v1329 = vpop.f32.mrf.mxu0
        %v1330 = vpop.f32.mrf.mxu0
        %v1331 = vadd.f32 %v1218, %v1330
        %v1332 = vpop.f32.mrf.mxu0
        %1333 = vmatprep.mubr.bf16.mxu0 0
        %1334 = vmatmul.mubr.bf16.gmra.mxu0 %v1249
        %v1335 = vpop.f32.mrf.mxu0
        %v1336 = vadd.f32 %v1218, %v1335
        %v1337 = vpop.f32.mrf.mxu0
        %v1338 = vpop.f32.mrf.mxu0
        %v1339 = vadd.f32 %v1218, %v1338
        %v1340 = vpop.f32.mrf.mxu0
        %1341 = vmatprep.mubr.bf16.mxu0 0
        %1342 = vmatmul.mubr.bf16.gmra.mxu0 %v1252
        %v1343 = vpop.f32.mrf.mxu0
        %v1344 = vadd.f32 %v1218, %v1343
        %v1345 = vpop.f32.mrf.mxu0
        %v1346 = vpop.f32.mrf.mxu0
        %v1347 = vadd.f32 %v1218, %v1346
        %v1348 = vpop.f32.mrf.mxu0
        %1349 = vmatprep.mubr.bf16.mxu0 0
        %1350 = vmatmul.mubr.bf16.gmra.mxu0 %v1255
        %v1351 = vpop.f32.mrf.mxu0
        %v1352 = vadd.f32 %v1218, %v1351
        %v1353 = vpop.f32.mrf.mxu0
        %v1354 = vpop.f32.mrf.mxu0
        %v1355 = vadd.f32 %v1218, %v1354
        %v1356 = vpop.f32.mrf.mxu0
        %1357 = vmatprep.mubr.bf16.mxu0 0
        %1358 = vmatmul.mubr.bf16.gmra.mxu0 %v1258
        %v1359 = vpop.f32.mrf.mxu0
        %v1360 = vadd.f32 %v1218, %v1359
        %v1361 = vpop.f32.mrf.mxu0
        %v1362 = vpop.f32.mrf.mxu0
        %v1363 = vadd.f32 %v1218, %v1362
        %v1364 = vpop.f32.mrf.mxu0
        %1365 = vmatprep.mubr.bf16.mxu0 0
        %1366 = vmatmul.mubr.bf16.gmra.mxu0 %v1261
        %v1367 = vpop.f32.mrf.mxu0
        %v1368 = vadd.f32 %v1218, %v1367
        %v1369 = vpop.f32.mrf.mxu0
        %v1370 = vpop.f32.mrf.mxu0
        %v1371 = vadd.f32 %v1218, %v1370
        %v1372 = vpop.f32.mrf.mxu0
        %1373 = vmatprep.mubr.bf16.mxu0 0
        %1374 = vmatmul.mubr.bf16.gmra.mxu0 %v1264
        %v1375 = vpop.f32.mrf.mxu0
        %v1376 = vadd.f32 %v1218, %v1375
        %v1377 = vpop.f32.mrf.mxu0
        %v1378 = vpop.f32.mrf.mxu0
        %v1379 = vadd.f32 %v1218, %v1378
        %v1380 = vpop.f32.mrf.mxu0
        %1381 = vmatprep.mubr.bf16.mxu0 0
        %1382 = vmatmul.mubr.bf16.gmra.mxu0 %v1267
        %v1383 = vpop.f32.mrf.mxu0
        %v1384 = vadd.f32 %v1218, %v1383
        %v1385 = vpop.f32.mrf.mxu0
        %v1386 = vpop.f32.mrf.mxu0
        %v1387 = vadd.f32 %v1218, %v1386
        %v1388 = vpop.f32.mrf.mxu0
        %1389 = vmatprep.mubr.bf16.mxu0 0
        %1390 = vmatmul.mubr.bf16.gmra.mxu0 %v1270
        %v1391 = vpop.f32.mrf.mxu0
        %v1392 = vadd.f32 %v1218, %v1391
        %v1393 = vpop.f32.mrf.mxu0
        %v1394 = vpop.f32.mrf.mxu0
        %v1395 = vadd.f32 %v1218, %v1394
        %v1396 = vpop.f32.mrf.mxu0
        %1397 = vmatprep.mubr.bf16.mxu0 0
        %1398 = vmatmul.mubr.bf16.gmra.mxu0 %v1273
        %v1399 = vpop.f32.mrf.mxu0
        %v1400 = vadd.f32 %v1218, %v1399
        %v1401 = vpop.f32.mrf.mxu0
        %v1402 = vpop.f32.mrf.mxu0
        %v1403 = vadd.f32 %v1218, %v1402
        %v1404 = vpop.f32.mrf.mxu0
        %1405 = vmatprep.mubr.bf16.mxu0 0
        %1406 = vmatmul.mubr.bf16.gmra.mxu0 %v1276
        %v1407 = vpop.f32.mrf.mxu0
        %v1408 = vadd.f32 %v1218, %v1407
        %v1409 = vpop.f32.mrf.mxu0
        %v1410 = vpop.f32.mrf.mxu0
        %v1411 = vadd.f32 %v1218, %v1410
        %v1412 = vpop.f32.mrf.mxu0
        %1413 = vmatprep.mubr.bf16.mxu0 0
        %1414 = vmatmul.mubr.bf16.gmra.mxu0 %v1279
        %v1415 = vpop.f32.mrf.mxu0
        %v1416 = vadd.f32 %v1218, %v1415
        %v1417 = vpop.f32.mrf.mxu0
        %v1418 = vpop.f32.mrf.mxu0
        %v1419 = vadd.f32 %v1218, %v1418
        %v1420 = vpop.f32.mrf.mxu0
        %1421 = vmatprep.mubr.bf16.mxu0 0
        %1422 = vmatmul.mubr.bf16.gmra.mxu0 %v1282
        %v1423 = vpop.f32.mrf.mxu0
        %v1424 = vadd.f32 %v1218, %v1423
        %v1425 = vpop.f32.mrf.mxu0
        %v1426 = vpop.f32.mrf.mxu0
        %v1427 = vadd.f32 %v1218, %v1426
        %v1428 = vpop.f32.mrf.mxu0
        %1429 = vmatprep.mubr.bf16.mxu0 0
        %1430 = vmatmul.mubr.bf16.gmra.mxu0 %v1285
        %v1431 = vpop.f32.mrf.mxu0
        %v1432 = vadd.f32 %v1218, %v1431
        %v1433 = vpop.f32.mrf.mxu0
        %v1434 = vpop.f32.mrf.mxu0
        %v1435 = vadd.f32 %v1218, %v1434
        %v1436 = vpop.f32.mrf.mxu0
        %1437 = vmatprep.mubr.bf16.mxu0 0
        %1438 = vmatmul.mubr.bf16.gmra.mxu0 %v1288
        %v1439 = vpop.f32.mrf.mxu0
        %v1440 = vadd.f32 %v1218, %v1439
        %v1441 = vpop.f32.mrf.mxu0
        %v1442 = vpop.f32.mrf.mxu0
        %v1443 = vadd.f32 %v1218, %v1442
        %v1444 = vpop.f32.mrf.mxu0
        %1445 = vmatprep.mubr.bf16.mxu0 0
        %1446 = vmatmul.mubr.bf16.gmra.mxu0 %v1291
        %v1447 = vpop.f32.mrf.mxu0
        %v1448 = vadd.f32 %v1218, %v1447
        %v1449 = vpop.f32.mrf.mxu0
        %v1450 = vpop.f32.mrf.mxu0
        %v1451 = vadd.f32 %v1218, %v1450
        %v1452 = vpop.f32.mrf.mxu0
        %1453 = vdwg.mxu0
        %vm1454 = vcmp.ge.f32.partialorder %v1328, 0.0
        %vm1455 = vcmp.ge.f32.partialorder %v1331, 0.0
        %vm1456 = vcmp.ge.f32.partialorder %v1336, 0.0
        %vm1457 = vcmp.ge.f32.partialorder %v1339, 0.0
        %vm1458 = vcmp.ge.f32.partialorder %v1344, 0.0
        %vm1459 = vcmp.ge.f32.partialorder %v1347, 0.0
        %vm1460 = vcmp.ge.f32.partialorder %v1352, 0.0
        %vm1461 = vcmp.ge.f32.partialorder %v1355, 0.0
        %vm1462 = vcmp.ge.f32.partialorder %v1360, 0.0
        %vm1463 = vcmp.ge.f32.partialorder %v1363, 0.0
        %vm1464 = vcmp.ge.f32.partialorder %v1368, 0.0
        %vm1465 = vcmp.ge.f32.partialorder %v1371, 0.0
        %vm1466 = vcmp.ge.f32.partialorder %v1376, 0.0
        %vm1467 = vcmp.ge.f32.partialorder %v1379, 0.0
        %vm1468 = vcmp.ge.f32.partialorder %v1384, 0.0
        %vm1469 = vcmp.ge.f32.partialorder %v1387, 0.0
        %vm1470 = vcmp.ge.f32.partialorder %v1392, 0.0
        %vm1471 = vcmp.ge.f32.partialorder %v1395, 0.0
        %vm1472 = vcmp.ge.f32.partialorder %v1400, 0.0
        %vm1473 = vcmp.ge.f32.partialorder %v1403, 0.0
        %vm1474 = vcmp.ge.f32.partialorder %v1408, 0.0
        %vm1475 = vcmp.ge.f32.partialorder %v1411, 0.0
        %vm1476 = vcmp.ge.f32.partialorder %v1416, 0.0
        %vm1477 = vcmp.ge.f32.partialorder %v1419, 0.0
        %vm1478 = vcmp.ge.f32.partialorder %v1424, 0.0
        %vm1479 = vcmp.ge.f32.partialorder %v1427, 0.0
        %vm1480 = vcmp.ge.f32.partialorder %v1432, 0.0
        %vm1481 = vcmp.ge.f32.partialorder %v1435, 0.0
        %vm1482 = vcmp.ge.f32.partialorder %v1440, 0.0
        %vm1483 = vcmp.ge.f32.partialorder %v1443, 0.0
        %vm1484 = vcmp.ge.f32.partialorder %v1448, 0.0
        %vm1485 = vcmp.ge.f32.partialorder %v1451, 0.0
        %v1486 = vmul.f32 %v1328, 0.01
        %v1487 = vmul.f32 %v1331, 0.01
        %v1488 = vmul.f32 %v1336, 0.01
        %v1489 = vmul.f32 %v1339, 0.01
        %v1490 = vmul.f32 %v1344, 0.01
        %v1491 = vmul.f32 %v1347, 0.01
        %v1492 = vmul.f32 %v1352, 0.01
        %v1493 = vmul.f32 %v1355, 0.01
        %v1494 = vmul.f32 %v1360, 0.01
        %v1495 = vmul.f32 %v1363, 0.01
        %v1496 = vmul.f32 %v1368, 0.01
        %v1497 = vmul.f32 %v1371, 0.01
        %v1498 = vmul.f32 %v1376, 0.01
        %v1499 = vmul.f32 %v1379, 0.01
        %v1500 = vmul.f32 %v1384, 0.01
        %v1501 = vmul.f32 %v1387, 0.01
        %v1502 = vmul.f32 %v1392, 0.01
        %v1503 = vmul.f32 %v1395, 0.01
        %v1504 = vmul.f32 %v1400, 0.01
        %v1505 = vmul.f32 %v1403, 0.01
        %v1506 = vmul.f32 %v1408, 0.01
        %v1507 = vmul.f32 %v1411, 0.01
        %v1508 = vmul.f32 %v1416, 0.01
        %v1509 = vmul.f32 %v1419, 0.01
        %v1510 = vmul.f32 %v1424, 0.01
        %v1511 = vmul.f32 %v1427, 0.01
        %v1512 = vmul.f32 %v1432, 0.01
        %v1513 = vmul.f32 %v1435, 0.01
        %v1514 = vmul.f32 %v1440, 0.01
        %v1515 = vmul.f32 %v1443, 0.01
        %v1516 = vmul.f32 %v1448, 0.01
        %v1517 = vmul.f32 %v1451, 0.01
        %v1518 = vsel %vm1454, %v1328, %v1486
        %v1519 = vsel %vm1455, %v1331, %v1487
        %v1520 = vsel %vm1456, %v1336, %v1488
        %v1521 = vsel %vm1457, %v1339, %v1489
        %v1522 = vsel %vm1458, %v1344, %v1490
        %v1523 = vsel %vm1459, %v1347, %v1491
        %v1524 = vsel %vm1460, %v1352, %v1492
        %v1525 = vsel %vm1461, %v1355, %v1493
        %v1526 = vsel %vm1462, %v1360, %v1494
        %v1527 = vsel %vm1463, %v1363, %v1495
        %v1528 = vsel %vm1464, %v1368, %v1496
        %v1529 = vsel %vm1465, %v1371, %v1497
        %v1530 = vsel %vm1466, %v1376, %v1498
        %v1531 = vsel %vm1467, %v1379, %v1499
        %v1532 = vsel %vm1468, %v1384, %v1500
        %v1533 = vsel %vm1469, %v1387, %v1501
        %v1534 = vsel %vm1470, %v1392, %v1502
        %v1535 = vsel %vm1471, %v1395, %v1503
        %v1536 = vsel %vm1472, %v1400, %v1504
        %v1537 = vsel %vm1473, %v1403, %v1505
        %v1538 = vsel %vm1474, %v1408, %v1506
        %v1539 = vsel %vm1475, %v1411, %v1507
        %v1540 = vsel %vm1476, %v1416, %v1508
        %v1541 = vsel %vm1477, %v1419, %v1509
        %v1542 = vsel %vm1478, %v1424, %v1510
        %v1543 = vsel %vm1479, %v1427, %v1511
        %v1544 = vsel %vm1480, %v1432, %v1512
        %v1545 = vsel %vm1481, %v1435, %v1513
        %v1546 = vsel %vm1482, %v1440, %v1514
        %v1547 = vsel %vm1483, %v1443, %v1515
        %v1548 = vsel %vm1484, %v1448, %v1516
        %v1549 = vsel %vm1485, %v1451, %v1517
        %v1550 = vpack.c.bf16 %v1519, %v1518
        %v1551 = vpack.c.bf16 %v1521, %v1520
        %v1552 = vpack.c.bf16 %v1523, %v1522
        %v1553 = vpack.c.bf16 %v1525, %v1524
        %v1554 = vpack.c.bf16 %v1527, %v1526
        %v1555 = vpack.c.bf16 %v1529, %v1528
        %v1556 = vpack.c.bf16 %v1531, %v1530
        %v1557 = vpack.c.bf16 %v1533, %v1532
        %v1558 = vpack.c.bf16 %v1535, %v1534
        %v1559 = vpack.c.bf16 %v1537, %v1536
        %v1560 = vpack.c.bf16 %v1539, %v1538
        %v1561 = vpack.c.bf16 %v1541, %v1540
        %v1562 = vpack.c.bf16 %v1543, %v1542
        %v1563 = vpack.c.bf16 %v1545, %v1544
        %v1564 = vpack.c.bf16 %v1547, %v1546
        %v1565 = vpack.c.bf16 %v1549, %v1548
        %v1566 = vld [vmem:[%s5] sm:$0xff]
        %v1567 = vld [vmem:[%s5 + $0x8] sm:$0xff]
        %v1568 = vld [vmem:[%s5 + $0x10] sm:$0xff]
        %v1569 = vld [vmem:[%s5 + $0x18] sm:$0xff]
        %v1570 = vld [vmem:[%s5 + $0x20] sm:$0xff]
        %v1571 = vld [vmem:[%s5 + $0x28] sm:$0xff]
        %v1572 = vld [vmem:[%s5 + $0x30] sm:$0xff]
        %v1573 = vld [vmem:[%s5 + $0x38] sm:$0xff]
        %v1574 = vld [vmem:[%s5 + $0x40] sm:$0xff]
        %v1575 = vld [vmem:[%s5 + $0x48] sm:$0xff]
        %v1576 = vld [vmem:[%s5 + $0x50] sm:$0xff]
        %v1577 = vld [vmem:[%s5 + $0x58] sm:$0xff]
        %v1578 = vld [vmem:[%s5 + $0x60] sm:$0xff]
        %v1579 = vld [vmem:[%s5 + $0x68] sm:$0xff]
        %v1580 = vld [vmem:[%s5 + $0x70] sm:$0xff]
        %v1581 = vld [vmem:[%s5 + $0x78] sm:$0xff]
        %v1582 = vld [vmem:[%s5 + $0x80] sm:$0xff]
        %v1583 = vld [vmem:[%s5 + $0x88] sm:$0xff]
        %v1584 = vld [vmem:[%s5 + $0x90] sm:$0xff]
        %v1585 = vld [vmem:[%s5 + $0x98] sm:$0xff]
        %v1586 = vld [vmem:[%s5 + $0xa0] sm:$0xff]
        %v1587 = vld [vmem:[%s5 + $0xa8] sm:$0xff]
        %v1588 = vld [vmem:[%s5 + $0xb0] sm:$0xff]
        %v1589 = vld [vmem:[%s5 + $0xb8] sm:$0xff]
        %v1590 = vld [vmem:[%s5 + $0xc0] sm:$0xff]
        %v1591 = vld [vmem:[%s5 + $0xc8] sm:$0xff]
        %v1592 = vld [vmem:[%s5 + $0xd0] sm:$0xff]
        %v1593 = vld [vmem:[%s5 + $0xd8] sm:$0xff]
        %v1594 = vld [vmem:[%s5 + $0xe0] sm:$0xff]
        %v1595 = vld [vmem:[%s5 + $0xe8] sm:$0xff]
        %v1596 = vld [vmem:[%s5 + $0xf0] sm:$0xff]
        %v1597 = vld [vmem:[%s5 + $0xf8] sm:$0xff]
        %v1598 = vld [vmem:[%s5 + $0x100] sm:$0xff]
        %v1599 = vld [vmem:[%s5 + $0x108] sm:$0xff]
        %v1600 = vld [vmem:[%s5 + $0x110] sm:$0xff]
        %v1601 = vld [vmem:[%s5 + $0x118] sm:$0xff]
        %v1602 = vld [vmem:[%s5 + $0x120] sm:$0xff]
        %v1603 = vld [vmem:[%s5 + $0x128] sm:$0xff]
        %v1604 = vld [vmem:[%s5 + $0x130] sm:$0xff]
        %v1605 = vld [vmem:[%s5 + $0x138] sm:$0xff]
        %v1606 = vld [vmem:[%s5 + $0x140] sm:$0xff]
        %v1607 = vld [vmem:[%s5 + $0x148] sm:$0xff]
        %v1608 = vld [vmem:[%s5 + $0x150] sm:$0xff]
        %v1609 = vld [vmem:[%s5 + $0x158] sm:$0xff]
        %v1610 = vld [vmem:[%s5 + $0x160] sm:$0xff]
        %v1611 = vld [vmem:[%s5 + $0x168] sm:$0xff]
        %v1612 = vld [vmem:[%s5 + $0x170] sm:$0xff]
        %v1613 = vld [vmem:[%s5 + $0x178] sm:$0xff]
        %v1614 = vld [vmem:[%s5 + $0x180] sm:$0xff]
        %v1615 = vld [vmem:[%s5 + $0x188] sm:$0xff]
        %v1616 = vld [vmem:[%s5 + $0x190] sm:$0xff]
        %v1617 = vld [vmem:[%s5 + $0x198] sm:$0xff]
        %v1618 = vld [vmem:[%s5 + $0x1a0] sm:$0xff]
        %v1619 = vld [vmem:[%s5 + $0x1a8] sm:$0xff]
        %v1620 = vld [vmem:[%s5 + $0x1b0] sm:$0xff]
        %v1621 = vld [vmem:[%s5 + $0x1b8] sm:$0xff]
        %v1622 = vld [vmem:[%s5 + $0x1c0] sm:$0xff]
        %v1623 = vld [vmem:[%s5 + $0x1c8] sm:$0xff]
        %v1624 = vld [vmem:[%s5 + $0x1d0] sm:$0xff]
        %v1625 = vld [vmem:[%s5 + $0x1d8] sm:$0xff]
        %v1626 = vld [vmem:[%s5 + $0x1e0] sm:$0xff]
        %v1627 = vld [vmem:[%s5 + $0x1e8] sm:$0xff]
        %v1628 = vld [vmem:[%s5 + $0x1f0] sm:$0xff]
        %v1629 = vld [vmem:[%s5 + $0x1f8] sm:$0xff]
        %v1630 = vld [vmem:[%s6] sm:$0xff]
        %v1632 = vlaneseq
        %v1633 = vshrl.u32 %v1632, 7
        %v1634 = vsub.s32 0, %v1633
        %v1635 = vrot.slane %v1630, %v1634
        %v1636 = vlaneseq
        %v1637 = vshrl.u32 %v1636, 7
        %v1638 = vsub.s32 1, %v1637
        %v1639 = vrot.slane %v1630, %v1638
        %v1640 = vlaneseq
        %v1641 = vshrl.u32 %v1640, 7
        %v1642 = vsub.s32 2, %v1641
        %v1643 = vrot.slane %v1630, %v1642
        %v1644 = vlaneseq
        %v1645 = vshrl.u32 %v1644, 7
        %v1646 = vsub.s32 3, %v1645
        %v1647 = vrot.slane %v1630, %v1646
        %v1648 = vlaneseq
        %v1649 = vshrl.u32 %v1648, 7
        %v1650 = vsub.s32 4, %v1649
        %v1651 = vrot.slane %v1630, %v1650
        %v1652 = vlaneseq
        %v1653 = vshrl.u32 %v1652, 7
        %v1654 = vsub.s32 5, %v1653
        %v1655 = vrot.slane %v1630, %v1654
        %v1656 = vlaneseq
        %v1657 = vshrl.u32 %v1656, 7
        %v1658 = vsub.s32 6, %v1657
        %v1659 = vrot.slane %v1630, %v1658
        %v1660 = vlaneseq
        %v1661 = vshrl.u32 %v1660, 7
        %v1662 = vsub.s32 7, %v1661
        %v1663 = vrot.slane %v1630, %v1662
        %v1736 = vunpack.c.l.b16 %v1566
        %v1737 = vunpack.c.h.b16 %v1566
        %v1738 = vunpack.c.l.b16 %v1567
        %v1739 = vunpack.c.h.b16 %v1567
        %v1740 = vunpack.c.l.b16 %v1568
        %v1741 = vunpack.c.h.b16 %v1568
        %v1742 = vunpack.c.l.b16 %v1569
        %v1743 = vunpack.c.h.b16 %v1569
        %v1744 = vunpack.c.l.b16 %v1570
        %v1745 = vunpack.c.h.b16 %v1570
        %v1746 = vunpack.c.l.b16 %v1571
        %v1747 = vunpack.c.h.b16 %v1571
        %v1748 = vunpack.c.l.b16 %v1572
        %v1749 = vunpack.c.h.b16 %v1572
        %v1750 = vunpack.c.l.b16 %v1573
        %v1751 = vunpack.c.h.b16 %v1573
        %v1752 = vunpack.c.l.b16 %v1574
        %v1753 = vunpack.c.h.b16 %v1574
        %v1754 = vunpack.c.l.b16 %v1575
        %v1755 = vunpack.c.h.b16 %v1575
        %v1756 = vunpack.c.l.b16 %v1576
        %v1757 = vunpack.c.h.b16 %v1576
        %v1758 = vunpack.c.l.b16 %v1577
        %v1759 = vunpack.c.h.b16 %v1577
        %v1760 = vunpack.c.l.b16 %v1578
        %v1761 = vunpack.c.h.b16 %v1578
        %v1762 = vunpack.c.l.b16 %v1579
        %v1763 = vunpack.c.h.b16 %v1579
        %v1764 = vunpack.c.l.b16 %v1580
        %v1765 = vunpack.c.h.b16 %v1580
        %v1766 = vunpack.c.l.b16 %v1581
        %v1767 = vunpack.c.h.b16 %v1581
        %v1768 = vunpack.c.l.b16 %v1582
        %v1769 = vunpack.c.h.b16 %v1582
        %v1770 = vunpack.c.l.b16 %v1583
        %v1771 = vunpack.c.h.b16 %v1583
        %v1772 = vunpack.c.l.b16 %v1584
        %v1773 = vunpack.c.h.b16 %v1584
        %v1774 = vunpack.c.l.b16 %v1585
        %v1775 = vunpack.c.h.b16 %v1585
        %v1776 = vunpack.c.l.b16 %v1586
        %v1777 = vunpack.c.h.b16 %v1586
        %v1778 = vunpack.c.l.b16 %v1587
        %v1779 = vunpack.c.h.b16 %v1587
        %v1780 = vunpack.c.l.b16 %v1588
        %v1781 = vunpack.c.h.b16 %v1588
        %v1782 = vunpack.c.l.b16 %v1589
        %v1783 = vunpack.c.h.b16 %v1589
        %v1784 = vunpack.c.l.b16 %v1590
        %v1785 = vunpack.c.h.b16 %v1590
        %v1786 = vunpack.c.l.b16 %v1591
        %v1787 = vunpack.c.h.b16 %v1591
        %v1788 = vunpack.c.l.b16 %v1592
        %v1789 = vunpack.c.h.b16 %v1592
        %v1790 = vunpack.c.l.b16 %v1593
        %v1791 = vunpack.c.h.b16 %v1593
        %v1792 = vunpack.c.l.b16 %v1594
        %v1793 = vunpack.c.h.b16 %v1594
        %v1794 = vunpack.c.l.b16 %v1595
        %v1795 = vunpack.c.h.b16 %v1595
        %v1796 = vunpack.c.l.b16 %v1596
        %v1797 = vunpack.c.h.b16 %v1596
        %v1798 = vunpack.c.l.b16 %v1597
        %v1799 = vunpack.c.h.b16 %v1597
        %v1800 = vunpack.c.l.b16 %v1598
        %v1801 = vunpack.c.h.b16 %v1598
        %v1802 = vunpack.c.l.b16 %v1599
        %v1803 = vunpack.c.h.b16 %v1599
        %v1804 = vunpack.c.l.b16 %v1600
        %v1805 = vunpack.c.h.b16 %v1600
        %v1806 = vunpack.c.l.b16 %v1601
        %v1807 = vunpack.c.h.b16 %v1601
        %v1808 = vunpack.c.l.b16 %v1602
        %v1809 = vunpack.c.h.b16 %v1602
        %v1810 = vunpack.c.l.b16 %v1603
        %v1811 = vunpack.c.h.b16 %v1603
        %v1812 = vunpack.c.l.b16 %v1604
        %v1813 = vunpack.c.h.b16 %v1604
        %v1814 = vunpack.c.l.b16 %v1605
        %v1815 = vunpack.c.h.b16 %v1605
        %v1816 = vunpack.c.l.b16 %v1606
        %v1817 = vunpack.c.h.b16 %v1606
        %v1818 = vunpack.c.l.b16 %v1607
        %v1819 = vunpack.c.h.b16 %v1607
        %v1820 = vunpack.c.l.b16 %v1608
        %v1821 = vunpack.c.h.b16 %v1608
        %v1822 = vunpack.c.l.b16 %v1609
        %v1823 = vunpack.c.h.b16 %v1609
        %v1824 = vunpack.c.l.b16 %v1610
        %v1825 = vunpack.c.h.b16 %v1610
        %v1826 = vunpack.c.l.b16 %v1611
        %v1827 = vunpack.c.h.b16 %v1611
        %v1828 = vunpack.c.l.b16 %v1612
        %v1829 = vunpack.c.h.b16 %v1612
        %v1830 = vunpack.c.l.b16 %v1613
        %v1831 = vunpack.c.h.b16 %v1613
        %v1832 = vunpack.c.l.b16 %v1614
        %v1833 = vunpack.c.h.b16 %v1614
        %v1834 = vunpack.c.l.b16 %v1615
        %v1835 = vunpack.c.h.b16 %v1615
        %v1836 = vunpack.c.l.b16 %v1616
        %v1837 = vunpack.c.h.b16 %v1616
        %v1838 = vunpack.c.l.b16 %v1617
        %v1839 = vunpack.c.h.b16 %v1617
        %v1840 = vunpack.c.l.b16 %v1618
        %v1841 = vunpack.c.h.b16 %v1618
        %v1842 = vunpack.c.l.b16 %v1619
        %v1843 = vunpack.c.h.b16 %v1619
        %v1844 = vunpack.c.l.b16 %v1620
        %v1845 = vunpack.c.h.b16 %v1620
        %v1846 = vunpack.c.l.b16 %v1621
        %v1847 = vunpack.c.h.b16 %v1621
        %v1848 = vunpack.c.l.b16 %v1622
        %v1849 = vunpack.c.h.b16 %v1622
        %v1850 = vunpack.c.l.b16 %v1623
        %v1851 = vunpack.c.h.b16 %v1623
        %v1852 = vunpack.c.l.b16 %v1624
        %v1853 = vunpack.c.h.b16 %v1624
        %v1854 = vunpack.c.l.b16 %v1625
        %v1855 = vunpack.c.h.b16 %v1625
        %v1856 = vunpack.c.l.b16 %v1626
        %v1857 = vunpack.c.h.b16 %v1626
        %v1858 = vunpack.c.l.b16 %v1627
        %v1859 = vunpack.c.h.b16 %v1627
        %v1860 = vunpack.c.l.b16 %v1628
        %v1861 = vunpack.c.h.b16 %v1628
        %v1862 = vunpack.c.l.b16 %v1629
        %v1863 = vunpack.c.h.b16 %v1629
        %v1864 = vpack.c.b16 %v1744, %v1736
        %v1865 = vpack.c.b16 %v1745, %v1737
        %v1866 = vpack.c.b16 %v1746, %v1738
        %v1867 = vpack.c.b16 %v1747, %v1739
        %v1868 = vpack.c.b16 %v1748, %v1740
        %v1869 = vpack.c.b16 %v1749, %v1741
        %v1870 = vpack.c.b16 %v1750, %v1742
        %v1871 = vpack.c.b16 %v1751, %v1743
        %v1872 = vpack.c.b16 %v1760, %v1752
        %v1873 = vpack.c.b16 %v1761, %v1753
        %v1874 = vpack.c.b16 %v1762, %v1754
        %v1875 = vpack.c.b16 %v1763, %v1755
        %v1876 = vpack.c.b16 %v1764, %v1756
        %v1877 = vpack.c.b16 %v1765, %v1757
        %v1878 = vpack.c.b16 %v1766, %v1758
        %v1879 = vpack.c.b16 %v1767, %v1759
        %v1880 = vpack.c.b16 %v1776, %v1768
        %v1881 = vpack.c.b16 %v1777, %v1769
        %v1882 = vpack.c.b16 %v1778, %v1770
        %v1883 = vpack.c.b16 %v1779, %v1771
        %v1884 = vpack.c.b16 %v1780, %v1772
        %v1885 = vpack.c.b16 %v1781, %v1773
        %v1886 = vpack.c.b16 %v1782, %v1774
        %v1887 = vpack.c.b16 %v1783, %v1775
        %v1888 = vpack.c.b16 %v1792, %v1784
        %v1889 = vpack.c.b16 %v1793, %v1785
        %v1890 = vpack.c.b16 %v1794, %v1786
        %v1891 = vpack.c.b16 %v1795, %v1787
        %v1892 = vpack.c.b16 %v1796, %v1788
        %v1893 = vpack.c.b16 %v1797, %v1789
        %v1894 = vpack.c.b16 %v1798, %v1790
        %v1895 = vpack.c.b16 %v1799, %v1791
        %v1896 = vpack.c.b16 %v1808, %v1800
        %v1897 = vpack.c.b16 %v1809, %v1801
        %v1898 = vpack.c.b16 %v1810, %v1802
        %v1899 = vpack.c.b16 %v1811, %v1803
        %v1900 = vpack.c.b16 %v1812, %v1804
        %v1901 = vpack.c.b16 %v1813, %v1805
        %v1902 = vpack.c.b16 %v1814, %v1806
        %v1903 = vpack.c.b16 %v1815, %v1807
        %v1904 = vpack.c.b16 %v1824, %v1816
        %v1905 = vpack.c.b16 %v1825, %v1817
        %v1906 = vpack.c.b16 %v1826, %v1818
        %v1907 = vpack.c.b16 %v1827, %v1819
        %v1908 = vpack.c.b16 %v1828, %v1820
        %v1909 = vpack.c.b16 %v1829, %v1821
        %v1910 = vpack.c.b16 %v1830, %v1822
        %v1911 = vpack.c.b16 %v1831, %v1823
        %v1912 = vpack.c.b16 %v1840, %v1832
        %v1913 = vpack.c.b16 %v1841, %v1833
        %v1914 = vpack.c.b16 %v1842, %v1834
        %v1915 = vpack.c.b16 %v1843, %v1835
        %v1916 = vpack.c.b16 %v1844, %v1836
        %v1917 = vpack.c.b16 %v1845, %v1837
        %v1918 = vpack.c.b16 %v1846, %v1838
        %v1919 = vpack.c.b16 %v1847, %v1839
        %v1920 = vpack.c.b16 %v1856, %v1848
        %v1921 = vpack.c.b16 %v1857, %v1849
        %v1922 = vpack.c.b16 %v1858, %v1850
        %v1923 = vpack.c.b16 %v1859, %v1851
        %v1924 = vpack.c.b16 %v1860, %v1852
        %v1925 = vpack.c.b16 %v1861, %v1853
        %v1926 = vpack.c.b16 %v1862, %v1854
        %v1927 = vpack.c.b16 %v1863, %v1855
        %1992 = vmatprep.subr.bf16.mxu0 %v1921
        %1993 = vmatpush1.bf16.msra.mxu0 %v1920
        %1994 = vmatprep.subr.bf16.mxu0 %v1913
        %1995 = vmatpush1.bf16.msra.mxu0 %v1912
        %1996 = vmatprep.subr.bf16.mxu0 %v1905
        %1997 = vmatpush1.bf16.msra.mxu0 %v1904
        %1998 = vmatprep.subr.bf16.mxu0 %v1897
        %1999 = vmatpush1.bf16.msra.mxu0 %v1896
        %2000 = vmatprep.subr.bf16.mxu0 %v1889
        %2001 = vmatpush1.bf16.msra.mxu0 %v1888
        %2002 = vmatprep.subr.bf16.mxu0 %v1881
        %2003 = vmatpush1.bf16.msra.mxu0 %v1880
        %2004 = vmatprep.subr.bf16.mxu0 %v1873
        %2005 = vmatpush1.bf16.msra.mxu0 %v1872
        %2006 = vmatprep.subr.bf16.mxu0 %v1865
        %2007 = vmatpush1.bf16.msra.mxu0 %v1864
        %2008 = vmatprep.subr.bf16.mxu0 0
        %2009 = vmatpush2.bf16.msra.mxu0 0
        %2010 = vmatprep.subr.bf16.mxu0 0
        %2011 = vmatpush2.bf16.msra.mxu0 0
        %2012 = vmatprep.subr.bf16.mxu0 0
        %2013 = vmatpush2.bf16.msra.mxu0 0
        %2014 = vmatprep.subr.bf16.mxu0 0
        %2015 = vmatpush2.bf16.msra.mxu0 0
        %2016 = vmatprep.subr.bf16.mxu0 0
        %2017 = vmatpush2.bf16.msra.mxu0 0
        %2018 = vmatprep.subr.bf16.mxu0 0
        %2019 = vmatpush2.bf16.msra.mxu0 0
        %2020 = vmatprep.subr.bf16.mxu0 0
        %2021 = vmatpush2.bf16.msra.mxu0 0
        %2022 = vmatprep.subr.bf16.mxu0 0
        %2023 = vmatpush2.bf16.msra.mxu0 0
        %2024 = vmatprep.mubr.bf16.mxu0 0
        %2025 = vmatmul.mubr.bf16.gmra.mxu0 %v1550
        %v2026 = vpop.f32.mrf.mxu0
        %v2027 = vadd.f32 %v1635, %v2026
        %v2028 = vpop.f32.mrf.mxu0
        %v2029 = vadd.f32 %v1639, %v2028
        %v2030 = vpop.f32.mrf.mxu0
        %v2031 = vadd.f32 %v1635, %v2030
        %v2032 = vpop.f32.mrf.mxu0
        %v2033 = vadd.f32 %v1639, %v2032
        %2034 = vmatprep.mubr.bf16.mxu0 0
        %2035 = vmatmul.mubr.bf16.gmra.mxu0 %v1551
        %v2036 = vpop.f32.mrf.mxu0
        %v2037 = vadd.f32 %v1635, %v2036
        %v2038 = vpop.f32.mrf.mxu0
        %v2039 = vadd.f32 %v1639, %v2038
        %v2040 = vpop.f32.mrf.mxu0
        %v2041 = vadd.f32 %v1635, %v2040
        %v2042 = vpop.f32.mrf.mxu0
        %v2043 = vadd.f32 %v1639, %v2042
        %2044 = vmatprep.mubr.bf16.mxu0 0
        %2045 = vmatmul.mubr.bf16.gmra.mxu0 %v1552
        %v2046 = vpop.f32.mrf.mxu0
        %v2047 = vadd.f32 %v1635, %v2046
        %v2048 = vpop.f32.mrf.mxu0
        %v2049 = vadd.f32 %v1639, %v2048
        %v2050 = vpop.f32.mrf.mxu0
        %v2051 = vadd.f32 %v1635, %v2050
        %v2052 = vpop.f32.mrf.mxu0
        %v2053 = vadd.f32 %v1639, %v2052
        %2054 = vmatprep.mubr.bf16.mxu0 0
        %2055 = vmatmul.mubr.bf16.gmra.mxu0 %v1553
        %v2056 = vpop.f32.mrf.mxu0
        %v2057 = vadd.f32 %v1635, %v2056
        %v2058 = vpop.f32.mrf.mxu0
        %v2059 = vadd.f32 %v1639, %v2058
        %v2060 = vpop.f32.mrf.mxu0
        %v2061 = vadd.f32 %v1635, %v2060
        %v2062 = vpop.f32.mrf.mxu0
        %v2063 = vadd.f32 %v1639, %v2062
        %2064 = vmatprep.mubr.bf16.mxu0 0
        %2065 = vmatmul.mubr.bf16.gmra.mxu0 %v1554
        %v2066 = vpop.f32.mrf.mxu0
        %v2067 = vadd.f32 %v1635, %v2066
        %v2068 = vpop.f32.mrf.mxu0
        %v2069 = vadd.f32 %v1639, %v2068
        %v2070 = vpop.f32.mrf.mxu0
        %v2071 = vadd.f32 %v1635, %v2070
        %v2072 = vpop.f32.mrf.mxu0
        %v2073 = vadd.f32 %v1639, %v2072
        %2074 = vmatprep.mubr.bf16.mxu0 0
        %2075 = vmatmul.mubr.bf16.gmra.mxu0 %v1555
        %v2076 = vpop.f32.mrf.mxu0
        %v2077 = vadd.f32 %v1635, %v2076
        %v2078 = vpop.f32.mrf.mxu0
        %v2079 = vadd.f32 %v1639, %v2078
        %v2080 = vpop.f32.mrf.mxu0
        %v2081 = vadd.f32 %v1635, %v2080
        %v2082 = vpop.f32.mrf.mxu0
        %v2083 = vadd.f32 %v1639, %v2082
        %2084 = vmatprep.mubr.bf16.mxu0 0
        %2085 = vmatmul.mubr.bf16.gmra.mxu0 %v1556
        %v2086 = vpop.f32.mrf.mxu0
        %v2087 = vadd.f32 %v1635, %v2086
        %v2088 = vpop.f32.mrf.mxu0
        %v2089 = vadd.f32 %v1639, %v2088
        %v2090 = vpop.f32.mrf.mxu0
        %v2091 = vadd.f32 %v1635, %v2090
        %v2092 = vpop.f32.mrf.mxu0
        %v2093 = vadd.f32 %v1639, %v2092
        %2094 = vmatprep.mubr.bf16.mxu0 0
        %2095 = vmatmul.mubr.bf16.gmra.mxu0 %v1557
        %v2096 = vpop.f32.mrf.mxu0
        %v2097 = vadd.f32 %v1635, %v2096
        %v2098 = vpop.f32.mrf.mxu0
        %v2099 = vadd.f32 %v1639, %v2098
        %v2100 = vpop.f32.mrf.mxu0
        %v2101 = vadd.f32 %v1635, %v2100
        %v2102 = vpop.f32.mrf.mxu0
        %v2103 = vadd.f32 %v1639, %v2102
        %2104 = vmatprep.mubr.bf16.mxu0 0
        %2105 = vmatmul.mubr.bf16.gmra.mxu0 %v1558
        %v2106 = vpop.f32.mrf.mxu0
        %v2107 = vadd.f32 %v1635, %v2106
        %v2108 = vpop.f32.mrf.mxu0
        %v2109 = vadd.f32 %v1639, %v2108
        %v2110 = vpop.f32.mrf.mxu0
        %v2111 = vadd.f32 %v1635, %v2110
        %v2112 = vpop.f32.mrf.mxu0
        %v2113 = vadd.f32 %v1639, %v2112
        %2114 = vmatprep.mubr.bf16.mxu0 0
        %2115 = vmatmul.mubr.bf16.gmra.mxu0 %v1559
        %v2116 = vpop.f32.mrf.mxu0
        %v2117 = vadd.f32 %v1635, %v2116
        %v2118 = vpop.f32.mrf.mxu0
        %v2119 = vadd.f32 %v1639, %v2118
        %v2120 = vpop.f32.mrf.mxu0
        %v2121 = vadd.f32 %v1635, %v2120
        %v2122 = vpop.f32.mrf.mxu0
        %v2123 = vadd.f32 %v1639, %v2122
        %2124 = vmatprep.mubr.bf16.mxu0 0
        %2125 = vmatmul.mubr.bf16.gmra.mxu0 %v1560
        %v2126 = vpop.f32.mrf.mxu0
        %v2127 = vadd.f32 %v1635, %v2126
        %v2128 = vpop.f32.mrf.mxu0
        %v2129 = vadd.f32 %v1639, %v2128
        %v2130 = vpop.f32.mrf.mxu0
        %v2131 = vadd.f32 %v1635, %v2130
        %v2132 = vpop.f32.mrf.mxu0
        %v2133 = vadd.f32 %v1639, %v2132
        %2134 = vmatprep.mubr.bf16.mxu0 0
        %2135 = vmatmul.mubr.bf16.gmra.mxu0 %v1561
        %v2136 = vpop.f32.mrf.mxu0
        %v2137 = vadd.f32 %v1635, %v2136
        %v2138 = vpop.f32.mrf.mxu0
        %v2139 = vadd.f32 %v1639, %v2138
        %v2140 = vpop.f32.mrf.mxu0
        %v2141 = vadd.f32 %v1635, %v2140
        %v2142 = vpop.f32.mrf.mxu0
        %v2143 = vadd.f32 %v1639, %v2142
        %2144 = vmatprep.mubr.bf16.mxu0 0
        %2145 = vmatmul.mubr.bf16.gmra.mxu0 %v1562
        %v2146 = vpop.f32.mrf.mxu0
        %v2147 = vadd.f32 %v1635, %v2146
        %v2148 = vpop.f32.mrf.mxu0
        %v2149 = vadd.f32 %v1639, %v2148
        %v2150 = vpop.f32.mrf.mxu0
        %v2151 = vadd.f32 %v1635, %v2150
        %v2152 = vpop.f32.mrf.mxu0
        %v2153 = vadd.f32 %v1639, %v2152
        %2154 = vmatprep.mubr.bf16.mxu0 0
        %2155 = vmatmul.mubr.bf16.gmra.mxu0 %v1563
        %v2156 = vpop.f32.mrf.mxu0
        %v2157 = vadd.f32 %v1635, %v2156
        %v2158 = vpop.f32.mrf.mxu0
        %v2159 = vadd.f32 %v1639, %v2158
        %v2160 = vpop.f32.mrf.mxu0
        %v2161 = vadd.f32 %v1635, %v2160
        %v2162 = vpop.f32.mrf.mxu0
        %v2163 = vadd.f32 %v1639, %v2162
        %2164 = vmatprep.mubr.bf16.mxu0 0
        %2165 = vmatmul.mubr.bf16.gmra.mxu0 %v1564
        %v2166 = vpop.f32.mrf.mxu0
        %v2167 = vadd.f32 %v1635, %v2166
        %v2168 = vpop.f32.mrf.mxu0
        %v2169 = vadd.f32 %v1639, %v2168
        %v2170 = vpop.f32.mrf.mxu0
        %v2171 = vadd.f32 %v1635, %v2170
        %v2172 = vpop.f32.mrf.mxu0
        %v2173 = vadd.f32 %v1639, %v2172
        %2174 = vmatprep.mubr.bf16.mxu0 0
        %2175 = vmatmul.mubr.bf16.gmra.mxu0 %v1565
        %v2176 = vpop.f32.mrf.mxu0
        %v2177 = vadd.f32 %v1635, %v2176
        %v2178 = vpop.f32.mrf.mxu0
        %v2179 = vadd.f32 %v1639, %v2178
        %v2180 = vpop.f32.mrf.mxu0
        %v2181 = vadd.f32 %v1635, %v2180
        %v2182 = vpop.f32.mrf.mxu0
        %v2183 = vadd.f32 %v1639, %v2182
        %2184 = vdwg.mxu0
        %2185 = vmatprep.subr.bf16.mxu0 %v1923
        %2186 = vmatpush1.bf16.msra.mxu0 %v1922
        %2187 = vmatprep.subr.bf16.mxu0 %v1915
        %2188 = vmatpush1.bf16.msra.mxu0 %v1914
        %2189 = vmatprep.subr.bf16.mxu0 %v1907
        %2190 = vmatpush1.bf16.msra.mxu0 %v1906
        %2191 = vmatprep.subr.bf16.mxu0 %v1899
        %2192 = vmatpush1.bf16.msra.mxu0 %v1898
        %2193 = vmatprep.subr.bf16.mxu0 %v1891
        %2194 = vmatpush1.bf16.msra.mxu0 %v1890
        %2195 = vmatprep.subr.bf16.mxu0 %v1883
        %2196 = vmatpush1.bf16.msra.mxu0 %v1882
        %2197 = vmatprep.subr.bf16.mxu0 %v1875
        %2198 = vmatpush1.bf16.msra.mxu0 %v1874
        %2199 = vmatprep.subr.bf16.mxu0 %v1867
        %2200 = vmatpush1.bf16.msra.mxu0 %v1866
        %2201 = vmatprep.subr.bf16.mxu0 0
        %2202 = vmatpush2.bf16.msra.mxu0 0
        %2203 = vmatprep.subr.bf16.mxu0 0
        %2204 = vmatpush2.bf16.msra.mxu0 0
        %2205 = vmatprep.subr.bf16.mxu0 0
        %2206 = vmatpush2.bf16.msra.mxu0 0
        %2207 = vmatprep.subr.bf16.mxu0 0
        %2208 = vmatpush2.bf16.msra.mxu0 0
        %2209 = vmatprep.subr.bf16.mxu0 0
        %2210 = vmatpush2.bf16.msra.mxu0 0
        %2211 = vmatprep.subr.bf16.mxu0 0
        %2212 = vmatpush2.bf16.msra.mxu0 0
        %2213 = vmatprep.subr.bf16.mxu0 0
        %2214 = vmatpush2.bf16.msra.mxu0 0
        %2215 = vmatprep.subr.bf16.mxu0 0
        %2216 = vmatpush2.bf16.msra.mxu0 0
        %2217 = vmatprep.mubr.bf16.mxu0 0
        %2218 = vmatmul.mubr.bf16.gmra.mxu0 %v1550
        %v2219 = vpop.f32.mrf.mxu0
        %v2220 = vadd.f32 %v1643, %v2219
        %v2221 = vpop.f32.mrf.mxu0
        %v2222 = vadd.f32 %v1647, %v2221
        %v2223 = vpop.f32.mrf.mxu0
        %v2224 = vadd.f32 %v1643, %v2223
        %v2225 = vpop.f32.mrf.mxu0
        %v2226 = vadd.f32 %v1647, %v2225
        %2227 = vmatprep.mubr.bf16.mxu0 0
        %2228 = vmatmul.mubr.bf16.gmra.mxu0 %v1551
        %v2229 = vpop.f32.mrf.mxu0
        %v2230 = vadd.f32 %v1643, %v2229
        %v2231 = vpop.f32.mrf.mxu0
        %v2232 = vadd.f32 %v1647, %v2231
        %v2233 = vpop.f32.mrf.mxu0
        %v2234 = vadd.f32 %v1643, %v2233
        %v2235 = vpop.f32.mrf.mxu0
        %v2236 = vadd.f32 %v1647, %v2235
        %2237 = vmatprep.mubr.bf16.mxu0 0
        %2238 = vmatmul.mubr.bf16.gmra.mxu0 %v1552
        %v2239 = vpop.f32.mrf.mxu0
        %v2240 = vadd.f32 %v1643, %v2239
        %v2241 = vpop.f32.mrf.mxu0
        %v2242 = vadd.f32 %v1647, %v2241
        %v2243 = vpop.f32.mrf.mxu0
        %v2244 = vadd.f32 %v1643, %v2243
        %v2245 = vpop.f32.mrf.mxu0
        %v2246 = vadd.f32 %v1647, %v2245
        %2247 = vmatprep.mubr.bf16.mxu0 0
        %2248 = vmatmul.mubr.bf16.gmra.mxu0 %v1553
        %v2249 = vpop.f32.mrf.mxu0
        %v2250 = vadd.f32 %v1643, %v2249
        %v2251 = vpop.f32.mrf.mxu0
        %v2252 = vadd.f32 %v1647, %v2251
        %v2253 = vpop.f32.mrf.mxu0
        %v2254 = vadd.f32 %v1643, %v2253
        %v2255 = vpop.f32.mrf.mxu0
        %v2256 = vadd.f32 %v1647, %v2255
        %2257 = vmatprep.mubr.bf16.mxu0 0
        %2258 = vmatmul.mubr.bf16.gmra.mxu0 %v1554
        %v2259 = vpop.f32.mrf.mxu0
        %v2260 = vadd.f32 %v1643, %v2259
        %v2261 = vpop.f32.mrf.mxu0
        %v2262 = vadd.f32 %v1647, %v2261
        %v2263 = vpop.f32.mrf.mxu0
        %v2264 = vadd.f32 %v1643, %v2263
        %v2265 = vpop.f32.mrf.mxu0
        %v2266 = vadd.f32 %v1647, %v2265
        %2267 = vmatprep.mubr.bf16.mxu0 0
        %2268 = vmatmul.mubr.bf16.gmra.mxu0 %v1555
        %v2269 = vpop.f32.mrf.mxu0
        %v2270 = vadd.f32 %v1643, %v2269
        %v2271 = vpop.f32.mrf.mxu0
        %v2272 = vadd.f32 %v1647, %v2271
        %v2273 = vpop.f32.mrf.mxu0
        %v2274 = vadd.f32 %v1643, %v2273
        %v2275 = vpop.f32.mrf.mxu0
        %v2276 = vadd.f32 %v1647, %v2275
        %2277 = vmatprep.mubr.bf16.mxu0 0
        %2278 = vmatmul.mubr.bf16.gmra.mxu0 %v1556
        %v2279 = vpop.f32.mrf.mxu0
        %v2280 = vadd.f32 %v1643, %v2279
        %v2281 = vpop.f32.mrf.mxu0
        %v2282 = vadd.f32 %v1647, %v2281
        %v2283 = vpop.f32.mrf.mxu0
        %v2284 = vadd.f32 %v1643, %v2283
        %v2285 = vpop.f32.mrf.mxu0
        %v2286 = vadd.f32 %v1647, %v2285
        %2287 = vmatprep.mubr.bf16.mxu0 0
        %2288 = vmatmul.mubr.bf16.gmra.mxu0 %v1557
        %v2289 = vpop.f32.mrf.mxu0
        %v2290 = vadd.f32 %v1643, %v2289
        %v2291 = vpop.f32.mrf.mxu0
        %v2292 = vadd.f32 %v1647, %v2291
        %v2293 = vpop.f32.mrf.mxu0
        %v2294 = vadd.f32 %v1643, %v2293
        %v2295 = vpop.f32.mrf.mxu0
        %v2296 = vadd.f32 %v1647, %v2295
        %2297 = vmatprep.mubr.bf16.mxu0 0
        %2298 = vmatmul.mubr.bf16.gmra.mxu0 %v1558
        %v2299 = vpop.f32.mrf.mxu0
        %v2300 = vadd.f32 %v1643, %v2299
        %v2301 = vpop.f32.mrf.mxu0
        %v2302 = vadd.f32 %v1647, %v2301
        %v2303 = vpop.f32.mrf.mxu0
        %v2304 = vadd.f32 %v1643, %v2303
        %v2305 = vpop.f32.mrf.mxu0
        %v2306 = vadd.f32 %v1647, %v2305
        %2307 = vmatprep.mubr.bf16.mxu0 0
        %2308 = vmatmul.mubr.bf16.gmra.mxu0 %v1559
        %v2309 = vpop.f32.mrf.mxu0
        %v2310 = vadd.f32 %v1643, %v2309
        %v2311 = vpop.f32.mrf.mxu0
        %v2312 = vadd.f32 %v1647, %v2311
        %v2313 = vpop.f32.mrf.mxu0
        %v2314 = vadd.f32 %v1643, %v2313
        %v2315 = vpop.f32.mrf.mxu0
        %v2316 = vadd.f32 %v1647, %v2315
        %2317 = vmatprep.mubr.bf16.mxu0 0
        %2318 = vmatmul.mubr.bf16.gmra.mxu0 %v1560
        %v2319 = vpop.f32.mrf.mxu0
        %v2320 = vadd.f32 %v1643, %v2319
        %v2321 = vpop.f32.mrf.mxu0
        %v2322 = vadd.f32 %v1647, %v2321
        %v2323 = vpop.f32.mrf.mxu0
        %v2324 = vadd.f32 %v1643, %v2323
        %v2325 = vpop.f32.mrf.mxu0
        %v2326 = vadd.f32 %v1647, %v2325
        %2327 = vmatprep.mubr.bf16.mxu0 0
        %2328 = vmatmul.mubr.bf16.gmra.mxu0 %v1561
        %v2329 = vpop.f32.mrf.mxu0
        %v2330 = vadd.f32 %v1643, %v2329
        %v2331 = vpop.f32.mrf.mxu0
        %v2332 = vadd.f32 %v1647, %v2331
        %v2333 = vpop.f32.mrf.mxu0
        %v2334 = vadd.f32 %v1643, %v2333
        %v2335 = vpop.f32.mrf.mxu0
        %v2336 = vadd.f32 %v1647, %v2335
        %2337 = vmatprep.mubr.bf16.mxu0 0
        %2338 = vmatmul.mubr.bf16.gmra.mxu0 %v1562
        %v2339 = vpop.f32.mrf.mxu0
        %v2340 = vadd.f32 %v1643, %v2339
        %v2341 = vpop.f32.mrf.mxu0
        %v2342 = vadd.f32 %v1647, %v2341
        %v2343 = vpop.f32.mrf.mxu0
        %v2344 = vadd.f32 %v1643, %v2343
        %v2345 = vpop.f32.mrf.mxu0
        %v2346 = vadd.f32 %v1647, %v2345
        %2347 = vmatprep.mubr.bf16.mxu0 0
        %2348 = vmatmul.mubr.bf16.gmra.mxu0 %v1563
        %v2349 = vpop.f32.mrf.mxu0
        %v2350 = vadd.f32 %v1643, %v2349
        %v2351 = vpop.f32.mrf.mxu0
        %v2352 = vadd.f32 %v1647, %v2351
        %v2353 = vpop.f32.mrf.mxu0
        %v2354 = vadd.f32 %v1643, %v2353
        %v2355 = vpop.f32.mrf.mxu0
        %v2356 = vadd.f32 %v1647, %v2355
        %2357 = vmatprep.mubr.bf16.mxu0 0
        %2358 = vmatmul.mubr.bf16.gmra.mxu0 %v1564
        %v2359 = vpop.f32.mrf.mxu0
        %v2360 = vadd.f32 %v1643, %v2359
        %v2361 = vpop.f32.mrf.mxu0
        %v2362 = vadd.f32 %v1647, %v2361
        %v2363 = vpop.f32.mrf.mxu0
        %v2364 = vadd.f32 %v1643, %v2363
        %v2365 = vpop.f32.mrf.mxu0
        %v2366 = vadd.f32 %v1647, %v2365
        %2367 = vmatprep.mubr.bf16.mxu0 0
        %2368 = vmatmul.mubr.bf16.gmra.mxu0 %v1565
        %v2369 = vpop.f32.mrf.mxu0
        %v2370 = vadd.f32 %v1643, %v2369
        %v2371 = vpop.f32.mrf.mxu0
        %v2372 = vadd.f32 %v1647, %v2371
        %v2373 = vpop.f32.mrf.mxu0
        %v2374 = vadd.f32 %v1643, %v2373
        %v2375 = vpop.f32.mrf.mxu0
        %v2376 = vadd.f32 %v1647, %v2375
        %2377 = vdwg.mxu0
        %2378 = vmatprep.subr.bf16.mxu0 %v1925
        %2379 = vmatpush1.bf16.msra.mxu0 %v1924
        %2380 = vmatprep.subr.bf16.mxu0 %v1917
        %2381 = vmatpush1.bf16.msra.mxu0 %v1916
        %2382 = vmatprep.subr.bf16.mxu0 %v1909
        %2383 = vmatpush1.bf16.msra.mxu0 %v1908
        %2384 = vmatprep.subr.bf16.mxu0 %v1901
        %2385 = vmatpush1.bf16.msra.mxu0 %v1900
        %2386 = vmatprep.subr.bf16.mxu0 %v1893
        %2387 = vmatpush1.bf16.msra.mxu0 %v1892
        %2388 = vmatprep.subr.bf16.mxu0 %v1885
        %2389 = vmatpush1.bf16.msra.mxu0 %v1884
        %2390 = vmatprep.subr.bf16.mxu0 %v1877
        %2391 = vmatpush1.bf16.msra.mxu0 %v1876
        %2392 = vmatprep.subr.bf16.mxu0 %v1869
        %2393 = vmatpush1.bf16.msra.mxu0 %v1868
        %2394 = vmatprep.subr.bf16.mxu0 0
        %2395 = vmatpush2.bf16.msra.mxu0 0
        %2396 = vmatprep.subr.bf16.mxu0 0
        %2397 = vmatpush2.bf16.msra.mxu0 0
        %2398 = vmatprep.subr.bf16.mxu0 0
        %2399 = vmatpush2.bf16.msra.mxu0 0
        %2400 = vmatprep.subr.bf16.mxu0 0
        %2401 = vmatpush2.bf16.msra.mxu0 0
        %2402 = vmatprep.subr.bf16.mxu0 0
        %2403 = vmatpush2.bf16.msra.mxu0 0
        %2404 = vmatprep.subr.bf16.mxu0 0
        %2405 = vmatpush2.bf16.msra.mxu0 0
        %2406 = vmatprep.subr.bf16.mxu0 0
        %2407 = vmatpush2.bf16.msra.mxu0 0
        %2408 = vmatprep.subr.bf16.mxu0 0
        %2409 = vmatpush2.bf16.msra.mxu0 0
        %2410 = vmatprep.mubr.bf16.mxu0 0
        %2411 = vmatmul.mubr.bf16.gmra.mxu0 %v1550
        %v2412 = vpop.f32.mrf.mxu0
        %v2413 = vadd.f32 %v1651, %v2412
        %v2414 = vpop.f32.mrf.mxu0
        %v2415 = vadd.f32 %v1655, %v2414
        %v2416 = vpop.f32.mrf.mxu0
        %v2417 = vadd.f32 %v1651, %v2416
        %v2418 = vpop.f32.mrf.mxu0
        %v2419 = vadd.f32 %v1655, %v2418
        %2420 = vmatprep.mubr.bf16.mxu0 0
        %2421 = vmatmul.mubr.bf16.gmra.mxu0 %v1551
        %v2422 = vpop.f32.mrf.mxu0
        %v2423 = vadd.f32 %v1651, %v2422
        %v2424 = vpop.f32.mrf.mxu0
        %v2425 = vadd.f32 %v1655, %v2424
        %v2426 = vpop.f32.mrf.mxu0
        %v2427 = vadd.f32 %v1651, %v2426
        %v2428 = vpop.f32.mrf.mxu0
        %v2429 = vadd.f32 %v1655, %v2428
        %2430 = vmatprep.mubr.bf16.mxu0 0
        %2431 = vmatmul.mubr.bf16.gmra.mxu0 %v1552
        %v2432 = vpop.f32.mrf.mxu0
        %v2433 = vadd.f32 %v1651, %v2432
        %v2434 = vpop.f32.mrf.mxu0
        %v2435 = vadd.f32 %v1655, %v2434
        %v2436 = vpop.f32.mrf.mxu0
        %v2437 = vadd.f32 %v1651, %v2436
        %v2438 = vpop.f32.mrf.mxu0
        %v2439 = vadd.f32 %v1655, %v2438
        %2440 = vmatprep.mubr.bf16.mxu0 0
        %2441 = vmatmul.mubr.bf16.gmra.mxu0 %v1553
        %v2442 = vpop.f32.mrf.mxu0
        %v2443 = vadd.f32 %v1651, %v2442
        %v2444 = vpop.f32.mrf.mxu0
        %v2445 = vadd.f32 %v1655, %v2444
        %v2446 = vpop.f32.mrf.mxu0
        %v2447 = vadd.f32 %v1651, %v2446
        %v2448 = vpop.f32.mrf.mxu0
        %v2449 = vadd.f32 %v1655, %v2448
        %2450 = vmatprep.mubr.bf16.mxu0 0
        %2451 = vmatmul.mubr.bf16.gmra.mxu0 %v1554
        %v2452 = vpop.f32.mrf.mxu0
        %v2453 = vadd.f32 %v1651, %v2452
        %v2454 = vpop.f32.mrf.mxu0
        %v2455 = vadd.f32 %v1655, %v2454
        %v2456 = vpop.f32.mrf.mxu0
        %v2457 = vadd.f32 %v1651, %v2456
        %v2458 = vpop.f32.mrf.mxu0
        %v2459 = vadd.f32 %v1655, %v2458
        %2460 = vmatprep.mubr.bf16.mxu0 0
        %2461 = vmatmul.mubr.bf16.gmra.mxu0 %v1555
        %v2462 = vpop.f32.mrf.mxu0
        %v2463 = vadd.f32 %v1651, %v2462
        %v2464 = vpop.f32.mrf.mxu0
        %v2465 = vadd.f32 %v1655, %v2464
        %v2466 = vpop.f32.mrf.mxu0
        %v2467 = vadd.f32 %v1651, %v2466
        %v2468 = vpop.f32.mrf.mxu0
        %v2469 = vadd.f32 %v1655, %v2468
        %2470 = vmatprep.mubr.bf16.mxu0 0
        %2471 = vmatmul.mubr.bf16.gmra.mxu0 %v1556
        %v2472 = vpop.f32.mrf.mxu0
        %v2473 = vadd.f32 %v1651, %v2472
        %v2474 = vpop.f32.mrf.mxu0
        %v2475 = vadd.f32 %v1655, %v2474
        %v2476 = vpop.f32.mrf.mxu0
        %v2477 = vadd.f32 %v1651, %v2476
        %v2478 = vpop.f32.mrf.mxu0
        %v2479 = vadd.f32 %v1655, %v2478
        %2480 = vmatprep.mubr.bf16.mxu0 0
        %2481 = vmatmul.mubr.bf16.gmra.mxu0 %v1557
        %v2482 = vpop.f32.mrf.mxu0
        %v2483 = vadd.f32 %v1651, %v2482
        %v2484 = vpop.f32.mrf.mxu0
        %v2485 = vadd.f32 %v1655, %v2484
        %v2486 = vpop.f32.mrf.mxu0
        %v2487 = vadd.f32 %v1651, %v2486
        %v2488 = vpop.f32.mrf.mxu0
        %v2489 = vadd.f32 %v1655, %v2488
        %2490 = vmatprep.mubr.bf16.mxu0 0
        %2491 = vmatmul.mubr.bf16.gmra.mxu0 %v1558
        %v2492 = vpop.f32.mrf.mxu0
        %v2493 = vadd.f32 %v1651, %v2492
        %v2494 = vpop.f32.mrf.mxu0
        %v2495 = vadd.f32 %v1655, %v2494
        %v2496 = vpop.f32.mrf.mxu0
        %v2497 = vadd.f32 %v1651, %v2496
        %v2498 = vpop.f32.mrf.mxu0
        %v2499 = vadd.f32 %v1655, %v2498
        %2500 = vmatprep.mubr.bf16.mxu0 0
        %2501 = vmatmul.mubr.bf16.gmra.mxu0 %v1559
        %v2502 = vpop.f32.mrf.mxu0
        %v2503 = vadd.f32 %v1651, %v2502
        %v2504 = vpop.f32.mrf.mxu0
        %v2505 = vadd.f32 %v1655, %v2504
        %v2506 = vpop.f32.mrf.mxu0
        %v2507 = vadd.f32 %v1651, %v2506
        %v2508 = vpop.f32.mrf.mxu0
        %v2509 = vadd.f32 %v1655, %v2508
        %2510 = vmatprep.mubr.bf16.mxu0 0
        %2511 = vmatmul.mubr.bf16.gmra.mxu0 %v1560
        %v2512 = vpop.f32.mrf.mxu0
        %v2513 = vadd.f32 %v1651, %v2512
        %v2514 = vpop.f32.mrf.mxu0
        %v2515 = vadd.f32 %v1655, %v2514
        %v2516 = vpop.f32.mrf.mxu0
        %v2517 = vadd.f32 %v1651, %v2516
        %v2518 = vpop.f32.mrf.mxu0
        %v2519 = vadd.f32 %v1655, %v2518
        %2520 = vmatprep.mubr.bf16.mxu0 0
        %2521 = vmatmul.mubr.bf16.gmra.mxu0 %v1561
        %v2522 = vpop.f32.mrf.mxu0
        %v2523 = vadd.f32 %v1651, %v2522
        %v2524 = vpop.f32.mrf.mxu0
        %v2525 = vadd.f32 %v1655, %v2524
        %v2526 = vpop.f32.mrf.mxu0
        %v2527 = vadd.f32 %v1651, %v2526
        %v2528 = vpop.f32.mrf.mxu0
        %v2529 = vadd.f32 %v1655, %v2528
        %2530 = vmatprep.mubr.bf16.mxu0 0
        %2531 = vmatmul.mubr.bf16.gmra.mxu0 %v1562
        %v2532 = vpop.f32.mrf.mxu0
        %v2533 = vadd.f32 %v1651, %v2532
        %v2534 = vpop.f32.mrf.mxu0
        %v2535 = vadd.f32 %v1655, %v2534
        %v2536 = vpop.f32.mrf.mxu0
        %v2537 = vadd.f32 %v1651, %v2536
        %v2538 = vpop.f32.mrf.mxu0
        %v2539 = vadd.f32 %v1655, %v2538
        %2540 = vmatprep.mubr.bf16.mxu0 0
        %2541 = vmatmul.mubr.bf16.gmra.mxu0 %v1563
        %v2542 = vpop.f32.mrf.mxu0
        %v2543 = vadd.f32 %v1651, %v2542
        %v2544 = vpop.f32.mrf.mxu0
        %v2545 = vadd.f32 %v1655, %v2544
        %v2546 = vpop.f32.mrf.mxu0
        %v2547 = vadd.f32 %v1651, %v2546
        %v2548 = vpop.f32.mrf.mxu0
        %v2549 = vadd.f32 %v1655, %v2548
        %2550 = vmatprep.mubr.bf16.mxu0 0
        %2551 = vmatmul.mubr.bf16.gmra.mxu0 %v1564
        %v2552 = vpop.f32.mrf.mxu0
        %v2553 = vadd.f32 %v1651, %v2552
        %v2554 = vpop.f32.mrf.mxu0
        %v2555 = vadd.f32 %v1655, %v2554
        %v2556 = vpop.f32.mrf.mxu0
        %v2557 = vadd.f32 %v1651, %v2556
        %v2558 = vpop.f32.mrf.mxu0
        %v2559 = vadd.f32 %v1655, %v2558
        %2560 = vmatprep.mubr.bf16.mxu0 0
        %2561 = vmatmul.mubr.bf16.gmra.mxu0 %v1565
        %v2562 = vpop.f32.mrf.mxu0
        %v2563 = vadd.f32 %v1651, %v2562
        %v2564 = vpop.f32.mrf.mxu0
        %v2565 = vadd.f32 %v1655, %v2564
        %v2566 = vpop.f32.mrf.mxu0
        %v2567 = vadd.f32 %v1651, %v2566
        %v2568 = vpop.f32.mrf.mxu0
        %v2569 = vadd.f32 %v1655, %v2568
        %2570 = vdwg.mxu0
        %2571 = vmatprep.subr.bf16.mxu0 %v1927
        %2572 = vmatpush1.bf16.msra.mxu0 %v1926
        %2573 = vmatprep.subr.bf16.mxu0 %v1919
        %2574 = vmatpush1.bf16.msra.mxu0 %v1918
        %2575 = vmatprep.subr.bf16.mxu0 %v1911
        %2576 = vmatpush1.bf16.msra.mxu0 %v1910
        %2577 = vmatprep.subr.bf16.mxu0 %v1903
        %2578 = vmatpush1.bf16.msra.mxu0 %v1902
        %2579 = vmatprep.subr.bf16.mxu0 %v1895
        %2580 = vmatpush1.bf16.msra.mxu0 %v1894
        %2581 = vmatprep.subr.bf16.mxu0 %v1887
        %2582 = vmatpush1.bf16.msra.mxu0 %v1886
        %2583 = vmatprep.subr.bf16.mxu0 %v1879
        %2584 = vmatpush1.bf16.msra.mxu0 %v1878
        %2585 = vmatprep.subr.bf16.mxu0 %v1871
        %2586 = vmatpush1.bf16.msra.mxu0 %v1870
        %2587 = vmatprep.subr.bf16.mxu0 0
        %2588 = vmatpush2.bf16.msra.mxu0 0
        %2589 = vmatprep.subr.bf16.mxu0 0
        %2590 = vmatpush2.bf16.msra.mxu0 0
        %2591 = vmatprep.subr.bf16.mxu0 0
        %2592 = vmatpush2.bf16.msra.mxu0 0
        %2593 = vmatprep.subr.bf16.mxu0 0
        %2594 = vmatpush2.bf16.msra.mxu0 0
        %2595 = vmatprep.subr.bf16.mxu0 0
        %2596 = vmatpush2.bf16.msra.mxu0 0
        %2597 = vmatprep.subr.bf16.mxu0 0
        %2598 = vmatpush2.bf16.msra.mxu0 0
        %2599 = vmatprep.subr.bf16.mxu0 0
        %2600 = vmatpush2.bf16.msra.mxu0 0
        %2601 = vmatprep.subr.bf16.mxu0 0
        %2602 = vmatpush2.bf16.msra.mxu0 0
        %2603 = vmatprep.mubr.bf16.mxu0 0
        %2604 = vmatmul.mubr.bf16.gmra.mxu0 %v1550
        %v2605 = vpop.f32.mrf.mxu0
        %v2606 = vadd.f32 %v1659, %v2605
        %v2607 = vpop.f32.mrf.mxu0
        %v2608 = vadd.f32 %v1663, %v2607
        %v2609 = vpop.f32.mrf.mxu0
        %v2610 = vadd.f32 %v1659, %v2609
        %v2611 = vpop.f32.mrf.mxu0
        %v2612 = vadd.f32 %v1663, %v2611
        %2613 = vmatprep.mubr.bf16.mxu0 0
        %2614 = vmatmul.mubr.bf16.gmra.mxu0 %v1551
        %v2615 = vpop.f32.mrf.mxu0
        %v2616 = vadd.f32 %v1659, %v2615
        %v2617 = vpop.f32.mrf.mxu0
        %v2618 = vadd.f32 %v1663, %v2617
        %v2619 = vpop.f32.mrf.mxu0
        %v2620 = vadd.f32 %v1659, %v2619
        %v2621 = vpop.f32.mrf.mxu0
        %v2622 = vadd.f32 %v1663, %v2621
        %2623 = vmatprep.mubr.bf16.mxu0 0
        %2624 = vmatmul.mubr.bf16.gmra.mxu0 %v1552
        %v2625 = vpop.f32.mrf.mxu0
        %v2626 = vadd.f32 %v1659, %v2625
        %v2627 = vpop.f32.mrf.mxu0
        %v2628 = vadd.f32 %v1663, %v2627
        %v2629 = vpop.f32.mrf.mxu0
        %v2630 = vadd.f32 %v1659, %v2629
        %v2631 = vpop.f32.mrf.mxu0
        %v2632 = vadd.f32 %v1663, %v2631
        %2633 = vmatprep.mubr.bf16.mxu0 0
        %2634 = vmatmul.mubr.bf16.gmra.mxu0 %v1553
        %v2635 = vpop.f32.mrf.mxu0
        %v2636 = vadd.f32 %v1659, %v2635
        %v2637 = vpop.f32.mrf.mxu0
        %v2638 = vadd.f32 %v1663, %v2637
        %v2639 = vpop.f32.mrf.mxu0
        %v2640 = vadd.f32 %v1659, %v2639
        %v2641 = vpop.f32.mrf.mxu0
        %v2642 = vadd.f32 %v1663, %v2641
        %2643 = vmatprep.mubr.bf16.mxu0 0
        %2644 = vmatmul.mubr.bf16.gmra.mxu0 %v1554
        %v2645 = vpop.f32.mrf.mxu0
        %v2646 = vadd.f32 %v1659, %v2645
        %v2647 = vpop.f32.mrf.mxu0
        %v2648 = vadd.f32 %v1663, %v2647
        %v2649 = vpop.f32.mrf.mxu0
        %v2650 = vadd.f32 %v1659, %v2649
        %v2651 = vpop.f32.mrf.mxu0
        %v2652 = vadd.f32 %v1663, %v2651
        %2653 = vmatprep.mubr.bf16.mxu0 0
        %2654 = vmatmul.mubr.bf16.gmra.mxu0 %v1555
        %v2655 = vpop.f32.mrf.mxu0
        %v2656 = vadd.f32 %v1659, %v2655
        %v2657 = vpop.f32.mrf.mxu0
        %v2658 = vadd.f32 %v1663, %v2657
        %v2659 = vpop.f32.mrf.mxu0
        %v2660 = vadd.f32 %v1659, %v2659
        %v2661 = vpop.f32.mrf.mxu0
        %v2662 = vadd.f32 %v1663, %v2661
        %2663 = vmatprep.mubr.bf16.mxu0 0
        %2664 = vmatmul.mubr.bf16.gmra.mxu0 %v1556
        %v2665 = vpop.f32.mrf.mxu0
        %v2666 = vadd.f32 %v1659, %v2665
        %v2667 = vpop.f32.mrf.mxu0
        %v2668 = vadd.f32 %v1663, %v2667
        %v2669 = vpop.f32.mrf.mxu0
        %v2670 = vadd.f32 %v1659, %v2669
        %v2671 = vpop.f32.mrf.mxu0
        %v2672 = vadd.f32 %v1663, %v2671
        %2673 = vmatprep.mubr.bf16.mxu0 0
        %2674 = vmatmul.mubr.bf16.gmra.mxu0 %v1557
        %v2675 = vpop.f32.mrf.mxu0
        %v2676 = vadd.f32 %v1659, %v2675
        %v2677 = vpop.f32.mrf.mxu0
        %v2678 = vadd.f32 %v1663, %v2677
        %v2679 = vpop.f32.mrf.mxu0
        %v2680 = vadd.f32 %v1659, %v2679
        %v2681 = vpop.f32.mrf.mxu0
        %v2682 = vadd.f32 %v1663, %v2681
        %2683 = vmatprep.mubr.bf16.mxu0 0
        %2684 = vmatmul.mubr.bf16.gmra.mxu0 %v1558
        %v2685 = vpop.f32.mrf.mxu0
        %v2686 = vadd.f32 %v1659, %v2685
        %v2687 = vpop.f32.mrf.mxu0
        %v2688 = vadd.f32 %v1663, %v2687
        %v2689 = vpop.f32.mrf.mxu0
        %v2690 = vadd.f32 %v1659, %v2689
        %v2691 = vpop.f32.mrf.mxu0
        %v2692 = vadd.f32 %v1663, %v2691
        %2693 = vmatprep.mubr.bf16.mxu0 0
        %2694 = vmatmul.mubr.bf16.gmra.mxu0 %v1559
        %v2695 = vpop.f32.mrf.mxu0
        %v2696 = vadd.f32 %v1659, %v2695
        %v2697 = vpop.f32.mrf.mxu0
        %v2698 = vadd.f32 %v1663, %v2697
        %v2699 = vpop.f32.mrf.mxu0
        %v2700 = vadd.f32 %v1659, %v2699
        %v2701 = vpop.f32.mrf.mxu0
        %v2702 = vadd.f32 %v1663, %v2701
        %2703 = vmatprep.mubr.bf16.mxu0 0
        %2704 = vmatmul.mubr.bf16.gmra.mxu0 %v1560
        %v2705 = vpop.f32.mrf.mxu0
        %v2706 = vadd.f32 %v1659, %v2705
        %v2707 = vpop.f32.mrf.mxu0
        %v2708 = vadd.f32 %v1663, %v2707
        %v2709 = vpop.f32.mrf.mxu0
        %v2710 = vadd.f32 %v1659, %v2709
        %v2711 = vpop.f32.mrf.mxu0
        %v2712 = vadd.f32 %v1663, %v2711
        %2713 = vmatprep.mubr.bf16.mxu0 0
        %2714 = vmatmul.mubr.bf16.gmra.mxu0 %v1561
        %v2715 = vpop.f32.mrf.mxu0
        %v2716 = vadd.f32 %v1659, %v2715
        %v2717 = vpop.f32.mrf.mxu0
        %v2718 = vadd.f32 %v1663, %v2717
        %v2719 = vpop.f32.mrf.mxu0
        %v2720 = vadd.f32 %v1659, %v2719
        %v2721 = vpop.f32.mrf.mxu0
        %v2722 = vadd.f32 %v1663, %v2721
        %2723 = vmatprep.mubr.bf16.mxu0 0
        %2724 = vmatmul.mubr.bf16.gmra.mxu0 %v1562
        %v2725 = vpop.f32.mrf.mxu0
        %v2726 = vadd.f32 %v1659, %v2725
        %v2727 = vpop.f32.mrf.mxu0
        %v2728 = vadd.f32 %v1663, %v2727
        %v2729 = vpop.f32.mrf.mxu0
        %v2730 = vadd.f32 %v1659, %v2729
        %v2731 = vpop.f32.mrf.mxu0
        %v2732 = vadd.f32 %v1663, %v2731
        %2733 = vmatprep.mubr.bf16.mxu0 0
        %2734 = vmatmul.mubr.bf16.gmra.mxu0 %v1563
        %v2735 = vpop.f32.mrf.mxu0
        %v2736 = vadd.f32 %v1659, %v2735
        %v2737 = vpop.f32.mrf.mxu0
        %v2738 = vadd.f32 %v1663, %v2737
        %v2739 = vpop.f32.mrf.mxu0
        %v2740 = vadd.f32 %v1659, %v2739
        %v2741 = vpop.f32.mrf.mxu0
        %v2742 = vadd.f32 %v1663, %v2741
        %2743 = vmatprep.mubr.bf16.mxu0 0
        %2744 = vmatmul.mubr.bf16.gmra.mxu0 %v1564
        %v2745 = vpop.f32.mrf.mxu0
        %v2746 = vadd.f32 %v1659, %v2745
        %v2747 = vpop.f32.mrf.mxu0
        %v2748 = vadd.f32 %v1663, %v2747
        %v2749 = vpop.f32.mrf.mxu0
        %v2750 = vadd.f32 %v1659, %v2749
        %v2751 = vpop.f32.mrf.mxu0
        %v2752 = vadd.f32 %v1663, %v2751
        %2753 = vmatprep.mubr.bf16.mxu0 0
        %2754 = vmatmul.mubr.bf16.gmra.mxu0 %v1565
        %v2755 = vpop.f32.mrf.mxu0
        %v2756 = vadd.f32 %v1659, %v2755
        %v2757 = vpop.f32.mrf.mxu0
        %v2758 = vadd.f32 %v1663, %v2757
        %v2759 = vpop.f32.mrf.mxu0
        %v2760 = vadd.f32 %v1659, %v2759
        %v2761 = vpop.f32.mrf.mxu0
        %v2762 = vadd.f32 %v1663, %v2761
        %2763 = vdwg.mxu0
        %v2764 = vld [vmem:[#allocation2] sm:$0xff]
        %v2765 = vmax.f32 %v2027, %v2031
        %v2766 = vmax.f32 %v2765, %v2037
        %v2767 = vmax.f32 %v2766, %v2041
        %v2768 = vmax.f32 %v2767, %v2047
        %v2769 = vmax.f32 %v2768, %v2051
        %v2770 = vmax.f32 %v2769, %v2057
        %v2771 = vmax.f32 %v2770, %v2061
        %v2772 = vmax.f32 %v2771, %v2067
        %v2773 = vmax.f32 %v2772, %v2071
        %v2774 = vmax.f32 %v2773, %v2077
        %v2775 = vmax.f32 %v2774, %v2081
        %v2776 = vmax.f32 %v2775, %v2087
        %v2777 = vmax.f32 %v2776, %v2091
        %v2778 = vmax.f32 %v2777, %v2097
        %v2779 = vmax.f32 %v2778, %v2101
        %v2780 = vmax.f32 %v2779, %v2107
        %v2781 = vmax.f32 %v2780, %v2111
        %v2782 = vmax.f32 %v2781, %v2117
        %v2783 = vmax.f32 %v2782, %v2121
        %v2784 = vmax.f32 %v2783, %v2127
        %v2785 = vmax.f32 %v2784, %v2131
        %v2786 = vmax.f32 %v2785, %v2137
        %v2787 = vmax.f32 %v2786, %v2141
        %v2788 = vmax.f32 %v2787, %v2147
        %v2789 = vmax.f32 %v2788, %v2151
        %v2790 = vmax.f32 %v2789, %v2157
        %v2791 = vmax.f32 %v2790, %v2161
        %v2792 = vmax.f32 %v2791, %v2167
        %v2793 = vmax.f32 %v2792, %v2171
        %v2794 = vmax.f32 %v2793, %v2177
        %v2795 = vmax.f32 %v2794, %v2181
        %v2796 = vrot.slane %v2795, 4
        %v2797 = vmax.f32 %v2795, %v2796
        %v2798 = vrot.slane %v2797, 2
        %v2799 = vmax.f32 %v2797, %v2798
        %v2800 = vrot.slane %v2799, 1
        %v2801 = vmax.f32 %v2799, %v2800
        %v2802 = vmax.f32 %v2029, %v2033
        %v2803 = vmax.f32 %v2802, %v2039
        %v2804 = vmax.f32 %v2803, %v2043
        %v2805 = vmax.f32 %v2804, %v2049
        %v2806 = vmax.f32 %v2805, %v2053
        %v2807 = vmax.f32 %v2806, %v2059
        %v2808 = vmax.f32 %v2807, %v2063
        %v2809 = vmax.f32 %v2808, %v2069
        %v2810 = vmax.f32 %v2809, %v2073
        %v2811 = vmax.f32 %v2810, %v2079
        %v2812 = vmax.f32 %v2811, %v2083
        %v2813 = vmax.f32 %v2812, %v2089
        %v2814 = vmax.f32 %v2813, %v2093
        %v2815 = vmax.f32 %v2814, %v2099
        %v2816 = vmax.f32 %v2815, %v2103
        %v2817 = vmax.f32 %v2816, %v2109
        %v2818 = vmax.f32 %v2817, %v2113
        %v2819 = vmax.f32 %v2818, %v2119
        %v2820 = vmax.f32 %v2819, %v2123
        %v2821 = vmax.f32 %v2820, %v2129
        %v2822 = vmax.f32 %v2821, %v2133
        %v2823 = vmax.f32 %v2822, %v2139
        %v2824 = vmax.f32 %v2823, %v2143
        %v2825 = vmax.f32 %v2824, %v2149
        %v2826 = vmax.f32 %v2825, %v2153
        %v2827 = vmax.f32 %v2826, %v2159
        %v2828 = vmax.f32 %v2827, %v2163
        %v2829 = vmax.f32 %v2828, %v2169
        %v2830 = vmax.f32 %v2829, %v2173
        %v2831 = vmax.f32 %v2830, %v2179
        %v2832 = vmax.f32 %v2831, %v2183
        %v2833 = vrot.slane %v2832, 4
        %v2834 = vmax.f32 %v2832, %v2833
        %v2835 = vrot.slane %v2834, 2
        %v2836 = vmax.f32 %v2834, %v2835
        %v2837 = vrot.slane %v2836, 1
        %v2838 = vmax.f32 %v2836, %v2837
        %v2839 = vmax.f32 %v2220, %v2224
        %v2840 = vmax.f32 %v2839, %v2230
        %v2841 = vmax.f32 %v2840, %v2234
        %v2842 = vmax.f32 %v2841, %v2240
        %v2843 = vmax.f32 %v2842, %v2244
        %v2844 = vmax.f32 %v2843, %v2250
        %v2845 = vmax.f32 %v2844, %v2254
        %v2846 = vmax.f32 %v2845, %v2260
        %v2847 = vmax.f32 %v2846, %v2264
        %v2848 = vmax.f32 %v2847, %v2270
        %v2849 = vmax.f32 %v2848, %v2274
        %v2850 = vmax.f32 %v2849, %v2280
        %v2851 = vmax.f32 %v2850, %v2284
        %v2852 = vmax.f32 %v2851, %v2290
        %v2853 = vmax.f32 %v2852, %v2294
        %v2854 = vmax.f32 %v2853, %v2300
        %v2855 = vmax.f32 %v2854, %v2304
        %v2856 = vmax.f32 %v2855, %v2310
        %v2857 = vmax.f32 %v2856, %v2314
        %v2858 = vmax.f32 %v2857, %v2320
        %v2859 = vmax.f32 %v2858, %v2324
        %v2860 = vmax.f32 %v2859, %v2330
        %v2861 = vmax.f32 %v2860, %v2334
        %v2862 = vmax.f32 %v2861, %v2340
        %v2863 = vmax.f32 %v2862, %v2344
        %v2864 = vmax.f32 %v2863, %v2350
        %v2865 = vmax.f32 %v2864, %v2354
        %v2866 = vmax.f32 %v2865, %v2360
        %v2867 = vmax.f32 %v2866, %v2364
        %v2868 = vmax.f32 %v2867, %v2370
        %v2869 = vmax.f32 %v2868, %v2374
        %v2870 = vrot.slane %v2869, 4
        %v2871 = vmax.f32 %v2869, %v2870
        %v2872 = vrot.slane %v2871, 2
        %v2873 = vmax.f32 %v2871, %v2872
        %v2874 = vrot.slane %v2873, 1
        %v2875 = vmax.f32 %v2873, %v2874
        %v2876 = vmax.f32 %v2222, %v2226
        %v2877 = vmax.f32 %v2876, %v2232
        %v2878 = vmax.f32 %v2877, %v2236
        %v2879 = vmax.f32 %v2878, %v2242
        %v2880 = vmax.f32 %v2879, %v2246
        %v2881 = vmax.f32 %v2880, %v2252
        %v2882 = vmax.f32 %v2881, %v2256
        %v2883 = vmax.f32 %v2882, %v2262
        %v2884 = vmax.f32 %v2883, %v2266
        %v2885 = vmax.f32 %v2884, %v2272
        %v2886 = vmax.f32 %v2885, %v2276
        %v2887 = vmax.f32 %v2886, %v2282
        %v2888 = vmax.f32 %v2887, %v2286
        %v2889 = vmax.f32 %v2888, %v2292
        %v2890 = vmax.f32 %v2889, %v2296
        %v2891 = vmax.f32 %v2890, %v2302
        %v2892 = vmax.f32 %v2891, %v2306
        %v2893 = vmax.f32 %v2892, %v2312
        %v2894 = vmax.f32 %v2893, %v2316
        %v2895 = vmax.f32 %v2894, %v2322
        %v2896 = vmax.f32 %v2895, %v2326
        %v2897 = vmax.f32 %v2896, %v2332
        %v2898 = vmax.f32 %v2897, %v2336
        %v2899 = vmax.f32 %v2898, %v2342
        %v2900 = vmax.f32 %v2899, %v2346
        %v2901 = vmax.f32 %v2900, %v2352
        %v2902 = vmax.f32 %v2901, %v2356
        %v2903 = vmax.f32 %v2902, %v2362
        %v2904 = vmax.f32 %v2903, %v2366
        %v2905 = vmax.f32 %v2904, %v2372
        %v2906 = vmax.f32 %v2905, %v2376
        %v2907 = vrot.slane %v2906, 4
        %v2908 = vmax.f32 %v2906, %v2907
        %v2909 = vrot.slane %v2908, 2
        %v2910 = vmax.f32 %v2908, %v2909
        %v2911 = vrot.slane %v2910, 1
        %v2912 = vmax.f32 %v2910, %v2911
        %v2913 = vmax.f32 %v2413, %v2417
        %v2914 = vmax.f32 %v2913, %v2423
        %v2915 = vmax.f32 %v2914, %v2427
        %v2916 = vmax.f32 %v2915, %v2433
        %v2917 = vmax.f32 %v2916, %v2437
        %v2918 = vmax.f32 %v2917, %v2443
        %v2919 = vmax.f32 %v2918, %v2447
        %v2920 = vmax.f32 %v2919, %v2453
        %v2921 = vmax.f32 %v2920, %v2457
        %v2922 = vmax.f32 %v2921, %v2463
        %v2923 = vmax.f32 %v2922, %v2467
        %v2924 = vmax.f32 %v2923, %v2473
        %v2925 = vmax.f32 %v2924, %v2477
        %v2926 = vmax.f32 %v2925, %v2483
        %v2927 = vmax.f32 %v2926, %v2487
        %v2928 = vmax.f32 %v2927, %v2493
        %v2929 = vmax.f32 %v2928, %v2497
        %v2930 = vmax.f32 %v2929, %v2503
        %v2931 = vmax.f32 %v2930, %v2507
        %v2932 = vmax.f32 %v2931, %v2513
        %v2933 = vmax.f32 %v2932, %v2517
        %v2934 = vmax.f32 %v2933, %v2523
        %v2935 = vmax.f32 %v2934, %v2527
        %v2936 = vmax.f32 %v2935, %v2533
        %v2937 = vmax.f32 %v2936, %v2537
        %v2938 = vmax.f32 %v2937, %v2543
        %v2939 = vmax.f32 %v2938, %v2547
        %v2940 = vmax.f32 %v2939, %v2553
        %v2941 = vmax.f32 %v2940, %v2557
        %v2942 = vmax.f32 %v2941, %v2563
        %v2943 = vmax.f32 %v2942, %v2567
        %v2944 = vrot.slane %v2943, 4
        %v2945 = vmax.f32 %v2943, %v2944
        %v2946 = vrot.slane %v2945, 2
        %v2947 = vmax.f32 %v2945, %v2946
        %v2948 = vrot.slane %v2947, 1
        %v2949 = vmax.f32 %v2947, %v2948
        %v2950 = vmax.f32 %v2415, %v2419
        %v2951 = vmax.f32 %v2950, %v2425
        %v2952 = vmax.f32 %v2951, %v2429
        %v2953 = vmax.f32 %v2952, %v2435
        %v2954 = vmax.f32 %v2953, %v2439
        %v2955 = vmax.f32 %v2954, %v2445
        %v2956 = vmax.f32 %v2955, %v2449
        %v2957 = vmax.f32 %v2956, %v2455
        %v2958 = vmax.f32 %v2957, %v2459
        %v2959 = vmax.f32 %v2958, %v2465
        %v2960 = vmax.f32 %v2959, %v2469
        %v2961 = vmax.f32 %v2960, %v2475
        %v2962 = vmax.f32 %v2961, %v2479
        %v2963 = vmax.f32 %v2962, %v2485
        %v2964 = vmax.f32 %v2963, %v2489
        %v2965 = vmax.f32 %v2964, %v2495
        %v2966 = vmax.f32 %v2965, %v2499
        %v2967 = vmax.f32 %v2966, %v2505
        %v2968 = vmax.f32 %v2967, %v2509
        %v2969 = vmax.f32 %v2968, %v2515
        %v2970 = vmax.f32 %v2969, %v2519
        %v2971 = vmax.f32 %v2970, %v2525
        %v2972 = vmax.f32 %v2971, %v2529
        %v2973 = vmax.f32 %v2972, %v2535
        %v2974 = vmax.f32 %v2973, %v2539
        %v2975 = vmax.f32 %v2974, %v2545
        %v2976 = vmax.f32 %v2975, %v2549
        %v2977 = vmax.f32 %v2976, %v2555
        %v2978 = vmax.f32 %v2977, %v2559
        %v2979 = vmax.f32 %v2978, %v2565
        %v2980 = vmax.f32 %v2979, %v2569
        %v2981 = vrot.slane %v2980, 4
        %v2982 = vmax.f32 %v2980, %v2981
        %v2983 = vrot.slane %v2982, 2
        %v2984 = vmax.f32 %v2982, %v2983
        %v2985 = vrot.slane %v2984, 1
        %v2986 = vmax.f32 %v2984, %v2985
        %v2987 = vmax.f32 %v2606, %v2610
        %v2988 = vmax.f32 %v2987, %v2616
        %v2989 = vmax.f32 %v2988, %v2620
        %v2990 = vmax.f32 %v2989, %v2626
        %v2991 = vmax.f32 %v2990, %v2630
        %v2992 = vmax.f32 %v2991, %v2636
        %v2993 = vmax.f32 %v2992, %v2640
        %v2994 = vmax.f32 %v2993, %v2646
        %v2995 = vmax.f32 %v2994, %v2650
        %v2996 = vmax.f32 %v2995, %v2656
        %v2997 = vmax.f32 %v2996, %v2660
        %v2998 = vmax.f32 %v2997, %v2666
        %v2999 = vmax.f32 %v2998, %v2670
        %v3000 = vmax.f32 %v2999, %v2676
        %v3001 = vmax.f32 %v3000, %v2680
        %v3002 = vmax.f32 %v3001, %v2686
        %v3003 = vmax.f32 %v3002, %v2690
        %v3004 = vmax.f32 %v3003, %v2696
        %v3005 = vmax.f32 %v3004, %v2700
        %v3006 = vmax.f32 %v3005, %v2706
        %v3007 = vmax.f32 %v3006, %v2710
        %v3008 = vmax.f32 %v3007, %v2716
        %v3009 = vmax.f32 %v3008, %v2720
        %v3010 = vmax.f32 %v3009, %v2726
        %v3011 = vmax.f32 %v3010, %v2730
        %v3012 = vmax.f32 %v3011, %v2736
        %v3013 = vmax.f32 %v3012, %v2740
        %v3014 = vmax.f32 %v3013, %v2746
        %v3015 = vmax.f32 %v3014, %v2750
        %v3016 = vmax.f32 %v3015, %v2756
        %v3017 = vmax.f32 %v3016, %v2760
        %v3018 = vrot.slane %v3017, 4
        %v3019 = vmax.f32 %v3017, %v3018
        %v3020 = vrot.slane %v3019, 2
        %v3021 = vmax.f32 %v3019, %v3020
        %v3022 = vrot.slane %v3021, 1
        %v3023 = vmax.f32 %v3021, %v3022
        %v3024 = vmax.f32 %v2608, %v2612
        %v3025 = vmax.f32 %v3024, %v2618
        %v3026 = vmax.f32 %v3025, %v2622
        %v3027 = vmax.f32 %v3026, %v2628
        %v3028 = vmax.f32 %v3027, %v2632
        %v3029 = vmax.f32 %v3028, %v2638
        %v3030 = vmax.f32 %v3029, %v2642
        %v3031 = vmax.f32 %v3030, %v2648
        %v3032 = vmax.f32 %v3031, %v2652
        %v3033 = vmax.f32 %v3032, %v2658
        %v3034 = vmax.f32 %v3033, %v2662
        %v3035 = vmax.f32 %v3034, %v2668
        %v3036 = vmax.f32 %v3035, %v2672
        %v3037 = vmax.f32 %v3036, %v2678
        %v3038 = vmax.f32 %v3037, %v2682
        %v3039 = vmax.f32 %v3038, %v2688
        %v3040 = vmax.f32 %v3039, %v2692
        %v3041 = vmax.f32 %v3040, %v2698
        %v3042 = vmax.f32 %v3041, %v2702
        %v3043 = vmax.f32 %v3042, %v2708
        %v3044 = vmax.f32 %v3043, %v2712
        %v3045 = vmax.f32 %v3044, %v2718
        %v3046 = vmax.f32 %v3045, %v2722
        %v3047 = vmax.f32 %v3046, %v2728
        %v3048 = vmax.f32 %v3047, %v2732
        %v3049 = vmax.f32 %v3048, %v2738
        %v3050 = vmax.f32 %v3049, %v2742
        %v3051 = vmax.f32 %v3050, %v2748
        %v3052 = vmax.f32 %v3051, %v2752
        %v3053 = vmax.f32 %v3052, %v2758
        %v3054 = vmax.f32 %v3053, %v2762
        %v3055 = vrot.slane %v3054, 4
        %v3056 = vmax.f32 %v3054, %v3055
        %v3057 = vrot.slane %v3056, 2
        %v3058 = vmax.f32 %v3056, %v3057
        %v3059 = vrot.slane %v3058, 1
        %v3060 = vmax.f32 %v3058, %v3059
        %v3069 = vcombine.low %v2801, %v2838
        %v3070 = vcombine.low %v2875, %v2912
        %v3071 = vcombine.low %v2949, %v2986
        %v3072 = vcombine.low %v3023, %v3060
        %v3074 = vunpack.c.l.s4 1966171168
        %v3075 = vunpack.c.0.s8 %v3074
        %v3076 = vlaneseq
        %v3077 = vshrl.u32 %v3076, 7
        %v3078 = vsub.s32 %v3075, %v3077
        %v3079 = vrot.slane %v3069, %v3078
        %v3081 = vunpack.c.l.s4 1966171168
        %v3082 = vunpack.c.0.s8 %v3081
        %v3083 = vlaneseq
        %v3084 = vshrl.u32 %v3083, 7
        %v3085 = vsub.s32 %v3082, %v3084
        %v3086 = vrot.slane %v3070, %v3085
        %v3088 = vunpack.c.l.s4 1966171168
        %v3089 = vunpack.c.0.s8 %v3088
        %v3090 = vlaneseq
        %v3091 = vshrl.u32 %v3090, 7
        %v3092 = vsub.s32 %v3089, %v3091
        %v3093 = vrot.slane %v3071, %v3092
        %v3095 = vunpack.c.l.s4 1966171168
        %v3096 = vunpack.c.0.s8 %v3095
        %v3097 = vlaneseq
        %v3098 = vshrl.u32 %v3097, 7
        %v3099 = vsub.s32 %v3096, %v3098
        %v3100 = vrot.slane %v3072, %v3099
        %v3101 = vcombine.low %v3079, %v3086
        %v3102 = vcombine.low %v3093, %v3100
        %v3104 = vunpack.c.l.s4 1966171168
        %v3105 = vunpack.c.0.s8 %v3104
        %v3106 = vlaneseq
        %v3107 = vshrl.u32 %v3106, 7
        %v3108 = vsub.s32 %v3105, %v3107
        %v3109 = vrot.slane %v3101, %v3108
        %v3111 = vunpack.c.l.s4 1966171168
        %v3112 = vunpack.c.0.s8 %v3111
        %v3113 = vlaneseq
        %v3114 = vshrl.u32 %v3113, 7
        %v3115 = vsub.s32 %v3112, %v3114
        %v3116 = vrot.slane %v3102, %v3115
        %v3117 = vcombine.low %v3109, %v3116
        %v3119 = vmax.f32 %v2764, %v3117
        %3120 = vst [vmem:[#allocation2] sm:$0xff] %v3119
        // Predicated region
        $region73: #{tpu_custom_call.1} parent=63 // pred_check
          %p3121 = pneg %p428
        $region74: #{tpu_custom_call.1} parent=63 // pred_check_branch
          %3123 = sbr.rel (%p3121) target = $region76
        $region75: #{tpu_custom_call.1} parent=63 // pred_region
          %v3124 = vld [vmem:[#allocation2] sm:$0xff]
          %v3126 = vlaneseq
          %v3127 = vshrl.u32 %v3126, 7
          %v3128 = vsub.s32 0, %v3127
          %v3129 = vrot.slane %v3124, %v3128
          %v3130 = vlaneseq
          %v3131 = vshrl.u32 %v3130, 7
          %v3132 = vsub.s32 1, %v3131
          %v3133 = vrot.slane %v3124, %v3132
          %v3134 = vlaneseq
          %v3135 = vshrl.u32 %v3134, 7
          %v3136 = vsub.s32 2, %v3135
          %v3137 = vrot.slane %v3124, %v3136
          %v3138 = vlaneseq
          %v3139 = vshrl.u32 %v3138, 7
          %v3140 = vsub.s32 3, %v3139
          %v3141 = vrot.slane %v3124, %v3140
          %v3142 = vlaneseq
          %v3143 = vshrl.u32 %v3142, 7
          %v3144 = vsub.s32 4, %v3143
          %v3145 = vrot.slane %v3124, %v3144
          %v3146 = vlaneseq
          %v3147 = vshrl.u32 %v3146, 7
          %v3148 = vsub.s32 5, %v3147
          %v3149 = vrot.slane %v3124, %v3148
          %v3150 = vlaneseq
          %v3151 = vshrl.u32 %v3150, 7
          %v3152 = vsub.s32 6, %v3151
          %v3153 = vrot.slane %v3124, %v3152
          %v3154 = vlaneseq
          %v3155 = vshrl.u32 %v3154, 7
          %v3156 = vsub.s32 7, %v3155
          %v3157 = vrot.slane %v3124, %v3156
          %v3166 = vpack.c.bf16 %v3129, %v3129
          %v3167 = vpack.c.bf16 %v3133, %v3133
          %v3168 = vpack.c.bf16 %v3137, %v3137
          %v3169 = vpack.c.bf16 %v3141, %v3141
          %v3170 = vpack.c.bf16 %v3145, %v3145
          %v3171 = vpack.c.bf16 %v3149, %v3149
          %v3172 = vpack.c.bf16 %v3153, %v3153
          %v3173 = vpack.c.bf16 %v3157, %v3157
          %v3174 = vld [vmem:[#allocation3] sm:$0xff]
          %v3175 = vld [vmem:[#allocation3 + $0x8] sm:$0xff]
          %v3176 = vld [vmem:[#allocation3 + $0x10] sm:$0xff]
          %v3177 = vld [vmem:[#allocation3 + $0x18] sm:$0xff]
          %v3178 = vld [vmem:[#allocation3 + $0x20] sm:$0xff]
          %v3179 = vld [vmem:[#allocation3 + $0x28] sm:$0xff]
          %v3180 = vld [vmem:[#allocation3 + $0x30] sm:$0xff]
          %v3181 = vld [vmem:[#allocation3 + $0x38] sm:$0xff]
          %v3182 = vld [vmem:[#allocation3 + $0x40] sm:$0xff]
          %v3183 = vld [vmem:[#allocation3 + $0x48] sm:$0xff]
          %v3184 = vld [vmem:[#allocation3 + $0x50] sm:$0xff]
          %v3185 = vld [vmem:[#allocation3 + $0x58] sm:$0xff]
          %v3186 = vld [vmem:[#allocation3 + $0x60] sm:$0xff]
          %v3187 = vld [vmem:[#allocation3 + $0x68] sm:$0xff]
          %v3188 = vld [vmem:[#allocation3 + $0x70] sm:$0xff]
          %v3189 = vld [vmem:[#allocation3 + $0x78] sm:$0xff]
          %v3190 = vld [vmem:[#allocation3 + $0x80] sm:$0xff]
          %v3191 = vld [vmem:[#allocation3 + $0x88] sm:$0xff]
          %v3192 = vld [vmem:[#allocation3 + $0x90] sm:$0xff]
          %v3193 = vld [vmem:[#allocation3 + $0x98] sm:$0xff]
          %v3194 = vld [vmem:[#allocation3 + $0xa0] sm:$0xff]
          %v3195 = vld [vmem:[#allocation3 + $0xa8] sm:$0xff]
          %v3196 = vld [vmem:[#allocation3 + $0xb0] sm:$0xff]
          %v3197 = vld [vmem:[#allocation3 + $0xb8] sm:$0xff]
          %v3198 = vld [vmem:[#allocation3 + $0xc0] sm:$0xff]
          %v3199 = vld [vmem:[#allocation3 + $0xc8] sm:$0xff]
          %v3200 = vld [vmem:[#allocation3 + $0xd0] sm:$0xff]
          %v3201 = vld [vmem:[#allocation3 + $0xd8] sm:$0xff]
          %v3202 = vld [vmem:[#allocation3 + $0xe0] sm:$0xff]
          %v3203 = vld [vmem:[#allocation3 + $0xe8] sm:$0xff]
          %v3204 = vld [vmem:[#allocation3 + $0xf0] sm:$0xff]
          %v3205 = vld [vmem:[#allocation3 + $0xf8] sm:$0xff]
          %v3206 = vld [vmem:[#allocation3 + $0x100] sm:$0xff]
          %v3207 = vld [vmem:[#allocation3 + $0x108] sm:$0xff]
          %v3208 = vld [vmem:[#allocation3 + $0x110] sm:$0xff]
          %v3209 = vld [vmem:[#allocation3 + $0x118] sm:$0xff]
          %v3210 = vld [vmem:[#allocation3 + $0x120] sm:$0xff]
          %v3211 = vld [vmem:[#allocation3 + $0x128] sm:$0xff]
          %v3212 = vld [vmem:[#allocation3 + $0x130] sm:$0xff]
          %v3213 = vld [vmem:[#allocation3 + $0x138] sm:$0xff]
          %v3214 = vld [vmem:[#allocation3 + $0x140] sm:$0xff]
          %v3215 = vld [vmem:[#allocation3 + $0x148] sm:$0xff]
          %v3216 = vld [vmem:[#allocation3 + $0x150] sm:$0xff]
          %v3217 = vld [vmem:[#allocation3 + $0x158] sm:$0xff]
          %v3218 = vld [vmem:[#allocation3 + $0x160] sm:$0xff]
          %v3219 = vld [vmem:[#allocation3 + $0x168] sm:$0xff]
          %v3220 = vld [vmem:[#allocation3 + $0x170] sm:$0xff]
          %v3221 = vld [vmem:[#allocation3 + $0x178] sm:$0xff]
          %v3222 = vld [vmem:[#allocation3 + $0x180] sm:$0xff]
          %v3223 = vld [vmem:[#allocation3 + $0x188] sm:$0xff]
          %v3224 = vld [vmem:[#allocation3 + $0x190] sm:$0xff]
          %v3225 = vld [vmem:[#allocation3 + $0x198] sm:$0xff]
          %v3226 = vld [vmem:[#allocation3 + $0x1a0] sm:$0xff]
          %v3227 = vld [vmem:[#allocation3 + $0x1a8] sm:$0xff]
          %v3228 = vld [vmem:[#allocation3 + $0x1b0] sm:$0xff]
          %v3229 = vld [vmem:[#allocation3 + $0x1b8] sm:$0xff]
          %v3230 = vld [vmem:[#allocation3 + $0x1c0] sm:$0xff]
          %v3231 = vld [vmem:[#allocation3 + $0x1c8] sm:$0xff]
          %v3232 = vld [vmem:[#allocation3 + $0x1d0] sm:$0xff]
          %v3233 = vld [vmem:[#allocation3 + $0x1d8] sm:$0xff]
          %v3234 = vld [vmem:[#allocation3 + $0x1e0] sm:$0xff]
          %v3235 = vld [vmem:[#allocation3 + $0x1e8] sm:$0xff]
          %v3236 = vld [vmem:[#allocation3 + $0x1f0] sm:$0xff]
          %v3237 = vld [vmem:[#allocation3 + $0x1f8] sm:$0xff]
          %v3238 = vld [vmem:[#allocation3 + $0x200] sm:$0xff]
          %v3239 = vld [vmem:[#allocation3 + $0x208] sm:$0xff]
          %v3240 = vld [vmem:[#allocation3 + $0x210] sm:$0xff]
          %v3241 = vld [vmem:[#allocation3 + $0x218] sm:$0xff]
          %v3242 = vld [vmem:[#allocation3 + $0x220] sm:$0xff]
          %v3243 = vld [vmem:[#allocation3 + $0x228] sm:$0xff]
          %v3244 = vld [vmem:[#allocation3 + $0x230] sm:$0xff]
          %v3245 = vld [vmem:[#allocation3 + $0x238] sm:$0xff]
          %v3246 = vld [vmem:[#allocation3 + $0x240] sm:$0xff]
          %v3247 = vld [vmem:[#allocation3 + $0x248] sm:$0xff]
          %v3248 = vld [vmem:[#allocation3 + $0x250] sm:$0xff]
          %v3249 = vld [vmem:[#allocation3 + $0x258] sm:$0xff]
          %v3250 = vld [vmem:[#allocation3 + $0x260] sm:$0xff]
          %v3251 = vld [vmem:[#allocation3 + $0x268] sm:$0xff]
          %v3252 = vld [vmem:[#allocation3 + $0x270] sm:$0xff]
          %v3253 = vld [vmem:[#allocation3 + $0x278] sm:$0xff]
          %v3254 = vld [vmem:[#allocation3 + $0x280] sm:$0xff]
          %v3255 = vld [vmem:[#allocation3 + $0x288] sm:$0xff]
          %v3256 = vld [vmem:[#allocation3 + $0x290] sm:$0xff]
          %v3257 = vld [vmem:[#allocation3 + $0x298] sm:$0xff]
          %v3258 = vld [vmem:[#allocation3 + $0x2a0] sm:$0xff]
          %v3259 = vld [vmem:[#allocation3 + $0x2a8] sm:$0xff]
          %v3260 = vld [vmem:[#allocation3 + $0x2b0] sm:$0xff]
          %v3261 = vld [vmem:[#allocation3 + $0x2b8] sm:$0xff]
          %v3262 = vld [vmem:[#allocation3 + $0x2c0] sm:$0xff]
          %v3263 = vld [vmem:[#allocation3 + $0x2c8] sm:$0xff]
          %v3264 = vld [vmem:[#allocation3 + $0x2d0] sm:$0xff]
          %v3265 = vld [vmem:[#allocation3 + $0x2d8] sm:$0xff]
          %v3266 = vld [vmem:[#allocation3 + $0x2e0] sm:$0xff]
          %v3267 = vld [vmem:[#allocation3 + $0x2e8] sm:$0xff]
          %v3268 = vld [vmem:[#allocation3 + $0x2f0] sm:$0xff]
          %v3269 = vld [vmem:[#allocation3 + $0x2f8] sm:$0xff]
          %v3270 = vld [vmem:[#allocation3 + $0x300] sm:$0xff]
          %v3271 = vld [vmem:[#allocation3 + $0x308] sm:$0xff]
          %v3272 = vld [vmem:[#allocation3 + $0x310] sm:$0xff]
          %v3273 = vld [vmem:[#allocation3 + $0x318] sm:$0xff]
          %v3274 = vld [vmem:[#allocation3 + $0x320] sm:$0xff]
          %v3275 = vld [vmem:[#allocation3 + $0x328] sm:$0xff]
          %v3276 = vld [vmem:[#allocation3 + $0x330] sm:$0xff]
          %v3277 = vld [vmem:[#allocation3 + $0x338] sm:$0xff]
          %v3278 = vld [vmem:[#allocation3 + $0x340] sm:$0xff]
          %v3279 = vld [vmem:[#allocation3 + $0x348] sm:$0xff]
          %v3280 = vld [vmem:[#allocation3 + $0x350] sm:$0xff]
          %v3281 = vld [vmem:[#allocation3 + $0x358] sm:$0xff]
          %v3282 = vld [vmem:[#allocation3 + $0x360] sm:$0xff]
          %v3283 = vld [vmem:[#allocation3 + $0x368] sm:$0xff]
          %v3284 = vld [vmem:[#allocation3 + $0x370] sm:$0xff]
          %v3285 = vld [vmem:[#allocation3 + $0x378] sm:$0xff]
          %v3286 = vld [vmem:[#allocation3 + $0x380] sm:$0xff]
          %v3287 = vld [vmem:[#allocation3 + $0x388] sm:$0xff]
          %v3288 = vld [vmem:[#allocation3 + $0x390] sm:$0xff]
          %v3289 = vld [vmem:[#allocation3 + $0x398] sm:$0xff]
          %v3290 = vld [vmem:[#allocation3 + $0x3a0] sm:$0xff]
          %v3291 = vld [vmem:[#allocation3 + $0x3a8] sm:$0xff]
          %v3292 = vld [vmem:[#allocation3 + $0x3b0] sm:$0xff]
          %v3293 = vld [vmem:[#allocation3 + $0x3b8] sm:$0xff]
          %v3294 = vld [vmem:[#allocation3 + $0x3c0] sm:$0xff]
          %v3295 = vld [vmem:[#allocation3 + $0x3c8] sm:$0xff]
          %v3296 = vld [vmem:[#allocation3 + $0x3d0] sm:$0xff]
          %v3297 = vld [vmem:[#allocation3 + $0x3d8] sm:$0xff]
          %v3298 = vld [vmem:[#allocation3 + $0x3e0] sm:$0xff]
          %v3299 = vld [vmem:[#allocation3 + $0x3e8] sm:$0xff]
          %v3300 = vld [vmem:[#allocation3 + $0x3f0] sm:$0xff]
          %v3301 = vld [vmem:[#allocation3 + $0x3f8] sm:$0xff]
          %v3302 = vld [vmem:[#allocation3 + $0x400] sm:$0xff]
          %v3303 = vld [vmem:[#allocation3 + $0x408] sm:$0xff]
          %v3304 = vld [vmem:[#allocation3 + $0x410] sm:$0xff]
          %v3305 = vld [vmem:[#allocation3 + $0x418] sm:$0xff]
          %v3306 = vld [vmem:[#allocation3 + $0x420] sm:$0xff]
          %v3307 = vld [vmem:[#allocation3 + $0x428] sm:$0xff]
          %v3308 = vld [vmem:[#allocation3 + $0x430] sm:$0xff]
          %v3309 = vld [vmem:[#allocation3 + $0x438] sm:$0xff]
          %v3310 = vld [vmem:[#allocation3 + $0x440] sm:$0xff]
          %v3311 = vld [vmem:[#allocation3 + $0x448] sm:$0xff]
          %v3312 = vld [vmem:[#allocation3 + $0x450] sm:$0xff]
          %v3313 = vld [vmem:[#allocation3 + $0x458] sm:$0xff]
          %v3314 = vld [vmem:[#allocation3 + $0x460] sm:$0xff]
          %v3315 = vld [vmem:[#allocation3 + $0x468] sm:$0xff]
          %v3316 = vld [vmem:[#allocation3 + $0x470] sm:$0xff]
          %v3317 = vld [vmem:[#allocation3 + $0x478] sm:$0xff]
          %v3318 = vld [vmem:[#allocation3 + $0x480] sm:$0xff]
          %v3319 = vld [vmem:[#allocation3 + $0x488] sm:$0xff]
          %v3320 = vld [vmem:[#allocation3 + $0x490] sm:$0xff]
          %v3321 = vld [vmem:[#allocation3 + $0x498] sm:$0xff]
          %v3322 = vld [vmem:[#allocation3 + $0x4a0] sm:$0xff]
          %v3323 = vld [vmem:[#allocation3 + $0x4a8] sm:$0xff]
          %v3324 = vld [vmem:[#allocation3 + $0x4b0] sm:$0xff]
          %v3325 = vld [vmem:[#allocation3 + $0x4b8] sm:$0xff]
          %v3326 = vld [vmem:[#allocation3 + $0x4c0] sm:$0xff]
          %v3327 = vld [vmem:[#allocation3 + $0x4c8] sm:$0xff]
          %v3328 = vld [vmem:[#allocation3 + $0x4d0] sm:$0xff]
          %v3329 = vld [vmem:[#allocation3 + $0x4d8] sm:$0xff]
          %v3330 = vld [vmem:[#allocation3 + $0x4e0] sm:$0xff]
          %v3331 = vld [vmem:[#allocation3 + $0x4e8] sm:$0xff]
          %v3332 = vld [vmem:[#allocation3 + $0x4f0] sm:$0xff]
          %v3333 = vld [vmem:[#allocation3 + $0x4f8] sm:$0xff]
          %v3334 = vld [vmem:[#allocation3 + $0x500] sm:$0xff]
          %v3335 = vld [vmem:[#allocation3 + $0x508] sm:$0xff]
          %v3336 = vld [vmem:[#allocation3 + $0x510] sm:$0xff]
          %v3337 = vld [vmem:[#allocation3 + $0x518] sm:$0xff]
          %v3338 = vld [vmem:[#allocation3 + $0x520] sm:$0xff]
          %v3339 = vld [vmem:[#allocation3 + $0x528] sm:$0xff]
          %v3340 = vld [vmem:[#allocation3 + $0x530] sm:$0xff]
          %v3341 = vld [vmem:[#allocation3 + $0x538] sm:$0xff]
          %v3342 = vld [vmem:[#allocation3 + $0x540] sm:$0xff]
          %v3343 = vld [vmem:[#allocation3 + $0x548] sm:$0xff]
          %v3344 = vld [vmem:[#allocation3 + $0x550] sm:$0xff]
          %v3345 = vld [vmem:[#allocation3 + $0x558] sm:$0xff]
          %v3346 = vld [vmem:[#allocation3 + $0x560] sm:$0xff]
          %v3347 = vld [vmem:[#allocation3 + $0x568] sm:$0xff]
          %v3348 = vld [vmem:[#allocation3 + $0x570] sm:$0xff]
          %v3349 = vld [vmem:[#allocation3 + $0x578] sm:$0xff]
          %v3350 = vld [vmem:[#allocation3 + $0x580] sm:$0xff]
          %v3351 = vld [vmem:[#allocation3 + $0x588] sm:$0xff]
          %v3352 = vld [vmem:[#allocation3 + $0x590] sm:$0xff]
          %v3353 = vld [vmem:[#allocation3 + $0x598] sm:$0xff]
          %v3354 = vld [vmem:[#allocation3 + $0x5a0] sm:$0xff]
          %v3355 = vld [vmem:[#allocation3 + $0x5a8] sm:$0xff]
          %v3356 = vld [vmem:[#allocation3 + $0x5b0] sm:$0xff]
          %v3357 = vld [vmem:[#allocation3 + $0x5b8] sm:$0xff]
          %v3358 = vld [vmem:[#allocation3 + $0x5c0] sm:$0xff]
          %v3359 = vld [vmem:[#allocation3 + $0x5c8] sm:$0xff]
          %v3360 = vld [vmem:[#allocation3 + $0x5d0] sm:$0xff]
          %v3361 = vld [vmem:[#allocation3 + $0x5d8] sm:$0xff]
          %v3362 = vld [vmem:[#allocation3 + $0x5e0] sm:$0xff]
          %v3363 = vld [vmem:[#allocation3 + $0x5e8] sm:$0xff]
          %v3364 = vld [vmem:[#allocation3 + $0x5f0] sm:$0xff]
          %v3365 = vld [vmem:[#allocation3 + $0x5f8] sm:$0xff]
          %v3366 = vld [vmem:[#allocation3 + $0x600] sm:$0xff]
          %v3367 = vld [vmem:[#allocation3 + $0x608] sm:$0xff]
          %v3368 = vld [vmem:[#allocation3 + $0x610] sm:$0xff]
          %v3369 = vld [vmem:[#allocation3 + $0x618] sm:$0xff]
          %v3370 = vld [vmem:[#allocation3 + $0x620] sm:$0xff]
          %v3371 = vld [vmem:[#allocation3 + $0x628] sm:$0xff]
          %v3372 = vld [vmem:[#allocation3 + $0x630] sm:$0xff]
          %v3373 = vld [vmem:[#allocation3 + $0x638] sm:$0xff]
          %v3374 = vld [vmem:[#allocation3 + $0x640] sm:$0xff]
          %v3375 = vld [vmem:[#allocation3 + $0x648] sm:$0xff]
          %v3376 = vld [vmem:[#allocation3 + $0x650] sm:$0xff]
          %v3377 = vld [vmem:[#allocation3 + $0x658] sm:$0xff]
          %v3378 = vld [vmem:[#allocation3 + $0x660] sm:$0xff]
          %v3379 = vld [vmem:[#allocation3 + $0x668] sm:$0xff]
          %v3380 = vld [vmem:[#allocation3 + $0x670] sm:$0xff]
          %v3381 = vld [vmem:[#allocation3 + $0x678] sm:$0xff]
          %v3382 = vld [vmem:[#allocation3 + $0x680] sm:$0xff]
          %v3383 = vld [vmem:[#allocation3 + $0x688] sm:$0xff]
          %v3384 = vld [vmem:[#allocation3 + $0x690] sm:$0xff]
          %v3385 = vld [vmem:[#allocation3 + $0x698] sm:$0xff]
          %v3386 = vld [vmem:[#allocation3 + $0x6a0] sm:$0xff]
          %v3387 = vld [vmem:[#allocation3 + $0x6a8] sm:$0xff]
          %v3388 = vld [vmem:[#allocation3 + $0x6b0] sm:$0xff]
          %v3389 = vld [vmem:[#allocation3 + $0x6b8] sm:$0xff]
          %v3390 = vld [vmem:[#allocation3 + $0x6c0] sm:$0xff]
          %v3391 = vld [vmem:[#allocation3 + $0x6c8] sm:$0xff]
          %v3392 = vld [vmem:[#allocation3 + $0x6d0] sm:$0xff]
          %v3393 = vld [vmem:[#allocation3 + $0x6d8] sm:$0xff]
          %v3394 = vld [vmem:[#allocation3 + $0x6e0] sm:$0xff]
          %v3395 = vld [vmem:[#allocation3 + $0x6e8] sm:$0xff]
          %v3396 = vld [vmem:[#allocation3 + $0x6f0] sm:$0xff]
          %v3397 = vld [vmem:[#allocation3 + $0x6f8] sm:$0xff]
          %v3398 = vld [vmem:[#allocation3 + $0x700] sm:$0xff]
          %v3399 = vld [vmem:[#allocation3 + $0x708] sm:$0xff]
          %v3400 = vld [vmem:[#allocation3 + $0x710] sm:$0xff]
          %v3401 = vld [vmem:[#allocation3 + $0x718] sm:$0xff]
          %v3402 = vld [vmem:[#allocation3 + $0x720] sm:$0xff]
          %v3403 = vld [vmem:[#allocation3 + $0x728] sm:$0xff]
          %v3404 = vld [vmem:[#allocation3 + $0x730] sm:$0xff]
          %v3405 = vld [vmem:[#allocation3 + $0x738] sm:$0xff]
          %v3406 = vld [vmem:[#allocation3 + $0x740] sm:$0xff]
          %v3407 = vld [vmem:[#allocation3 + $0x748] sm:$0xff]
          %v3408 = vld [vmem:[#allocation3 + $0x750] sm:$0xff]
          %v3409 = vld [vmem:[#allocation3 + $0x758] sm:$0xff]
          %v3410 = vld [vmem:[#allocation3 + $0x760] sm:$0xff]
          %v3411 = vld [vmem:[#allocation3 + $0x768] sm:$0xff]
          %v3412 = vld [vmem:[#allocation3 + $0x770] sm:$0xff]
          %v3413 = vld [vmem:[#allocation3 + $0x778] sm:$0xff]
          %v3414 = vld [vmem:[#allocation3 + $0x780] sm:$0xff]
          %v3415 = vld [vmem:[#allocation3 + $0x788] sm:$0xff]
          %v3416 = vld [vmem:[#allocation3 + $0x790] sm:$0xff]
          %v3417 = vld [vmem:[#allocation3 + $0x798] sm:$0xff]
          %v3418 = vld [vmem:[#allocation3 + $0x7a0] sm:$0xff]
          %v3419 = vld [vmem:[#allocation3 + $0x7a8] sm:$0xff]
          %v3420 = vld [vmem:[#allocation3 + $0x7b0] sm:$0xff]
          %v3421 = vld [vmem:[#allocation3 + $0x7b8] sm:$0xff]
          %v3422 = vld [vmem:[#allocation3 + $0x7c0] sm:$0xff]
          %v3423 = vld [vmem:[#allocation3 + $0x7c8] sm:$0xff]
          %v3424 = vld [vmem:[#allocation3 + $0x7d0] sm:$0xff]
          %v3425 = vld [vmem:[#allocation3 + $0x7d8] sm:$0xff]
          %v3426 = vld [vmem:[#allocation3 + $0x7e0] sm:$0xff]
          %v3427 = vld [vmem:[#allocation3 + $0x7e8] sm:$0xff]
          %v3428 = vld [vmem:[#allocation3 + $0x7f0] sm:$0xff]
          %v3429 = vld [vmem:[#allocation3 + $0x7f8] sm:$0xff]
          %v3430 = vld [vmem:[%s8] sm:$0xf]
          %v3687 = vunpack.c.l.b16 %v3174
          %v3688 = vunpack.c.h.b16 %v3174
          %v3689 = vunpack.c.l.b16 %v3175
          %v3690 = vunpack.c.h.b16 %v3175
          %v3691 = vunpack.c.l.b16 %v3176
          %v3692 = vunpack.c.h.b16 %v3176
          %v3693 = vunpack.c.l.b16 %v3177
          %v3694 = vunpack.c.h.b16 %v3177
          %v3695 = vunpack.c.l.b16 %v3178
          %v3696 = vunpack.c.h.b16 %v3178
          %v3697 = vunpack.c.l.b16 %v3179
          %v3698 = vunpack.c.h.b16 %v3179
          %v3699 = vunpack.c.l.b16 %v3180
          %v3700 = vunpack.c.h.b16 %v3180
          %v3701 = vunpack.c.l.b16 %v3181
          %v3702 = vunpack.c.h.b16 %v3181
          %v3703 = vunpack.c.l.b16 %v3182
          %v3704 = vunpack.c.h.b16 %v3182
          %v3705 = vunpack.c.l.b16 %v3183
          %v3706 = vunpack.c.h.b16 %v3183
          %v3707 = vunpack.c.l.b16 %v3184
          %v3708 = vunpack.c.h.b16 %v3184
          %v3709 = vunpack.c.l.b16 %v3185
          %v3710 = vunpack.c.h.b16 %v3185
          %v3711 = vunpack.c.l.b16 %v3186
          %v3712 = vunpack.c.h.b16 %v3186
          %v3713 = vunpack.c.l.b16 %v3187
          %v3714 = vunpack.c.h.b16 %v3187
          %v3715 = vunpack.c.l.b16 %v3188
          %v3716 = vunpack.c.h.b16 %v3188
          %v3717 = vunpack.c.l.b16 %v3189
          %v3718 = vunpack.c.h.b16 %v3189
          %v3719 = vunpack.c.l.b16 %v3190
          %v3720 = vunpack.c.h.b16 %v3190
          %v3721 = vunpack.c.l.b16 %v3191
          %v3722 = vunpack.c.h.b16 %v3191
          %v3723 = vunpack.c.l.b16 %v3192
          %v3724 = vunpack.c.h.b16 %v3192
          %v3725 = vunpack.c.l.b16 %v3193
          %v3726 = vunpack.c.h.b16 %v3193
          %v3727 = vunpack.c.l.b16 %v3194
          %v3728 = vunpack.c.h.b16 %v3194
          %v3729 = vunpack.c.l.b16 %v3195
          %v3730 = vunpack.c.h.b16 %v3195
          %v3731 = vunpack.c.l.b16 %v3196
          %v3732 = vunpack.c.h.b16 %v3196
          %v3733 = vunpack.c.l.b16 %v3197
          %v3734 = vunpack.c.h.b16 %v3197
          %v3735 = vunpack.c.l.b16 %v3198
          %v3736 = vunpack.c.h.b16 %v3198
          %v3737 = vunpack.c.l.b16 %v3199
          %v3738 = vunpack.c.h.b16 %v3199
          %v3739 = vunpack.c.l.b16 %v3200
          %v3740 = vunpack.c.h.b16 %v3200
          %v3741 = vunpack.c.l.b16 %v3201
          %v3742 = vunpack.c.h.b16 %v3201
          %v3743 = vunpack.c.l.b16 %v3202
          %v3744 = vunpack.c.h.b16 %v3202
          %v3745 = vunpack.c.l.b16 %v3203
          %v3746 = vunpack.c.h.b16 %v3203
          %v3747 = vunpack.c.l.b16 %v3204
          %v3748 = vunpack.c.h.b16 %v3204
          %v3749 = vunpack.c.l.b16 %v3205
          %v3750 = vunpack.c.h.b16 %v3205
          %v3751 = vunpack.c.l.b16 %v3206
          %v3752 = vunpack.c.h.b16 %v3206
          %v3753 = vunpack.c.l.b16 %v3207
          %v3754 = vunpack.c.h.b16 %v3207
          %v3755 = vunpack.c.l.b16 %v3208
          %v3756 = vunpack.c.h.b16 %v3208
          %v3757 = vunpack.c.l.b16 %v3209
          %v3758 = vunpack.c.h.b16 %v3209
          %v3759 = vunpack.c.l.b16 %v3210
          %v3760 = vunpack.c.h.b16 %v3210
          %v3761 = vunpack.c.l.b16 %v3211
          %v3762 = vunpack.c.h.b16 %v3211
          %v3763 = vunpack.c.l.b16 %v3212
          %v3764 = vunpack.c.h.b16 %v3212
          %v3765 = vunpack.c.l.b16 %v3213
          %v3766 = vunpack.c.h.b16 %v3213
          %v3767 = vunpack.c.l.b16 %v3214
          %v3768 = vunpack.c.h.b16 %v3214
          %v3769 = vunpack.c.l.b16 %v3215
          %v3770 = vunpack.c.h.b16 %v3215
          %v3771 = vunpack.c.l.b16 %v3216
          %v3772 = vunpack.c.h.b16 %v3216
          %v3773 = vunpack.c.l.b16 %v3217
          %v3774 = vunpack.c.h.b16 %v3217
          %v3775 = vunpack.c.l.b16 %v3218
          %v3776 = vunpack.c.h.b16 %v3218
          %v3777 = vunpack.c.l.b16 %v3219
          %v3778 = vunpack.c.h.b16 %v3219
          %v3779 = vunpack.c.l.b16 %v3220
          %v3780 = vunpack.c.h.b16 %v3220
          %v3781 = vunpack.c.l.b16 %v3221
          %v3782 = vunpack.c.h.b16 %v3221
          %v3783 = vunpack.c.l.b16 %v3222
          %v3784 = vunpack.c.h.b16 %v3222
          %v3785 = vunpack.c.l.b16 %v3223
          %v3786 = vunpack.c.h.b16 %v3223
          %v3787 = vunpack.c.l.b16 %v3224
          %v3788 = vunpack.c.h.b16 %v3224
          %v3789 = vunpack.c.l.b16 %v3225
          %v3790 = vunpack.c.h.b16 %v3225
          %v3791 = vunpack.c.l.b16 %v3226
          %v3792 = vunpack.c.h.b16 %v3226
          %v3793 = vunpack.c.l.b16 %v3227
          %v3794 = vunpack.c.h.b16 %v3227
          %v3795 = vunpack.c.l.b16 %v3228
          %v3796 = vunpack.c.h.b16 %v3228
          %v3797 = vunpack.c.l.b16 %v3229
          %v3798 = vunpack.c.h.b16 %v3229
          %v3799 = vunpack.c.l.b16 %v3230
          %v3800 = vunpack.c.h.b16 %v3230
          %v3801 = vunpack.c.l.b16 %v3231
          %v3802 = vunpack.c.h.b16 %v3231
          %v3803 = vunpack.c.l.b16 %v3232
          %v3804 = vunpack.c.h.b16 %v3232
          %v3805 = vunpack.c.l.b16 %v3233
          %v3806 = vunpack.c.h.b16 %v3233
          %v3807 = vunpack.c.l.b16 %v3234
          %v3808 = vunpack.c.h.b16 %v3234
          %v3809 = vunpack.c.l.b16 %v3235
          %v3810 = vunpack.c.h.b16 %v3235
          %v3811 = vunpack.c.l.b16 %v3236
          %v3812 = vunpack.c.h.b16 %v3236
          %v3813 = vunpack.c.l.b16 %v3237
          %v3814 = vunpack.c.h.b16 %v3237
          %v3815 = vunpack.c.l.b16 %v3238
          %v3816 = vunpack.c.h.b16 %v3238
          %v3817 = vunpack.c.l.b16 %v3239
          %v3818 = vunpack.c.h.b16 %v3239
          %v3819 = vunpack.c.l.b16 %v3240
          %v3820 = vunpack.c.h.b16 %v3240
          %v3821 = vunpack.c.l.b16 %v3241
          %v3822 = vunpack.c.h.b16 %v3241
          %v3823 = vunpack.c.l.b16 %v3242
          %v3824 = vunpack.c.h.b16 %v3242
          %v3825 = vunpack.c.l.b16 %v3243
          %v3826 = vunpack.c.h.b16 %v3243
          %v3827 = vunpack.c.l.b16 %v3244
          %v3828 = vunpack.c.h.b16 %v3244
          %v3829 = vunpack.c.l.b16 %v3245
          %v3830 = vunpack.c.h.b16 %v3245
          %v3831 = vunpack.c.l.b16 %v3246
          %v3832 = vunpack.c.h.b16 %v3246
          %v3833 = vunpack.c.l.b16 %v3247
          %v3834 = vunpack.c.h.b16 %v3247
          %v3835 = vunpack.c.l.b16 %v3248
          %v3836 = vunpack.c.h.b16 %v3248
          %v3837 = vunpack.c.l.b16 %v3249
          %v3838 = vunpack.c.h.b16 %v3249
          %v3839 = vunpack.c.l.b16 %v3250
          %v3840 = vunpack.c.h.b16 %v3250
          %v3841 = vunpack.c.l.b16 %v3251
          %v3842 = vunpack.c.h.b16 %v3251
          %v3843 = vunpack.c.l.b16 %v3252
          %v3844 = vunpack.c.h.b16 %v3252
          %v3845 = vunpack.c.l.b16 %v3253
          %v3846 = vunpack.c.h.b16 %v3253
          %v3847 = vunpack.c.l.b16 %v3254
          %v3848 = vunpack.c.h.b16 %v3254
          %v3849 = vunpack.c.l.b16 %v3255
          %v3850 = vunpack.c.h.b16 %v3255
          %v3851 = vunpack.c.l.b16 %v3256
          %v3852 = vunpack.c.h.b16 %v3256
          %v3853 = vunpack.c.l.b16 %v3257
          %v3854 = vunpack.c.h.b16 %v3257
          %v3855 = vunpack.c.l.b16 %v3258
          %v3856 = vunpack.c.h.b16 %v3258
          %v3857 = vunpack.c.l.b16 %v3259
          %v3858 = vunpack.c.h.b16 %v3259
          %v3859 = vunpack.c.l.b16 %v3260
          %v3860 = vunpack.c.h.b16 %v3260
          %v3861 = vunpack.c.l.b16 %v3261
          %v3862 = vunpack.c.h.b16 %v3261
          %v3863 = vunpack.c.l.b16 %v3262
          %v3864 = vunpack.c.h.b16 %v3262
          %v3865 = vunpack.c.l.b16 %v3263
          %v3866 = vunpack.c.h.b16 %v3263
          %v3867 = vunpack.c.l.b16 %v3264
          %v3868 = vunpack.c.h.b16 %v3264
          %v3869 = vunpack.c.l.b16 %v3265
          %v3870 = vunpack.c.h.b16 %v3265
          %v3871 = vunpack.c.l.b16 %v3266
          %v3872 = vunpack.c.h.b16 %v3266
          %v3873 = vunpack.c.l.b16 %v3267
          %v3874 = vunpack.c.h.b16 %v3267
          %v3875 = vunpack.c.l.b16 %v3268
          %v3876 = vunpack.c.h.b16 %v3268
          %v3877 = vunpack.c.l.b16 %v3269
          %v3878 = vunpack.c.h.b16 %v3269
          %v3879 = vunpack.c.l.b16 %v3270
          %v3880 = vunpack.c.h.b16 %v3270
          %v3881 = vunpack.c.l.b16 %v3271
          %v3882 = vunpack.c.h.b16 %v3271
          %v3883 = vunpack.c.l.b16 %v3272
          %v3884 = vunpack.c.h.b16 %v3272
          %v3885 = vunpack.c.l.b16 %v3273
          %v3886 = vunpack.c.h.b16 %v3273
          %v3887 = vunpack.c.l.b16 %v3274
          %v3888 = vunpack.c.h.b16 %v3274
          %v3889 = vunpack.c.l.b16 %v3275
          %v3890 = vunpack.c.h.b16 %v3275
          %v3891 = vunpack.c.l.b16 %v3276
          %v3892 = vunpack.c.h.b16 %v3276
          %v3893 = vunpack.c.l.b16 %v3277
          %v3894 = vunpack.c.h.b16 %v3277
          %v3895 = vunpack.c.l.b16 %v3278
          %v3896 = vunpack.c.h.b16 %v3278
          %v3897 = vunpack.c.l.b16 %v3279
          %v3898 = vunpack.c.h.b16 %v3279
          %v3899 = vunpack.c.l.b16 %v3280
          %v3900 = vunpack.c.h.b16 %v3280
          %v3901 = vunpack.c.l.b16 %v3281
          %v3902 = vunpack.c.h.b16 %v3281
          %v3903 = vunpack.c.l.b16 %v3282
          %v3904 = vunpack.c.h.b16 %v3282
          %v3905 = vunpack.c.l.b16 %v3283
          %v3906 = vunpack.c.h.b16 %v3283
          %v3907 = vunpack.c.l.b16 %v3284
          %v3908 = vunpack.c.h.b16 %v3284
          %v3909 = vunpack.c.l.b16 %v3285
          %v3910 = vunpack.c.h.b16 %v3285
          %v3911 = vunpack.c.l.b16 %v3286
          %v3912 = vunpack.c.h.b16 %v3286
          %v3913 = vunpack.c.l.b16 %v3287
          %v3914 = vunpack.c.h.b16 %v3287
          %v3915 = vunpack.c.l.b16 %v3288
          %v3916 = vunpack.c.h.b16 %v3288
          %v3917 = vunpack.c.l.b16 %v3289
          %v3918 = vunpack.c.h.b16 %v3289
          %v3919 = vunpack.c.l.b16 %v3290
          %v3920 = vunpack.c.h.b16 %v3290
          %v3921 = vunpack.c.l.b16 %v3291
          %v3922 = vunpack.c.h.b16 %v3291
          %v3923 = vunpack.c.l.b16 %v3292
          %v3924 = vunpack.c.h.b16 %v3292
          %v3925 = vunpack.c.l.b16 %v3293
          %v3926 = vunpack.c.h.b16 %v3293
          %v3927 = vunpack.c.l.b16 %v3294
          %v3928 = vunpack.c.h.b16 %v3294
          %v3929 = vunpack.c.l.b16 %v3295
          %v3930 = vunpack.c.h.b16 %v3295
          %v3931 = vunpack.c.l.b16 %v3296
          %v3932 = vunpack.c.h.b16 %v3296
          %v3933 = vunpack.c.l.b16 %v3297
          %v3934 = vunpack.c.h.b16 %v3297
          %v3935 = vunpack.c.l.b16 %v3298
          %v3936 = vunpack.c.h.b16 %v3298
          %v3937 = vunpack.c.l.b16 %v3299
          %v3938 = vunpack.c.h.b16 %v3299
          %v3939 = vunpack.c.l.b16 %v3300
          %v3940 = vunpack.c.h.b16 %v3300
          %v3941 = vunpack.c.l.b16 %v3301
          %v3942 = vunpack.c.h.b16 %v3301
          %v3943 = vunpack.c.l.b16 %v3302
          %v3944 = vunpack.c.h.b16 %v3302
          %v3945 = vunpack.c.l.b16 %v3303
          %v3946 = vunpack.c.h.b16 %v3303
          %v3947 = vunpack.c.l.b16 %v3304
          %v3948 = vunpack.c.h.b16 %v3304
          %v3949 = vunpack.c.l.b16 %v3305
          %v3950 = vunpack.c.h.b16 %v3305
          %v3951 = vunpack.c.l.b16 %v3306
          %v3952 = vunpack.c.h.b16 %v3306
          %v3953 = vunpack.c.l.b16 %v3307
          %v3954 = vunpack.c.h.b16 %v3307
          %v3955 = vunpack.c.l.b16 %v3308
          %v3956 = vunpack.c.h.b16 %v3308
          %v3957 = vunpack.c.l.b16 %v3309
          %v3958 = vunpack.c.h.b16 %v3309
          %v3959 = vunpack.c.l.b16 %v3310
          %v3960 = vunpack.c.h.b16 %v3310
          %v3961 = vunpack.c.l.b16 %v3311
          %v3962 = vunpack.c.h.b16 %v3311
          %v3963 = vunpack.c.l.b16 %v3312
          %v3964 = vunpack.c.h.b16 %v3312
          %v3965 = vunpack.c.l.b16 %v3313
          %v3966 = vunpack.c.h.b16 %v3313
          %v3967 = vunpack.c.l.b16 %v3314
          %v3968 = vunpack.c.h.b16 %v3314
          %v3969 = vunpack.c.l.b16 %v3315
          %v3970 = vunpack.c.h.b16 %v3315
          %v3971 = vunpack.c.l.b16 %v3316
          %v3972 = vunpack.c.h.b16 %v3316
          %v3973 = vunpack.c.l.b16 %v3317
          %v3974 = vunpack.c.h.b16 %v3317
          %v3975 = vunpack.c.l.b16 %v3318
          %v3976 = vunpack.c.h.b16 %v3318
          %v3977 = vunpack.c.l.b16 %v3319
          %v3978 = vunpack.c.h.b16 %v3319
          %v3979 = vunpack.c.l.b16 %v3320
          %v3980 = vunpack.c.h.b16 %v3320
          %v3981 = vunpack.c.l.b16 %v3321
          %v3982 = vunpack.c.h.b16 %v3321
          %v3983 = vunpack.c.l.b16 %v3322
          %v3984 = vunpack.c.h.b16 %v3322
          %v3985 = vunpack.c.l.b16 %v3323
          %v3986 = vunpack.c.h.b16 %v3323
          %v3987 = vunpack.c.l.b16 %v3324
          %v3988 = vunpack.c.h.b16 %v3324
          %v3989 = vunpack.c.l.b16 %v3325
          %v3990 = vunpack.c.h.b16 %v3325
          %v3991 = vunpack.c.l.b16 %v3326
          %v3992 = vunpack.c.h.b16 %v3326
          %v3993 = vunpack.c.l.b16 %v3327
          %v3994 = vunpack.c.h.b16 %v3327
          %v3995 = vunpack.c.l.b16 %v3328
          %v3996 = vunpack.c.h.b16 %v3328
          %v3997 = vunpack.c.l.b16 %v3329
          %v3998 = vunpack.c.h.b16 %v3329
          %v3999 = vunpack.c.l.b16 %v3330
          %v4000 = vunpack.c.h.b16 %v3330
          %v4001 = vunpack.c.l.b16 %v3331
          %v4002 = vunpack.c.h.b16 %v3331
          %v4003 = vunpack.c.l.b16 %v3332
          %v4004 = vunpack.c.h.b16 %v3332
          %v4005 = vunpack.c.l.b16 %v3333
          %v4006 = vunpack.c.h.b16 %v3333
          %v4007 = vunpack.c.l.b16 %v3334
          %v4008 = vunpack.c.h.b16 %v3334
          %v4009 = vunpack.c.l.b16 %v3335
          %v4010 = vunpack.c.h.b16 %v3335
          %v4011 = vunpack.c.l.b16 %v3336
          %v4012 = vunpack.c.h.b16 %v3336
          %v4013 = vunpack.c.l.b16 %v3337
          %v4014 = vunpack.c.h.b16 %v3337
          %v4015 = vunpack.c.l.b16 %v3338
          %v4016 = vunpack.c.h.b16 %v3338
          %v4017 = vunpack.c.l.b16 %v3339
          %v4018 = vunpack.c.h.b16 %v3339
          %v4019 = vunpack.c.l.b16 %v3340
          %v4020 = vunpack.c.h.b16 %v3340
          %v4021 = vunpack.c.l.b16 %v3341
          %v4022 = vunpack.c.h.b16 %v3341
          %v4023 = vunpack.c.l.b16 %v3342
          %v4024 = vunpack.c.h.b16 %v3342
          %v4025 = vunpack.c.l.b16 %v3343
          %v4026 = vunpack.c.h.b16 %v3343
          %v4027 = vunpack.c.l.b16 %v3344
          %v4028 = vunpack.c.h.b16 %v3344
          %v4029 = vunpack.c.l.b16 %v3345
          %v4030 = vunpack.c.h.b16 %v3345
          %v4031 = vunpack.c.l.b16 %v3346
          %v4032 = vunpack.c.h.b16 %v3346
          %v4033 = vunpack.c.l.b16 %v3347
          %v4034 = vunpack.c.h.b16 %v3347
          %v4035 = vunpack.c.l.b16 %v3348
          %v4036 = vunpack.c.h.b16 %v3348
          %v4037 = vunpack.c.l.b16 %v3349
          %v4038 = vunpack.c.h.b16 %v3349
          %v4039 = vunpack.c.l.b16 %v3350
          %v4040 = vunpack.c.h.b16 %v3350
          %v4041 = vunpack.c.l.b16 %v3351
          %v4042 = vunpack.c.h.b16 %v3351
          %v4043 = vunpack.c.l.b16 %v3352
          %v4044 = vunpack.c.h.b16 %v3352
          %v4045 = vunpack.c.l.b16 %v3353
          %v4046 = vunpack.c.h.b16 %v3353
          %v4047 = vunpack.c.l.b16 %v3354
          %v4048 = vunpack.c.h.b16 %v3354
          %v4049 = vunpack.c.l.b16 %v3355
          %v4050 = vunpack.c.h.b16 %v3355
          %v4051 = vunpack.c.l.b16 %v3356
          %v4052 = vunpack.c.h.b16 %v3356
          %v4053 = vunpack.c.l.b16 %v3357
          %v4054 = vunpack.c.h.b16 %v3357
          %v4055 = vunpack.c.l.b16 %v3358
          %v4056 = vunpack.c.h.b16 %v3358
          %v4057 = vunpack.c.l.b16 %v3359
          %v4058 = vunpack.c.h.b16 %v3359
          %v4059 = vunpack.c.l.b16 %v3360
          %v4060 = vunpack.c.h.b16 %v3360
          %v4061 = vunpack.c.l.b16 %v3361
          %v4062 = vunpack.c.h.b16 %v3361
          %v4063 = vunpack.c.l.b16 %v3362
          %v4064 = vunpack.c.h.b16 %v3362
          %v4065 = vunpack.c.l.b16 %v3363
          %v4066 = vunpack.c.h.b16 %v3363
          %v4067 = vunpack.c.l.b16 %v3364
          %v4068 = vunpack.c.h.b16 %v3364
          %v4069 = vunpack.c.l.b16 %v3365
          %v4070 = vunpack.c.h.b16 %v3365
          %v4071 = vunpack.c.l.b16 %v3366
          %v4072 = vunpack.c.h.b16 %v3366
          %v4073 = vunpack.c.l.b16 %v3367
          %v4074 = vunpack.c.h.b16 %v3367
          %v4075 = vunpack.c.l.b16 %v3368
          %v4076 = vunpack.c.h.b16 %v3368
          %v4077 = vunpack.c.l.b16 %v3369
          %v4078 = vunpack.c.h.b16 %v3369
          %v4079 = vunpack.c.l.b16 %v3370
          %v4080 = vunpack.c.h.b16 %v3370
          %v4081 = vunpack.c.l.b16 %v3371
          %v4082 = vunpack.c.h.b16 %v3371
          %v4083 = vunpack.c.l.b16 %v3372
          %v4084 = vunpack.c.h.b16 %v3372
          %v4085 = vunpack.c.l.b16 %v3373
          %v4086 = vunpack.c.h.b16 %v3373
          %v4087 = vunpack.c.l.b16 %v3374
          %v4088 = vunpack.c.h.b16 %v3374
          %v4089 = vunpack.c.l.b16 %v3375
          %v4090 = vunpack.c.h.b16 %v3375
          %v4091 = vunpack.c.l.b16 %v3376
          %v4092 = vunpack.c.h.b16 %v3376
          %v4093 = vunpack.c.l.b16 %v3377
          %v4094 = vunpack.c.h.b16 %v3377
          %v4095 = vunpack.c.l.b16 %v3378
          %v4096 = vunpack.c.h.b16 %v3378
          %v4097 = vunpack.c.l.b16 %v3379
          %v4098 = vunpack.c.h.b16 %v3379
          %v4099 = vunpack.c.l.b16 %v3380
          %v4100 = vunpack.c.h.b16 %v3380
          %v4101 = vunpack.c.l.b16 %v3381
          %v4102 = vunpack.c.h.b16 %v3381
          %v4103 = vunpack.c.l.b16 %v3382
          %v4104 = vunpack.c.h.b16 %v3382
          %v4105 = vunpack.c.l.b16 %v3383
          %v4106 = vunpack.c.h.b16 %v3383
          %v4107 = vunpack.c.l.b16 %v3384
          %v4108 = vunpack.c.h.b16 %v3384
          %v4109 = vunpack.c.l.b16 %v3385
          %v4110 = vunpack.c.h.b16 %v3385
          %v4111 = vunpack.c.l.b16 %v3386
          %v4112 = vunpack.c.h.b16 %v3386
          %v4113 = vunpack.c.l.b16 %v3387
          %v4114 = vunpack.c.h.b16 %v3387
          %v4115 = vunpack.c.l.b16 %v3388
          %v4116 = vunpack.c.h.b16 %v3388
          %v4117 = vunpack.c.l.b16 %v3389
          %v4118 = vunpack.c.h.b16 %v3389
          %v4119 = vunpack.c.l.b16 %v3390
          %v4120 = vunpack.c.h.b16 %v3390
          %v4121 = vunpack.c.l.b16 %v3391
          %v4122 = vunpack.c.h.b16 %v3391
          %v4123 = vunpack.c.l.b16 %v3392
          %v4124 = vunpack.c.h.b16 %v3392
          %v4125 = vunpack.c.l.b16 %v3393
          %v4126 = vunpack.c.h.b16 %v3393
          %v4127 = vunpack.c.l.b16 %v3394
          %v4128 = vunpack.c.h.b16 %v3394
          %v4129 = vunpack.c.l.b16 %v3395
          %v4130 = vunpack.c.h.b16 %v3395
          %v4131 = vunpack.c.l.b16 %v3396
          %v4132 = vunpack.c.h.b16 %v3396
          %v4133 = vunpack.c.l.b16 %v3397
          %v4134 = vunpack.c.h.b16 %v3397
          %v4135 = vunpack.c.l.b16 %v3398
          %v4136 = vunpack.c.h.b16 %v3398
          %v4137 = vunpack.c.l.b16 %v3399
          %v4138 = vunpack.c.h.b16 %v3399
          %v4139 = vunpack.c.l.b16 %v3400
          %v4140 = vunpack.c.h.b16 %v3400
          %v4141 = vunpack.c.l.b16 %v3401
          %v4142 = vunpack.c.h.b16 %v3401
          %v4143 = vunpack.c.l.b16 %v3402
          %v4144 = vunpack.c.h.b16 %v3402
          %v4145 = vunpack.c.l.b16 %v3403
          %v4146 = vunpack.c.h.b16 %v3403
          %v4147 = vunpack.c.l.b16 %v3404
          %v4148 = vunpack.c.h.b16 %v3404
          %v4149 = vunpack.c.l.b16 %v3405
          %v4150 = vunpack.c.h.b16 %v3405
          %v4151 = vunpack.c.l.b16 %v3406
          %v4152 = vunpack.c.h.b16 %v3406
          %v4153 = vunpack.c.l.b16 %v3407
          %v4154 = vunpack.c.h.b16 %v3407
          %v4155 = vunpack.c.l.b16 %v3408
          %v4156 = vunpack.c.h.b16 %v3408
          %v4157 = vunpack.c.l.b16 %v3409
          %v4158 = vunpack.c.h.b16 %v3409
          %v4159 = vunpack.c.l.b16 %v3410
          %v4160 = vunpack.c.h.b16 %v3410
          %v4161 = vunpack.c.l.b16 %v3411
          %v4162 = vunpack.c.h.b16 %v3411
          %v4163 = vunpack.c.l.b16 %v3412
          %v4164 = vunpack.c.h.b16 %v3412
          %v4165 = vunpack.c.l.b16 %v3413
          %v4166 = vunpack.c.h.b16 %v3413
          %v4167 = vunpack.c.l.b16 %v3414
          %v4168 = vunpack.c.h.b16 %v3414
          %v4169 = vunpack.c.l.b16 %v3415
          %v4170 = vunpack.c.h.b16 %v3415
          %v4171 = vunpack.c.l.b16 %v3416
          %v4172 = vunpack.c.h.b16 %v3416
          %v4173 = vunpack.c.l.b16 %v3417
          %v4174 = vunpack.c.h.b16 %v3417
          %v4175 = vunpack.c.l.b16 %v3418
          %v4176 = vunpack.c.h.b16 %v3418
          %v4177 = vunpack.c.l.b16 %v3419
          %v4178 = vunpack.c.h.b16 %v3419
          %v4179 = vunpack.c.l.b16 %v3420
          %v4180 = vunpack.c.h.b16 %v3420
          %v4181 = vunpack.c.l.b16 %v3421
          %v4182 = vunpack.c.h.b16 %v3421
          %v4183 = vunpack.c.l.b16 %v3422
          %v4184 = vunpack.c.h.b16 %v3422
          %v4185 = vunpack.c.l.b16 %v3423
          %v4186 = vunpack.c.h.b16 %v3423
          %v4187 = vunpack.c.l.b16 %v3424
          %v4188 = vunpack.c.h.b16 %v3424
          %v4189 = vunpack.c.l.b16 %v3425
          %v4190 = vunpack.c.h.b16 %v3425
          %v4191 = vunpack.c.l.b16 %v3426
          %v4192 = vunpack.c.h.b16 %v3426
          %v4193 = vunpack.c.l.b16 %v3427
          %v4194 = vunpack.c.h.b16 %v3427
          %v4195 = vunpack.c.l.b16 %v3428
          %v4196 = vunpack.c.h.b16 %v3428
          %v4197 = vunpack.c.l.b16 %v3429
          %v4198 = vunpack.c.h.b16 %v3429
          %v4199 = vpack.c.b16 %v3691, %v3687
          %v4200 = vpack.c.b16 %v3692, %v3688
          %v4201 = vpack.c.b16 %v3693, %v3689
          %v4202 = vpack.c.b16 %v3694, %v3690
          %v4203 = vpack.c.b16 %v3699, %v3695
          %v4204 = vpack.c.b16 %v3700, %v3696
          %v4205 = vpack.c.b16 %v3701, %v3697
          %v4206 = vpack.c.b16 %v3702, %v3698
          %v4207 = vpack.c.b16 %v3707, %v3703
          %v4208 = vpack.c.b16 %v3708, %v3704
          %v4209 = vpack.c.b16 %v3709, %v3705
          %v4210 = vpack.c.b16 %v3710, %v3706
          %v4211 = vpack.c.b16 %v3715, %v3711
          %v4212 = vpack.c.b16 %v3716, %v3712
          %v4213 = vpack.c.b16 %v3717, %v3713
          %v4214 = vpack.c.b16 %v3718, %v3714
          %v4215 = vpack.c.b16 %v3723, %v3719
          %v4216 = vpack.c.b16 %v3724, %v3720
          %v4217 = vpack.c.b16 %v3725, %v3721
          %v4218 = vpack.c.b16 %v3726, %v3722
          %v4219 = vpack.c.b16 %v3731, %v3727
          %v4220 = vpack.c.b16 %v3732, %v3728
          %v4221 = vpack.c.b16 %v3733, %v3729
          %v4222 = vpack.c.b16 %v3734, %v3730
          %v4223 = vpack.c.b16 %v3739, %v3735
          %v4224 = vpack.c.b16 %v3740, %v3736
          %v4225 = vpack.c.b16 %v3741, %v3737
          %v4226 = vpack.c.b16 %v3742, %v3738
          %v4227 = vpack.c.b16 %v3747, %v3743
          %v4228 = vpack.c.b16 %v3748, %v3744
          %v4229 = vpack.c.b16 %v3749, %v3745
          %v4230 = vpack.c.b16 %v3750, %v3746
          %v4231 = vpack.c.b16 %v3755, %v3751
          %v4232 = vpack.c.b16 %v3756, %v3752
          %v4233 = vpack.c.b16 %v3757, %v3753
          %v4234 = vpack.c.b16 %v3758, %v3754
          %v4235 = vpack.c.b16 %v3763, %v3759
          %v4236 = vpack.c.b16 %v3764, %v3760
          %v4237 = vpack.c.b16 %v3765, %v3761
          %v4238 = vpack.c.b16 %v3766, %v3762
          %v4239 = vpack.c.b16 %v3771, %v3767
          %v4240 = vpack.c.b16 %v3772, %v3768
          %v4241 = vpack.c.b16 %v3773, %v3769
          %v4242 = vpack.c.b16 %v3774, %v3770
          %v4243 = vpack.c.b16 %v3779, %v3775
          %v4244 = vpack.c.b16 %v3780, %v3776
          %v4245 = vpack.c.b16 %v3781, %v3777
          %v4246 = vpack.c.b16 %v3782, %v3778
          %v4247 = vpack.c.b16 %v3787, %v3783
          %v4248 = vpack.c.b16 %v3788, %v3784
          %v4249 = vpack.c.b16 %v3789, %v3785
          %v4250 = vpack.c.b16 %v3790, %v3786
          %v4251 = vpack.c.b16 %v3795, %v3791
          %v4252 = vpack.c.b16 %v3796, %v3792
          %v4253 = vpack.c.b16 %v3797, %v3793
          %v4254 = vpack.c.b16 %v3798, %v3794
          %v4255 = vpack.c.b16 %v3803, %v3799
          %v4256 = vpack.c.b16 %v3804, %v3800
          %v4257 = vpack.c.b16 %v3805, %v3801
          %v4258 = vpack.c.b16 %v3806, %v3802
          %v4259 = vpack.c.b16 %v3811, %v3807
          %v4260 = vpack.c.b16 %v3812, %v3808
          %v4261 = vpack.c.b16 %v3813, %v3809
          %v4262 = vpack.c.b16 %v3814, %v3810
          %v4263 = vpack.c.b16 %v3819, %v3815
          %v4264 = vpack.c.b16 %v3820, %v3816
          %v4265 = vpack.c.b16 %v3821, %v3817
          %v4266 = vpack.c.b16 %v3822, %v3818
          %v4267 = vpack.c.b16 %v3827, %v3823
          %v4268 = vpack.c.b16 %v3828, %v3824
          %v4269 = vpack.c.b16 %v3829, %v3825
          %v4270 = vpack.c.b16 %v3830, %v3826
          %v4271 = vpack.c.b16 %v3835, %v3831
          %v4272 = vpack.c.b16 %v3836, %v3832
          %v4273 = vpack.c.b16 %v3837, %v3833
          %v4274 = vpack.c.b16 %v3838, %v3834
          %v4275 = vpack.c.b16 %v3843, %v3839
          %v4276 = vpack.c.b16 %v3844, %v3840
          %v4277 = vpack.c.b16 %v3845, %v3841
          %v4278 = vpack.c.b16 %v3846, %v3842
          %v4279 = vpack.c.b16 %v3851, %v3847
          %v4280 = vpack.c.b16 %v3852, %v3848
          %v4281 = vpack.c.b16 %v3853, %v3849
          %v4282 = vpack.c.b16 %v3854, %v3850
          %v4283 = vpack.c.b16 %v3859, %v3855
          %v4284 = vpack.c.b16 %v3860, %v3856
          %v4285 = vpack.c.b16 %v3861, %v3857
          %v4286 = vpack.c.b16 %v3862, %v3858
          %v4287 = vpack.c.b16 %v3867, %v3863
          %v4288 = vpack.c.b16 %v3868, %v3864
          %v4289 = vpack.c.b16 %v3869, %v3865
          %v4290 = vpack.c.b16 %v3870, %v3866
          %v4291 = vpack.c.b16 %v3875, %v3871
          %v4292 = vpack.c.b16 %v3876, %v3872
          %v4293 = vpack.c.b16 %v3877, %v3873
          %v4294 = vpack.c.b16 %v3878, %v3874
          %v4295 = vpack.c.b16 %v3883, %v3879
          %v4296 = vpack.c.b16 %v3884, %v3880
          %v4297 = vpack.c.b16 %v3885, %v3881
          %v4298 = vpack.c.b16 %v3886, %v3882
          %v4299 = vpack.c.b16 %v3891, %v3887
          %v4300 = vpack.c.b16 %v3892, %v3888
          %v4301 = vpack.c.b16 %v3893, %v3889
          %v4302 = vpack.c.b16 %v3894, %v3890
          %v4303 = vpack.c.b16 %v3899, %v3895
          %v4304 = vpack.c.b16 %v3900, %v3896
          %v4305 = vpack.c.b16 %v3901, %v3897
          %v4306 = vpack.c.b16 %v3902, %v3898
          %v4307 = vpack.c.b16 %v3907, %v3903
          %v4308 = vpack.c.b16 %v3908, %v3904
          %v4309 = vpack.c.b16 %v3909, %v3905
          %v4310 = vpack.c.b16 %v3910, %v3906
          %v4311 = vpack.c.b16 %v3915, %v3911
          %v4312 = vpack.c.b16 %v3916, %v3912
          %v4313 = vpack.c.b16 %v3917, %v3913
          %v4314 = vpack.c.b16 %v3918, %v3914
          %v4315 = vpack.c.b16 %v3923, %v3919
          %v4316 = vpack.c.b16 %v3924, %v3920
          %v4317 = vpack.c.b16 %v3925, %v3921
          %v4318 = vpack.c.b16 %v3926, %v3922
          %v4319 = vpack.c.b16 %v3931, %v3927
          %v4320 = vpack.c.b16 %v3932, %v3928
          %v4321 = vpack.c.b16 %v3933, %v3929
          %v4322 = vpack.c.b16 %v3934, %v3930
          %v4323 = vpack.c.b16 %v3939, %v3935
          %v4324 = vpack.c.b16 %v3940, %v3936
          %v4325 = vpack.c.b16 %v3941, %v3937
          %v4326 = vpack.c.b16 %v3942, %v3938
          %v4327 = vpack.c.b16 %v3947, %v3943
          %v4328 = vpack.c.b16 %v3948, %v3944
          %v4329 = vpack.c.b16 %v3949, %v3945
          %v4330 = vpack.c.b16 %v3950, %v3946
          %v4331 = vpack.c.b16 %v3955, %v3951
          %v4332 = vpack.c.b16 %v3956, %v3952
          %v4333 = vpack.c.b16 %v3957, %v3953
          %v4334 = vpack.c.b16 %v3958, %v3954
          %v4335 = vpack.c.b16 %v3963, %v3959
          %v4336 = vpack.c.b16 %v3964, %v3960
          %v4337 = vpack.c.b16 %v3965, %v3961
          %v4338 = vpack.c.b16 %v3966, %v3962
          %v4339 = vpack.c.b16 %v3971, %v3967
          %v4340 = vpack.c.b16 %v3972, %v3968
          %v4341 = vpack.c.b16 %v3973, %v3969
          %v4342 = vpack.c.b16 %v3974, %v3970
          %v4343 = vpack.c.b16 %v3979, %v3975
          %v4344 = vpack.c.b16 %v3980, %v3976
          %v4345 = vpack.c.b16 %v3981, %v3977
          %v4346 = vpack.c.b16 %v3982, %v3978
          %v4347 = vpack.c.b16 %v3987, %v3983
          %v4348 = vpack.c.b16 %v3988, %v3984
          %v4349 = vpack.c.b16 %v3989, %v3985
          %v4350 = vpack.c.b16 %v3990, %v3986
          %v4351 = vpack.c.b16 %v3995, %v3991
          %v4352 = vpack.c.b16 %v3996, %v3992
          %v4353 = vpack.c.b16 %v3997, %v3993
          %v4354 = vpack.c.b16 %v3998, %v3994
          %v4355 = vpack.c.b16 %v4003, %v3999
          %v4356 = vpack.c.b16 %v4004, %v4000
          %v4357 = vpack.c.b16 %v4005, %v4001
          %v4358 = vpack.c.b16 %v4006, %v4002
          %v4359 = vpack.c.b16 %v4011, %v4007
          %v4360 = vpack.c.b16 %v4012, %v4008
          %v4361 = vpack.c.b16 %v4013, %v4009
          %v4362 = vpack.c.b16 %v4014, %v4010
          %v4363 = vpack.c.b16 %v4019, %v4015
          %v4364 = vpack.c.b16 %v4020, %v4016
          %v4365 = vpack.c.b16 %v4021, %v4017
          %v4366 = vpack.c.b16 %v4022, %v4018
          %v4367 = vpack.c.b16 %v4027, %v4023
          %v4368 = vpack.c.b16 %v4028, %v4024
          %v4369 = vpack.c.b16 %v4029, %v4025
          %v4370 = vpack.c.b16 %v4030, %v4026
          %v4371 = vpack.c.b16 %v4035, %v4031
          %v4372 = vpack.c.b16 %v4036, %v4032
          %v4373 = vpack.c.b16 %v4037, %v4033
          %v4374 = vpack.c.b16 %v4038, %v4034
          %v4375 = vpack.c.b16 %v4043, %v4039
          %v4376 = vpack.c.b16 %v4044, %v4040
          %v4377 = vpack.c.b16 %v4045, %v4041
          %v4378 = vpack.c.b16 %v4046, %v4042
          %v4379 = vpack.c.b16 %v4051, %v4047
          %v4380 = vpack.c.b16 %v4052, %v4048
          %v4381 = vpack.c.b16 %v4053, %v4049
          %v4382 = vpack.c.b16 %v4054, %v4050
          %v4383 = vpack.c.b16 %v4059, %v4055
          %v4384 = vpack.c.b16 %v4060, %v4056
          %v4385 = vpack.c.b16 %v4061, %v4057
          %v4386 = vpack.c.b16 %v4062, %v4058
          %v4387 = vpack.c.b16 %v4067, %v4063
          %v4388 = vpack.c.b16 %v4068, %v4064
          %v4389 = vpack.c.b16 %v4069, %v4065
          %v4390 = vpack.c.b16 %v4070, %v4066
          %v4391 = vpack.c.b16 %v4075, %v4071
          %v4392 = vpack.c.b16 %v4076, %v4072
          %v4393 = vpack.c.b16 %v4077, %v4073
          %v4394 = vpack.c.b16 %v4078, %v4074
          %v4395 = vpack.c.b16 %v4083, %v4079
          %v4396 = vpack.c.b16 %v4084, %v4080
          %v4397 = vpack.c.b16 %v4085, %v4081
          %v4398 = vpack.c.b16 %v4086, %v4082
          %v4399 = vpack.c.b16 %v4091, %v4087
          %v4400 = vpack.c.b16 %v4092, %v4088
          %v4401 = vpack.c.b16 %v4093, %v4089
          %v4402 = vpack.c.b16 %v4094, %v4090
          %v4403 = vpack.c.b16 %v4099, %v4095
          %v4404 = vpack.c.b16 %v4100, %v4096
          %v4405 = vpack.c.b16 %v4101, %v4097
          %v4406 = vpack.c.b16 %v4102, %v4098
          %v4407 = vpack.c.b16 %v4107, %v4103
          %v4408 = vpack.c.b16 %v4108, %v4104
          %v4409 = vpack.c.b16 %v4109, %v4105
          %v4410 = vpack.c.b16 %v4110, %v4106
          %v4411 = vpack.c.b16 %v4115, %v4111
          %v4412 = vpack.c.b16 %v4116, %v4112
          %v4413 = vpack.c.b16 %v4117, %v4113
          %v4414 = vpack.c.b16 %v4118, %v4114
          %v4415 = vpack.c.b16 %v4123, %v4119
          %v4416 = vpack.c.b16 %v4124, %v4120
          %v4417 = vpack.c.b16 %v4125, %v4121
          %v4418 = vpack.c.b16 %v4126, %v4122
          %v4419 = vpack.c.b16 %v4131, %v4127
          %v4420 = vpack.c.b16 %v4132, %v4128
          %v4421 = vpack.c.b16 %v4133, %v4129
          %v4422 = vpack.c.b16 %v4134, %v4130
          %v4423 = vpack.c.b16 %v4139, %v4135
          %v4424 = vpack.c.b16 %v4140, %v4136
          %v4425 = vpack.c.b16 %v4141, %v4137
          %v4426 = vpack.c.b16 %v4142, %v4138
          %v4427 = vpack.c.b16 %v4147, %v4143
          %v4428 = vpack.c.b16 %v4148, %v4144
          %v4429 = vpack.c.b16 %v4149, %v4145
          %v4430 = vpack.c.b16 %v4150, %v4146
          %v4431 = vpack.c.b16 %v4155, %v4151
          %v4432 = vpack.c.b16 %v4156, %v4152
          %v4433 = vpack.c.b16 %v4157, %v4153
          %v4434 = vpack.c.b16 %v4158, %v4154
          %v4435 = vpack.c.b16 %v4163, %v4159
          %v4436 = vpack.c.b16 %v4164, %v4160
          %v4437 = vpack.c.b16 %v4165, %v4161
          %v4438 = vpack.c.b16 %v4166, %v4162
          %v4439 = vpack.c.b16 %v4171, %v4167
          %v4440 = vpack.c.b16 %v4172, %v4168
          %v4441 = vpack.c.b16 %v4173, %v4169
          %v4442 = vpack.c.b16 %v4174, %v4170
          %v4443 = vpack.c.b16 %v4179, %v4175
          %v4444 = vpack.c.b16 %v4180, %v4176
          %v4445 = vpack.c.b16 %v4181, %v4177
          %v4446 = vpack.c.b16 %v4182, %v4178
          %v4447 = vpack.c.b16 %v4187, %v4183
          %v4448 = vpack.c.b16 %v4188, %v4184
          %v4449 = vpack.c.b16 %v4189, %v4185
          %v4450 = vpack.c.b16 %v4190, %v4186
          %v4451 = vpack.c.b16 %v4195, %v4191
          %v4452 = vpack.c.b16 %v4196, %v4192
          %v4453 = vpack.c.b16 %v4197, %v4193
          %v4454 = vpack.c.b16 %v4198, %v4194
          %v4712 = vlaneseq
          %v4713 = vshrl.u32 %v4712, 7
          %v4714 = vsub.s32 0, %v4713
          %v4715 = vrot.slane %v3430, %v4714
          %v4716 = vlaneseq
          %v4717 = vshrl.u32 %v4716, 7
          %v4718 = vsub.s32 1, %v4717
          %v4719 = vrot.slane %v3430, %v4718
          %v4720 = vlaneseq
          %v4721 = vshrl.u32 %v4720, 7
          %v4722 = vsub.s32 2, %v4721
          %v4723 = vrot.slane %v3430, %v4722
          %v4724 = vlaneseq
          %v4725 = vshrl.u32 %v4724, 7
          %v4726 = vsub.s32 3, %v4725
          %v4727 = vrot.slane %v3430, %v4726
          %4732 = vmatprep.subr.bf16.mxu0 %v4228
          %4733 = vmatpush1.bf16.msra.mxu0 %v4227
          %4734 = vmatprep.subr.bf16.mxu0 %v4224
          %4735 = vmatpush1.bf16.msra.mxu0 %v4223
          %4736 = vmatprep.subr.bf16.mxu0 %v4220
          %4737 = vmatpush1.bf16.msra.mxu0 %v4219
          %4738 = vmatprep.subr.bf16.mxu0 %v4216
          %4739 = vmatpush1.bf16.msra.mxu0 %v4215
          %4740 = vmatprep.subr.bf16.mxu0 %v4212
          %4741 = vmatpush1.bf16.msra.mxu0 %v4211
          %4742 = vmatprep.subr.bf16.mxu0 %v4208
          %4743 = vmatpush1.bf16.msra.mxu0 %v4207
          %4744 = vmatprep.subr.bf16.mxu0 %v4204
          %4745 = vmatpush1.bf16.msra.mxu0 %v4203
          %4746 = vmatprep.subr.bf16.mxu0 %v4200
          %4747 = vmatpush1.bf16.msra.mxu0 %v4199
          %4748 = vmatprep.subr.bf16.mxu0 %v4260
          %4749 = vmatpush2.bf16.msra.mxu0 %v4259
          %4750 = vmatprep.subr.bf16.mxu0 %v4256
          %4751 = vmatpush2.bf16.msra.mxu0 %v4255
          %4752 = vmatprep.subr.bf16.mxu0 %v4252
          %4753 = vmatpush2.bf16.msra.mxu0 %v4251
          %4754 = vmatprep.subr.bf16.mxu0 %v4248
          %4755 = vmatpush2.bf16.msra.mxu0 %v4247
          %4756 = vmatprep.subr.bf16.mxu0 %v4244
          %4757 = vmatpush2.bf16.msra.mxu0 %v4243
          %4758 = vmatprep.subr.bf16.mxu0 %v4240
          %4759 = vmatpush2.bf16.msra.mxu0 %v4239
          %4760 = vmatprep.subr.bf16.mxu0 %v4236
          %4761 = vmatpush2.bf16.msra.mxu0 %v4235
          %4762 = vmatprep.subr.bf16.mxu0 %v4232
          %4763 = vmatpush2.bf16.msra.mxu0 %v4231
          %4764 = vmatprep.mubr.bf16.mxu0 %v3167
          %4765 = vmatmul.mubr.bf16.gmra.mxu0 %v3166
          %v4766 = vpop.f32.mrf.mxu0
          %v4767 = vadd.f32 %v4715, %v4766
          %v4768 = vpop.f32.mrf.mxu0
          %v4769 = vadd.f32 %v4719, %v4768
          %v4770 = vpop.f32.mrf.mxu0
          %v4771 = vpop.f32.mrf.mxu0
          %4772 = vdwg.mxu0
          %4773 = vmatprep.subr.bf16.mxu0 %v4292
          %4774 = vmatpush1.bf16.msra.mxu0 %v4291
          %4775 = vmatprep.subr.bf16.mxu0 %v4288
          %4776 = vmatpush1.bf16.msra.mxu0 %v4287
          %4777 = vmatprep.subr.bf16.mxu0 %v4284
          %4778 = vmatpush1.bf16.msra.mxu0 %v4283
          %4779 = vmatprep.subr.bf16.mxu0 %v4280
          %4780 = vmatpush1.bf16.msra.mxu0 %v4279
          %4781 = vmatprep.subr.bf16.mxu0 %v4276
          %4782 = vmatpush1.bf16.msra.mxu0 %v4275
          %4783 = vmatprep.subr.bf16.mxu0 %v4272
          %4784 = vmatpush1.bf16.msra.mxu0 %v4271
          %4785 = vmatprep.subr.bf16.mxu0 %v4268
          %4786 = vmatpush1.bf16.msra.mxu0 %v4267
          %4787 = vmatprep.subr.bf16.mxu0 %v4264
          %4788 = vmatpush1.bf16.msra.mxu0 %v4263
          %4789 = vmatprep.subr.bf16.mxu0 %v4324
          %4790 = vmatpush2.bf16.msra.mxu0 %v4323
          %4791 = vmatprep.subr.bf16.mxu0 %v4320
          %4792 = vmatpush2.bf16.msra.mxu0 %v4319
          %4793 = vmatprep.subr.bf16.mxu0 %v4316
          %4794 = vmatpush2.bf16.msra.mxu0 %v4315
          %4795 = vmatprep.subr.bf16.mxu0 %v4312
          %4796 = vmatpush2.bf16.msra.mxu0 %v4311
          %4797 = vmatprep.subr.bf16.mxu0 %v4308
          %4798 = vmatpush2.bf16.msra.mxu0 %v4307
          %4799 = vmatprep.subr.bf16.mxu0 %v4304
          %4800 = vmatpush2.bf16.msra.mxu0 %v4303
          %4801 = vmatprep.subr.bf16.mxu0 %v4300
          %4802 = vmatpush2.bf16.msra.mxu0 %v4299
          %4803 = vmatprep.subr.bf16.mxu0 %v4296
          %4804 = vmatpush2.bf16.msra.mxu0 %v4295
          %4805 = vmatprep.mubr.bf16.mxu0 %v3169
          %4806 = vmatmul.mubr.bf16.gmra.mxu0 %v3168
          %v4807 = vpop.f32.mrf.mxu0
          %v4808 = vadd.f32 %v4767, %v4807
          %v4809 = vpop.f32.mrf.mxu0
          %v4810 = vadd.f32 %v4769, %v4809
          %v4811 = vpop.f32.mrf.mxu0
          %v4812 = vpop.f32.mrf.mxu0
          %4813 = vdwg.mxu0
          %4814 = vmatprep.subr.bf16.mxu0 %v4356
          %4815 = vmatpush1.bf16.msra.mxu0 %v4355
          %4816 = vmatprep.subr.bf16.mxu0 %v4352
          %4817 = vmatpush1.bf16.msra.mxu0 %v4351
          %4818 = vmatprep.subr.bf16.mxu0 %v4348
          %4819 = vmatpush1.bf16.msra.mxu0 %v4347
          %4820 = vmatprep.subr.bf16.mxu0 %v4344
          %4821 = vmatpush1.bf16.msra.mxu0 %v4343
          %4822 = vmatprep.subr.bf16.mxu0 %v4340
          %4823 = vmatpush1.bf16.msra.mxu0 %v4339
          %4824 = vmatprep.subr.bf16.mxu0 %v4336
          %4825 = vmatpush1.bf16.msra.mxu0 %v4335
          %4826 = vmatprep.subr.bf16.mxu0 %v4332
          %4827 = vmatpush1.bf16.msra.mxu0 %v4331
          %4828 = vmatprep.subr.bf16.mxu0 %v4328
          %4829 = vmatpush1.bf16.msra.mxu0 %v4327
          %4830 = vmatprep.subr.bf16.mxu0 %v4388
          %4831 = vmatpush2.bf16.msra.mxu0 %v4387
          %4832 = vmatprep.subr.bf16.mxu0 %v4384
          %4833 = vmatpush2.bf16.msra.mxu0 %v4383
          %4834 = vmatprep.subr.bf16.mxu0 %v4380
          %4835 = vmatpush2.bf16.msra.mxu0 %v4379
          %4836 = vmatprep.subr.bf16.mxu0 %v4376
          %4837 = vmatpush2.bf16.msra.mxu0 %v4375
          %4838 = vmatprep.subr.bf16.mxu0 %v4372
          %4839 = vmatpush2.bf16.msra.mxu0 %v4371
          %4840 = vmatprep.subr.bf16.mxu0 %v4368
          %4841 = vmatpush2.bf16.msra.mxu0 %v4367
          %4842 = vmatprep.subr.bf16.mxu0 %v4364
          %4843 = vmatpush2.bf16.msra.mxu0 %v4363
          %4844 = vmatprep.subr.bf16.mxu0 %v4360
          %4845 = vmatpush2.bf16.msra.mxu0 %v4359
          %4846 = vmatprep.mubr.bf16.mxu0 %v3171
          %4847 = vmatmul.mubr.bf16.gmra.mxu0 %v3170
          %v4848 = vpop.f32.mrf.mxu0
          %v4849 = vadd.f32 %v4808, %v4848
          %v4850 = vpop.f32.mrf.mxu0
          %v4851 = vadd.f32 %v4810, %v4850
          %v4852 = vpop.f32.mrf.mxu0
          %v4853 = vpop.f32.mrf.mxu0
          %4854 = vdwg.mxu0
          %4855 = vmatprep.subr.bf16.mxu0 %v4420
          %4856 = vmatpush1.bf16.msra.mxu0 %v4419
          %4857 = vmatprep.subr.bf16.mxu0 %v4416
          %4858 = vmatpush1.bf16.msra.mxu0 %v4415
          %4859 = vmatprep.subr.bf16.mxu0 %v4412
          %4860 = vmatpush1.bf16.msra.mxu0 %v4411
          %4861 = vmatprep.subr.bf16.mxu0 %v4408
          %4862 = vmatpush1.bf16.msra.mxu0 %v4407
          %4863 = vmatprep.subr.bf16.mxu0 %v4404
          %4864 = vmatpush1.bf16.msra.mxu0 %v4403
          %4865 = vmatprep.subr.bf16.mxu0 %v4400
          %4866 = vmatpush1.bf16.msra.mxu0 %v4399
          %4867 = vmatprep.subr.bf16.mxu0 %v4396
          %4868 = vmatpush1.bf16.msra.mxu0 %v4395
          %4869 = vmatprep.subr.bf16.mxu0 %v4392
          %4870 = vmatpush1.bf16.msra.mxu0 %v4391
          %4871 = vmatprep.subr.bf16.mxu0 %v4452
          %4872 = vmatpush2.bf16.msra.mxu0 %v4451
          %4873 = vmatprep.subr.bf16.mxu0 %v4448
          %4874 = vmatpush2.bf16.msra.mxu0 %v4447
          %4875 = vmatprep.subr.bf16.mxu0 %v4444
          %4876 = vmatpush2.bf16.msra.mxu0 %v4443
          %4877 = vmatprep.subr.bf16.mxu0 %v4440
          %4878 = vmatpush2.bf16.msra.mxu0 %v4439
          %4879 = vmatprep.subr.bf16.mxu0 %v4436
          %4880 = vmatpush2.bf16.msra.mxu0 %v4435
          %4881 = vmatprep.subr.bf16.mxu0 %v4432
          %4882 = vmatpush2.bf16.msra.mxu0 %v4431
          %4883 = vmatprep.subr.bf16.mxu0 %v4428
          %4884 = vmatpush2.bf16.msra.mxu0 %v4427
          %4885 = vmatprep.subr.bf16.mxu0 %v4424
          %4886 = vmatpush2.bf16.msra.mxu0 %v4423
          %4887 = vmatprep.mubr.bf16.mxu0 %v3173
          %4888 = vmatmul.mubr.bf16.gmra.mxu0 %v3172
          %v4889 = vpop.f32.mrf.mxu0
          %v4890 = vadd.f32 %v4849, %v4889
          %v4891 = vpop.f32.mrf.mxu0
          %v4892 = vadd.f32 %v4851, %v4891
          %v4893 = vpop.f32.mrf.mxu0
          %v4894 = vpop.f32.mrf.mxu0
          %4895 = vdwg.mxu0
          %4896 = vmatprep.subr.bf16.mxu0 %v4230
          %4897 = vmatpush1.bf16.msra.mxu0 %v4229
          %4898 = vmatprep.subr.bf16.mxu0 %v4226
          %4899 = vmatpush1.bf16.msra.mxu0 %v4225
          %4900 = vmatprep.subr.bf16.mxu0 %v4222
          %4901 = vmatpush1.bf16.msra.mxu0 %v4221
          %4902 = vmatprep.subr.bf16.mxu0 %v4218
          %4903 = vmatpush1.bf16.msra.mxu0 %v4217
          %4904 = vmatprep.subr.bf16.mxu0 %v4214
          %4905 = vmatpush1.bf16.msra.mxu0 %v4213
          %4906 = vmatprep.subr.bf16.mxu0 %v4210
          %4907 = vmatpush1.bf16.msra.mxu0 %v4209
          %4908 = vmatprep.subr.bf16.mxu0 %v4206
          %4909 = vmatpush1.bf16.msra.mxu0 %v4205
          %4910 = vmatprep.subr.bf16.mxu0 %v4202
          %4911 = vmatpush1.bf16.msra.mxu0 %v4201
          %4912 = vmatprep.subr.bf16.mxu0 %v4262
          %4913 = vmatpush2.bf16.msra.mxu0 %v4261
          %4914 = vmatprep.subr.bf16.mxu0 %v4258
          %4915 = vmatpush2.bf16.msra.mxu0 %v4257
          %4916 = vmatprep.subr.bf16.mxu0 %v4254
          %4917 = vmatpush2.bf16.msra.mxu0 %v4253
          %4918 = vmatprep.subr.bf16.mxu0 %v4250
          %4919 = vmatpush2.bf16.msra.mxu0 %v4249
          %4920 = vmatprep.subr.bf16.mxu0 %v4246
          %4921 = vmatpush2.bf16.msra.mxu0 %v4245
          %4922 = vmatprep.subr.bf16.mxu0 %v4242
          %4923 = vmatpush2.bf16.msra.mxu0 %v4241
          %4924 = vmatprep.subr.bf16.mxu0 %v4238
          %4925 = vmatpush2.bf16.msra.mxu0 %v4237
          %4926 = vmatprep.subr.bf16.mxu0 %v4234
          %4927 = vmatpush2.bf16.msra.mxu0 %v4233
          %4928 = vmatprep.mubr.bf16.mxu0 %v3167
          %4929 = vmatmul.mubr.bf16.gmra.mxu0 %v3166
          %v4930 = vpop.f32.mrf.mxu0
          %v4931 = vadd.f32 %v4723, %v4930
          %v4932 = vpop.f32.mrf.mxu0
          %v4933 = vadd.f32 %v4727, %v4932
          %v4934 = vpop.f32.mrf.mxu0
          %v4935 = vpop.f32.mrf.mxu0
          %4936 = vdwg.mxu0
          %4937 = vmatprep.subr.bf16.mxu0 %v4294
          %4938 = vmatpush1.bf16.msra.mxu0 %v4293
          %4939 = vmatprep.subr.bf16.mxu0 %v4290
          %4940 = vmatpush1.bf16.msra.mxu0 %v4289
          %4941 = vmatprep.subr.bf16.mxu0 %v4286
          %4942 = vmatpush1.bf16.msra.mxu0 %v4285
          %4943 = vmatprep.subr.bf16.mxu0 %v4282
          %4944 = vmatpush1.bf16.msra.mxu0 %v4281
          %4945 = vmatprep.subr.bf16.mxu0 %v4278
          %4946 = vmatpush1.bf16.msra.mxu0 %v4277
          %4947 = vmatprep.subr.bf16.mxu0 %v4274
          %4948 = vmatpush1.bf16.msra.mxu0 %v4273
          %4949 = vmatprep.subr.bf16.mxu0 %v4270
          %4950 = vmatpush1.bf16.msra.mxu0 %v4269
          %4951 = vmatprep.subr.bf16.mxu0 %v4266
          %4952 = vmatpush1.bf16.msra.mxu0 %v4265
          %4953 = vmatprep.subr.bf16.mxu0 %v4326
          %4954 = vmatpush2.bf16.msra.mxu0 %v4325
          %4955 = vmatprep.subr.bf16.mxu0 %v4322
          %4956 = vmatpush2.bf16.msra.mxu0 %v4321
          %4957 = vmatprep.subr.bf16.mxu0 %v4318
          %4958 = vmatpush2.bf16.msra.mxu0 %v4317
          %4959 = vmatprep.subr.bf16.mxu0 %v4314
          %4960 = vmatpush2.bf16.msra.mxu0 %v4313
          %4961 = vmatprep.subr.bf16.mxu0 %v4310
          %4962 = vmatpush2.bf16.msra.mxu0 %v4309
          %4963 = vmatprep.subr.bf16.mxu0 %v4306
          %4964 = vmatpush2.bf16.msra.mxu0 %v4305
          %4965 = vmatprep.subr.bf16.mxu0 %v4302
          %4966 = vmatpush2.bf16.msra.mxu0 %v4301
          %4967 = vmatprep.subr.bf16.mxu0 %v4298
          %4968 = vmatpush2.bf16.msra.mxu0 %v4297
          %4969 = vmatprep.mubr.bf16.mxu0 %v3169
          %4970 = vmatmul.mubr.bf16.gmra.mxu0 %v3168
          %v4971 = vpop.f32.mrf.mxu0
          %v4972 = vadd.f32 %v4931, %v4971
          %v4973 = vpop.f32.mrf.mxu0
          %v4974 = vadd.f32 %v4933, %v4973
          %v4975 = vpop.f32.mrf.mxu0
          %v4976 = vpop.f32.mrf.mxu0
          %4977 = vdwg.mxu0
          %4978 = vmatprep.subr.bf16.mxu0 %v4358
          %4979 = vmatpush1.bf16.msra.mxu0 %v4357
          %4980 = vmatprep.subr.bf16.mxu0 %v4354
          %4981 = vmatpush1.bf16.msra.mxu0 %v4353
          %4982 = vmatprep.subr.bf16.mxu0 %v4350
          %4983 = vmatpush1.bf16.msra.mxu0 %v4349
          %4984 = vmatprep.subr.bf16.mxu0 %v4346
          %4985 = vmatpush1.bf16.msra.mxu0 %v4345
          %4986 = vmatprep.subr.bf16.mxu0 %v4342
          %4987 = vmatpush1.bf16.msra.mxu0 %v4341
          %4988 = vmatprep.subr.bf16.mxu0 %v4338
          %4989 = vmatpush1.bf16.msra.mxu0 %v4337
          %4990 = vmatprep.subr.bf16.mxu0 %v4334
          %4991 = vmatpush1.bf16.msra.mxu0 %v4333
          %4992 = vmatprep.subr.bf16.mxu0 %v4330
          %4993 = vmatpush1.bf16.msra.mxu0 %v4329
          %4994 = vmatprep.subr.bf16.mxu0 %v4390
          %4995 = vmatpush2.bf16.msra.mxu0 %v4389
          %4996 = vmatprep.subr.bf16.mxu0 %v4386
          %4997 = vmatpush2.bf16.msra.mxu0 %v4385
          %4998 = vmatprep.subr.bf16.mxu0 %v4382
          %4999 = vmatpush2.bf16.msra.mxu0 %v4381
          %5000 = vmatprep.subr.bf16.mxu0 %v4378
          %5001 = vmatpush2.bf16.msra.mxu0 %v4377
          %5002 = vmatprep.subr.bf16.mxu0 %v4374
          %5003 = vmatpush2.bf16.msra.mxu0 %v4373
          %5004 = vmatprep.subr.bf16.mxu0 %v4370
          %5005 = vmatpush2.bf16.msra.mxu0 %v4369
          %5006 = vmatprep.subr.bf16.mxu0 %v4366
          %5007 = vmatpush2.bf16.msra.mxu0 %v4365
          %5008 = vmatprep.subr.bf16.mxu0 %v4362
          %5009 = vmatpush2.bf16.msra.mxu0 %v4361
          %5010 = vmatprep.mubr.bf16.mxu0 %v3171
          %5011 = vmatmul.mubr.bf16.gmra.mxu0 %v3170
          %v5012 = vpop.f32.mrf.mxu0
          %v5013 = vadd.f32 %v4972, %v5012
          %v5014 = vpop.f32.mrf.mxu0
          %v5015 = vadd.f32 %v4974, %v5014
          %v5016 = vpop.f32.mrf.mxu0
          %v5017 = vpop.f32.mrf.mxu0
          %5018 = vdwg.mxu0
          %5019 = vmatprep.subr.bf16.mxu0 %v4422
          %5020 = vmatpush1.bf16.msra.mxu0 %v4421
          %5021 = vmatprep.subr.bf16.mxu0 %v4418
          %5022 = vmatpush1.bf16.msra.mxu0 %v4417
          %5023 = vmatprep.subr.bf16.mxu0 %v4414
          %5024 = vmatpush1.bf16.msra.mxu0 %v4413
          %5025 = vmatprep.subr.bf16.mxu0 %v4410
          %5026 = vmatpush1.bf16.msra.mxu0 %v4409
          %5027 = vmatprep.subr.bf16.mxu0 %v4406
          %5028 = vmatpush1.bf16.msra.mxu0 %v4405
          %5029 = vmatprep.subr.bf16.mxu0 %v4402
          %5030 = vmatpush1.bf16.msra.mxu0 %v4401
          %5031 = vmatprep.subr.bf16.mxu0 %v4398
          %5032 = vmatpush1.bf16.msra.mxu0 %v4397
          %5033 = vmatprep.subr.bf16.mxu0 %v4394
          %5034 = vmatpush1.bf16.msra.mxu0 %v4393
          %5035 = vmatprep.subr.bf16.mxu0 %v4454
          %5036 = vmatpush2.bf16.msra.mxu0 %v4453
          %5037 = vmatprep.subr.bf16.mxu0 %v4450
          %5038 = vmatpush2.bf16.msra.mxu0 %v4449
          %5039 = vmatprep.subr.bf16.mxu0 %v4446
          %5040 = vmatpush2.bf16.msra.mxu0 %v4445
          %5041 = vmatprep.subr.bf16.mxu0 %v4442
          %5042 = vmatpush2.bf16.msra.mxu0 %v4441
          %5043 = vmatprep.subr.bf16.mxu0 %v4438
          %5044 = vmatpush2.bf16.msra.mxu0 %v4437
          %5045 = vmatprep.subr.bf16.mxu0 %v4434
          %5046 = vmatpush2.bf16.msra.mxu0 %v4433
          %5047 = vmatprep.subr.bf16.mxu0 %v4430
          %5048 = vmatpush2.bf16.msra.mxu0 %v4429
          %5049 = vmatprep.subr.bf16.mxu0 %v4426
          %5050 = vmatpush2.bf16.msra.mxu0 %v4425
          %5051 = vmatprep.mubr.bf16.mxu0 %v3173
          %5052 = vmatmul.mubr.bf16.gmra.mxu0 %v3172
          %v5053 = vpop.f32.mrf.mxu0
          %v5054 = vadd.f32 %v5013, %v5053
          %v5055 = vpop.f32.mrf.mxu0
          %v5056 = vadd.f32 %v5015, %v5055
          %v5057 = vpop.f32.mrf.mxu0
          %v5058 = vpop.f32.mrf.mxu0
          %5059 = vdwg.mxu0
          %vm5060 = vcmp.ge.f32.partialorder %v4890, 0.0
          %vm5061 = vcmp.ge.f32.partialorder %v4892, 0.0
          %vm5062 = vcmp.ge.f32.partialorder %v5054, 0.0
          %vm5063 = vcmp.ge.f32.partialorder %v5056, 0.0
          %v5064 = vmul.f32 %v4890, 0.01
          %v5065 = vmul.f32 %v4892, 0.01
          %v5066 = vmul.f32 %v5054, 0.01
          %v5067 = vmul.f32 %v5056, 0.01
          %v5068 = vsel %vm5060, %v4890, %v5064
          %v5069 = vsel %vm5061, %v4892, %v5065
          %v5070 = vsel %vm5062, %v5054, %v5066
          %v5071 = vsel %vm5063, %v5056, %v5067
          %v5072 = vld [vmem:[%s9] sm:$0xff]
          %v5073 = vld [vmem:[%s9 + $0x8] sm:$0xff]
          %v5074 = vld [vmem:[%s9 + $0x10] sm:$0xff]
          %v5075 = vld [vmem:[%s9 + $0x18] sm:$0xff]
          %v5076 = vld [vmem:[%s9 + $0x20] sm:$0xff]
          %v5077 = vld [vmem:[%s9 + $0x28] sm:$0xff]
          %v5078 = vld [vmem:[%s9 + $0x30] sm:$0xff]
          %v5079 = vld [vmem:[%s9 + $0x38] sm:$0xff]
          %v5080 = vld [vmem:[%s9 + $0x40] sm:$0xff]
          %v5081 = vld [vmem:[%s9 + $0x48] sm:$0xff]
          %v5082 = vld [vmem:[%s9 + $0x50] sm:$0xff]
          %v5083 = vld [vmem:[%s9 + $0x58] sm:$0xff]
          %v5084 = vld [vmem:[%s9 + $0x60] sm:$0xff]
          %v5085 = vld [vmem:[%s9 + $0x68] sm:$0xff]
          %v5086 = vld [vmem:[%s9 + $0x70] sm:$0xff]
          %v5087 = vld [vmem:[%s9 + $0x78] sm:$0xff]
          %v5088 = vld [vmem:[%s9 + $0x80] sm:$0xff]
          %v5089 = vld [vmem:[%s9 + $0x88] sm:$0xff]
          %v5090 = vld [vmem:[%s9 + $0x90] sm:$0xff]
          %v5091 = vld [vmem:[%s9 + $0x98] sm:$0xff]
          %v5092 = vld [vmem:[%s9 + $0xa0] sm:$0xff]
          %v5093 = vld [vmem:[%s9 + $0xa8] sm:$0xff]
          %v5094 = vld [vmem:[%s9 + $0xb0] sm:$0xff]
          %v5095 = vld [vmem:[%s9 + $0xb8] sm:$0xff]
          %v5096 = vld [vmem:[%s9 + $0xc0] sm:$0xff]
          %v5097 = vld [vmem:[%s9 + $0xc8] sm:$0xff]
          %v5098 = vld [vmem:[%s9 + $0xd0] sm:$0xff]
          %v5099 = vld [vmem:[%s9 + $0xd8] sm:$0xff]
          %v5100 = vld [vmem:[%s9 + $0xe0] sm:$0xff]
          %v5101 = vld [vmem:[%s9 + $0xe8] sm:$0xff]
          %v5102 = vld [vmem:[%s9 + $0xf0] sm:$0xff]
          %v5103 = vld [vmem:[%s9 + $0xf8] sm:$0xff]
          %v5104 = vld [vmem:[%s9 + $0x100] sm:$0xff]
          %v5105 = vld [vmem:[%s9 + $0x108] sm:$0xff]
          %v5106 = vld [vmem:[%s9 + $0x110] sm:$0xff]
          %v5107 = vld [vmem:[%s9 + $0x118] sm:$0xff]
          %v5108 = vld [vmem:[%s9 + $0x120] sm:$0xff]
          %v5109 = vld [vmem:[%s9 + $0x128] sm:$0xff]
          %v5110 = vld [vmem:[%s9 + $0x130] sm:$0xff]
          %v5111 = vld [vmem:[%s9 + $0x138] sm:$0xff]
          %v5112 = vld [vmem:[%s9 + $0x140] sm:$0xff]
          %v5113 = vld [vmem:[%s9 + $0x148] sm:$0xff]
          %v5114 = vld [vmem:[%s9 + $0x150] sm:$0xff]
          %v5115 = vld [vmem:[%s9 + $0x158] sm:$0xff]
          %v5116 = vld [vmem:[%s9 + $0x160] sm:$0xff]
          %v5117 = vld [vmem:[%s9 + $0x168] sm:$0xff]
          %v5118 = vld [vmem:[%s9 + $0x170] sm:$0xff]
          %v5119 = vld [vmem:[%s9 + $0x178] sm:$0xff]
          %v5120 = vld [vmem:[%s9 + $0x180] sm:$0xff]
          %v5121 = vld [vmem:[%s9 + $0x188] sm:$0xff]
          %v5122 = vld [vmem:[%s9 + $0x190] sm:$0xff]
          %v5123 = vld [vmem:[%s9 + $0x198] sm:$0xff]
          %v5124 = vld [vmem:[%s9 + $0x1a0] sm:$0xff]
          %v5125 = vld [vmem:[%s9 + $0x1a8] sm:$0xff]
          %v5126 = vld [vmem:[%s9 + $0x1b0] sm:$0xff]
          %v5127 = vld [vmem:[%s9 + $0x1b8] sm:$0xff]
          %v5128 = vld [vmem:[%s9 + $0x1c0] sm:$0xff]
          %v5129 = vld [vmem:[%s9 + $0x1c8] sm:$0xff]
          %v5130 = vld [vmem:[%s9 + $0x1d0] sm:$0xff]
          %v5131 = vld [vmem:[%s9 + $0x1d8] sm:$0xff]
          %v5132 = vld [vmem:[%s9 + $0x1e0] sm:$0xff]
          %v5133 = vld [vmem:[%s9 + $0x1e8] sm:$0xff]
          %v5134 = vld [vmem:[%s9 + $0x1f0] sm:$0xff]
          %v5135 = vld [vmem:[%s9 + $0x1f8] sm:$0xff]
          %v5136 = vld [vmem:[%s10] sm:$0x1]
          %5137 = vmatprep.subr.mxu0 0.0
          %5138 = vmatpush1.msra.mxu0 %v5087
          %5139 = vmatprep.subr.mxu0 0.0
          %5140 = vmatpush1.msra.mxu0 %v5086
          %5141 = vmatprep.subr.mxu0 0.0
          %5142 = vmatpush1.msra.mxu0 %v5085
          %5143 = vmatprep.subr.mxu0 0.0
          %5144 = vmatpush1.msra.mxu0 %v5084
          %5145 = vmatprep.subr.mxu0 0.0
          %5146 = vmatpush1.msra.mxu0 %v5083
          %5147 = vmatprep.subr.mxu0 0.0
          %5148 = vmatpush1.msra.mxu0 %v5082
          %5149 = vmatprep.subr.mxu0 0.0
          %5150 = vmatpush1.msra.mxu0 %v5081
          %5151 = vmatprep.subr.mxu0 0.0
          %5152 = vmatpush1.msra.mxu0 %v5080
          %5153 = vmatprep.subr.mxu0 0.0
          %5154 = vmatpush1.msra.mxu0 %v5079
          %5155 = vmatprep.subr.mxu0 0.0
          %5156 = vmatpush1.msra.mxu0 %v5078
          %5157 = vmatprep.subr.mxu0 0.0
          %5158 = vmatpush1.msra.mxu0 %v5077
          %5159 = vmatprep.subr.mxu0 0.0
          %5160 = vmatpush1.msra.mxu0 %v5076
          %5161 = vmatprep.subr.mxu0 0.0
          %5162 = vmatpush1.msra.mxu0 %v5075
          %5163 = vmatprep.subr.mxu0 0.0
          %5164 = vmatpush1.msra.mxu0 %v5074
          %5165 = vmatprep.subr.mxu0 0.0
          %5166 = vmatpush1.msra.mxu0 %v5073
          %5167 = vmatprep.subr.mxu0 0.0
          %5168 = vmatpush1.msra.mxu0 %v5072
          %5169 = vmatprep.subr.mxu0 0.0
          %5170 = vmatpush2.msra.mxu0 %v5103
          %5171 = vmatprep.subr.mxu0 0.0
          %5172 = vmatpush2.msra.mxu0 %v5102
          %5173 = vmatprep.subr.mxu0 0.0
          %5174 = vmatpush2.msra.mxu0 %v5101
          %5175 = vmatprep.subr.mxu0 0.0
          %5176 = vmatpush2.msra.mxu0 %v5100
          %5177 = vmatprep.subr.mxu0 0.0
          %5178 = vmatpush2.msra.mxu0 %v5099
          %5179 = vmatprep.subr.mxu0 0.0
          %5180 = vmatpush2.msra.mxu0 %v5098
          %5181 = vmatprep.subr.mxu0 0.0
          %5182 = vmatpush2.msra.mxu0 %v5097
          %5183 = vmatprep.subr.mxu0 0.0
          %5184 = vmatpush2.msra.mxu0 %v5096
          %5185 = vmatprep.subr.mxu0 0.0
          %5186 = vmatpush2.msra.mxu0 %v5095
          %5187 = vmatprep.subr.mxu0 0.0
          %5188 = vmatpush2.msra.mxu0 %v5094
          %5189 = vmatprep.subr.mxu0 0.0
          %5190 = vmatpush2.msra.mxu0 %v5093
          %5191 = vmatprep.subr.mxu0 0.0
          %5192 = vmatpush2.msra.mxu0 %v5092
          %5193 = vmatprep.subr.mxu0 0.0
          %5194 = vmatpush2.msra.mxu0 %v5091
          %5195 = vmatprep.subr.mxu0 0.0
          %5196 = vmatpush2.msra.mxu0 %v5090
          %5197 = vmatprep.subr.mxu0 0.0
          %5198 = vmatpush2.msra.mxu0 %v5089
          %5199 = vmatprep.subr.mxu0 0.0
          %5200 = vmatpush2.msra.mxu0 %v5088
          %5201 = vmatprep.mubr.f32.mxu0 %v5069
          %5202 = vmatmul.mubr.f32.gmra.mxu0 %v5068
          %v5203 = vpop.f32.mrf.mxu0
          %v5204 = vadd.f32 %v5136, %v5203
          %v5205 = vpop.f32.mrf.mxu0
          %5206 = vdwg.mxu0
          %5207 = vmatprep.subr.mxu0 0.0
          %5208 = vmatpush1.msra.mxu0 %v5119
          %5209 = vmatprep.subr.mxu0 0.0
          %5210 = vmatpush1.msra.mxu0 %v5118
          %5211 = vmatprep.subr.mxu0 0.0
          %5212 = vmatpush1.msra.mxu0 %v5117
          %5213 = vmatprep.subr.mxu0 0.0
          %5214 = vmatpush1.msra.mxu0 %v5116
          %5215 = vmatprep.subr.mxu0 0.0
          %5216 = vmatpush1.msra.mxu0 %v5115
          %5217 = vmatprep.subr.mxu0 0.0
          %5218 = vmatpush1.msra.mxu0 %v5114
          %5219 = vmatprep.subr.mxu0 0.0
          %5220 = vmatpush1.msra.mxu0 %v5113
          %5221 = vmatprep.subr.mxu0 0.0
          %5222 = vmatpush1.msra.mxu0 %v5112
          %5223 = vmatprep.subr.mxu0 0.0
          %5224 = vmatpush1.msra.mxu0 %v5111
          %5225 = vmatprep.subr.mxu0 0.0
          %5226 = vmatpush1.msra.mxu0 %v5110
          %5227 = vmatprep.subr.mxu0 0.0
          %5228 = vmatpush1.msra.mxu0 %v5109
          %5229 = vmatprep.subr.mxu0 0.0
          %5230 = vmatpush1.msra.mxu0 %v5108
          %5231 = vmatprep.subr.mxu0 0.0
          %5232 = vmatpush1.msra.mxu0 %v5107
          %5233 = vmatprep.subr.mxu0 0.0
          %5234 = vmatpush1.msra.mxu0 %v5106
          %5235 = vmatprep.subr.mxu0 0.0
          %5236 = vmatpush1.msra.mxu0 %v5105
          %5237 = vmatprep.subr.mxu0 0.0
          %5238 = vmatpush1.msra.mxu0 %v5104
          %5239 = vmatprep.subr.mxu0 0.0
          %5240 = vmatpush2.msra.mxu0 %v5135
          %5241 = vmatprep.subr.mxu0 0.0
          %5242 = vmatpush2.msra.mxu0 %v5134
          %5243 = vmatprep.subr.mxu0 0.0
          %5244 = vmatpush2.msra.mxu0 %v5133
          %5245 = vmatprep.subr.mxu0 0.0
          %5246 = vmatpush2.msra.mxu0 %v5132
          %5247 = vmatprep.subr.mxu0 0.0
          %5248 = vmatpush2.msra.mxu0 %v5131
          %5249 = vmatprep.subr.mxu0 0.0
          %5250 = vmatpush2.msra.mxu0 %v5130
          %5251 = vmatprep.subr.mxu0 0.0
          %5252 = vmatpush2.msra.mxu0 %v5129
          %5253 = vmatprep.subr.mxu0 0.0
          %5254 = vmatpush2.msra.mxu0 %v5128
          %5255 = vmatprep.subr.mxu0 0.0
          %5256 = vmatpush2.msra.mxu0 %v5127
          %5257 = vmatprep.subr.mxu0 0.0
          %5258 = vmatpush2.msra.mxu0 %v5126
          %5259 = vmatprep.subr.mxu0 0.0
          %5260 = vmatpush2.msra.mxu0 %v5125
          %5261 = vmatprep.subr.mxu0 0.0
          %5262 = vmatpush2.msra.mxu0 %v5124
          %5263 = vmatprep.subr.mxu0 0.0
          %5264 = vmatpush2.msra.mxu0 %v5123
          %5265 = vmatprep.subr.mxu0 0.0
          %5266 = vmatpush2.msra.mxu0 %v5122
          %5267 = vmatprep.subr.mxu0 0.0
          %5268 = vmatpush2.msra.mxu0 %v5121
          %5269 = vmatprep.subr.mxu0 0.0
          %5270 = vmatpush2.msra.mxu0 %v5120
          %5271 = vmatprep.mubr.f32.mxu0 %v5071
          %5272 = vmatmul.mubr.f32.gmra.mxu0 %v5070
          %v5273 = vpop.f32.mrf.mxu0
          %v5274 = vadd.f32 %v5204, %v5273
          %v5275 = vpop.f32.mrf.mxu0
          %5276 = vdwg.mxu0
          %vm5277 = vcmask 40960
          %5278 = vst.msk [vmem:[%s416] sm:$0x1] %vm5277, %v5274
        $region76: #{tpu_custom_call.1} parent=63 // pred_fallthru
          _
        %s5279 = sand.u32 %s284, 1
        %s5280 = scalar_lea.sflag [#allocation5], %s5279
        %s5281 = sand.u32 %s284, 1
        %s5282 = scalar_lea.vmem [#allocation6], %s5281
        // Predicated region
        $region77: #{tpu_custom_call.1} parent=63 // pred_check
          %p5283 = pneg %p294
        $region78: #{tpu_custom_call.1} parent=63 // pred_check_branch
          %5285 = sbr.rel (%p5283) target = $region80
        $region79: #{tpu_custom_call.1} parent=63 // pred_region
          %s5287 = ssub.s32 16, 16
          %5288 = vsyncadd %s5280, %s5287
          %s5289 = smul.addr %s30, 16
          %s5290 = scalar_lea.hbm %s11, %s5289
          %s5292 = sshll.u32 %s5282, 4
          %s5293 = int_to_ptr.vmem [resolvable:$true] %s5292
          %5295 = dma.vmem_to_hbm [thread:$0]  %s5293, 16, %s5290, %s5280
        $region80: #{tpu_custom_call.1} parent=63 // pred_fallthru
          _
      $region64: #{tpu_custom_call.1} parent=5 // pred_fallthru
        _
      %p5296 = scmp.le.s32.totalorder 2, %s21
      // Predicated region
      $region81: #{tpu_custom_call.1} parent=5 // pred_check
        %p5297 = pneg %p5296
      $region82: #{tpu_custom_call.1} parent=5 // pred_check_branch
        %5299 = sbr.rel (%p5297) target = $region84
      $region83: #{tpu_custom_call.1} parent=5 // pred_region
        %s5300 = ssub.s32 %s21, 2
        // Predicated region
        $region85: #{tpu_custom_call.1} parent=83 // pred_check
          %p5301 = pneg %p300
        $region86: #{tpu_custom_call.1} parent=83 // pred_check_branch
          %5303 = sbr.rel (%p5301) target = $region88
        $region87: #{tpu_custom_call.1} parent=83 // pred_region
          %s5304 = sand.u32 %s285, 1
          %s5305 = scalar_lea.sflag [#allocation5], %s5304
          %s5306 = sand.u32 %s285, 1
          %s5307 = scalar_lea.vmem [#allocation6], %s5306
          %5308 = dma.done %s5305, 16
        $region88: #{tpu_custom_call.1} parent=83 // pred_fallthru
          _
      $region84: #{tpu_custom_call.1} parent=5 // pred_fallthru
        _
    $region6: #{tpu_custom_call.1} parent=1 // loop_footer
      %s25 = sadd.s32 1, %s21
    $region7: #{tpu_custom_call.1} parent=1 // loop_footer_branch
      %20 = sbr.rel target = $region3
    $region8: #{tpu_custom_call.1} parent=1 // loop_exit
      _
    %5309 = vsyncpa [#allocation4], 1
    %s5310 = scalar_lea.sflag [#allocation4], 1
    %5311 = vsyncpa %s5310, 1
    %5312 = vsyncpa [#allocation5], 1
    %s5313 = scalar_lea.sflag [#allocation5], 1
    %5314 = vsyncpa %s5313, 1

</llo_original>
